<compile_context>
chip_gen: v7x
topology: tpu7x:2x2x1
jax: 0.10.0
libtpu: 0.0.40
codegen_flags: <defaults>
</compile_context>

<pallas_src>
import jax
import jax.numpy as jnp
from jax.experimental import pallas as pl
from jax.experimental.pallas import tpu as pltpu

_VMEM_LIMIT = 32 * 1024 * 1024   # fits v7x's 64 MiB physical VMEM per TensorCore


def _round_up(x, m):
    return ((x + m - 1) // m) * m


def _sigmoid(v):
    # exp + approx reciprocal both go to the EUP (free VLIW slot under MXU/DMA).
    # Clamp the exp argument so 1/(1+exp(-v)) never sees +inf on the approx path.
    return pl.reciprocal(1.0 + jnp.exp(-jnp.maximum(v, -60.0)), approx=True)


# ---------------- fused conv (im2col matmul) + BN affine + 2x2 maxpool + sigmoid ----------------
def _conv_bn_pool_sig_kernel(at_ref, w_ref, scale_ref, shift_ref, o_ref):
    # at_ref:      (1, 4, K, tp) bf16  -- 4 pool-window taps of the im2col patches (K x tp)
    # w_ref:       (Cout, K)     bf16
    # scale/shift: (Cout, 1)     f32   -- folded BatchNorm affine (+ conv bias)
    # o_ref:       (1, Cout, tp) bf16  -- pooled activations, channel-major (NCHW order)
    cout, tp = o_ref.shape[1], o_ref.shape[2]
    w = w_ref[...]
    # Hoist the (Cout,1)->(Cout,tp) broadcasts out of the unrolled tap loop (no CSE in JAX).
    scale_b = jnp.broadcast_to(scale_ref[...], (cout, tp))
    shift_b = jnp.broadcast_to(shift_ref[...], (cout, tp))

    def tap(p):
        a = at_ref[0, p]                                        # (K, tp) contiguous segment
        y = jnp.dot(w, a, preferred_element_type=jnp.float32)   # (Cout, tp), lane-dense
        return y * scale_b + shift_b

    r = tap(0)
    for p in range(1, at_ref.shape[1]):                         # static unroll over 4 taps
        r = jnp.maximum(r, tap(p))
    # sigmoid is monotonic -> maxpool(sigmoid(x)) == sigmoid(maxpool(x)); one EUP pass.
    o_ref[0] = _sigmoid(r).astype(o_ref.dtype)


def conv_bn_sig_pool(at, w_mat, scale, shift, *, tile_p):
    B, n_par, K, P = at.shape
    Cout = w_mat.shape[0]
    assert w_mat.shape[1] == K
    assert P % tile_p == 0 and tile_p % 128 == 0
    n_p = P // tile_p
    return pl.pallas_call(
        _conv_bn_pool_sig_kernel,
        out_shape=jax.ShapeDtypeStruct((B, Cout, P), jnp.bfloat16),
        grid_spec=pltpu.PrefetchScalarGridSpec(
            num_scalar_prefetch=0,
            grid=(B, n_p),
            in_specs=[
                pl.BlockSpec((1, n_par, K, tile_p), lambda b, p: (b, 0, 0, p)),
                pl.BlockSpec((Cout, K), lambda b, p: (0, 0)),
                pl.BlockSpec((Cout, 1), lambda b, p: (0, 0)),
                pl.BlockSpec((Cout, 1), lambda b, p: (0, 0)),
            ],
            out_specs=pl.BlockSpec((1, Cout, tile_p), lambda b, p: (b, 0, p)),
        ),
        compiler_params=pltpu.CompilerParams(
            dimension_semantics=("parallel", "parallel"),
            vmem_limit_bytes=_VMEM_LIMIT,
        ),
    )(at, w_mat, scale, shift)


def _im2col_pooled(x_nchw, ksize, stride, pad, pool):
    """NCHW input -> A^T patch tensor (B, pool*pool, K_pad, P_pad) in bf16.

    K order is (kh, kw, ci).  The leading axis enumerates the pool-window parity (ph, pw),
    so the 2x2 max-pool becomes an elementwise max inside the conv kernel (no transposes).
    K is padded to a multiple of 8 (sublane) and P = Hp*Wp to a multiple of 128 (lane).
    """
    B, C, H, W = x_nchw.shape
    Ho = (H + 2 * pad - ksize) // stride + 1
    Wo = (W + 2 * pad - ksize) // stride + 1
    assert Ho % pool == 0 and Wo % pool == 0
    Hp, Wp = Ho // pool, Wo // pool
    sp = stride * pool                                  # step of a pooled pixel in padded input
    xp = jnp.pad(x_nchw.astype(jnp.bfloat16), ((0, 0), (0, 0), (pad, pad), (pad, pad)))
    parities = []
    for ph in range(pool):
        for pw in range(pool):
            taps = []
            for kh in range(ksize):
                for kw in range(ksize):
                    r0 = kh + stride * ph
                    c0 = kw + stride * pw
                    taps.append(xp[:, :, r0:r0 + sp * (Hp - 1) + 1:sp,
                                         c0:c0 + sp * (Wp - 1) + 1:sp])     # (B, C, Hp, Wp)
            parities.append(jnp.stack(taps, axis=1))    # (B, k*k, C, Hp, Wp)
    at = jnp.stack(parities, axis=1)                    # (B, pool^2, k*k, C, Hp, Wp)
    K = ksize * ksize * C
    P = Hp * Wp
    at = at.reshape(B, pool * pool, K, P)
    K_pad = _round_up(K, 8)                             # sublane alignment (75 -> 80; 400 stays)
    P_pad = _round_up(P, 128)                           # lane alignment (3136 -> 3200; 196 -> 256)
    if (K_pad, P_pad) != (K, P):
        at = jnp.pad(at, ((0, 0), (0, 0), (0, K_pad - K), (0, P_pad - P)))
    return at, Hp, Wp


# ------------------------------ fused FC stack (fc1 + fc2 + fc3) ------------------------------
def _fc_kernel(x_ref, w1_ref, b1_ref, w2_ref, b2_ref, w3_ref, b3_ref, o_ref, acc_ref):
    k = pl.program_id(0)

    @pl.when(k == 0)
    def _():
        acc_ref[...] = jnp.zeros_like(acc_ref)

    acc_ref[...] += jnp.dot(x_ref[...], w1_ref[...], preferred_element_type=jnp.float32)

    @pl.when(k == pl.num_programs(0) - 1)
    def _():
        h = _sigmoid(acc_ref[...] + b1_ref[...])
        h = _sigmoid(jnp.dot(h, w2_ref[...], preferred_element_type=jnp.float32) + b2_ref[...])
        o_ref[...] = (jnp.dot(h, w3_ref[...], preferred_element_type=jnp.float32)
                      + b3_ref[...]).astype(o_ref.dtype)


def _pick_k_tile(K, target=1024):
    best = K
    for tk in range(128, min(K, target) + 1, 128):
        if K % tk == 0:
            best = tk
    return best


def fc_stack(x, w1, b1, w2, b2, w3, b3):
    B, K = x.shape
    H1 = w1.shape[1]
    tk = _pick_k_tile(K)                    # 896 for K=6272 -> 7 pipelined reduction steps
    nk = K // tk
    return pl.pallas_call(
        _fc_kernel,
        out_shape=jax.ShapeDtypeStruct((B, w3.shape[1]), jnp.float32),
        grid_spec=pltpu.PrefetchScalarGridSpec(
            num_scalar_prefetch=0,
            grid=(nk,),
            in_specs=[
                pl.BlockSpec((B, tk), lambda k: (0, k)),
                pl.BlockSpec((tk, H1), lambda k: (k, 0)),
                pl.BlockSpec((1, H1), lambda k: (0, 0)),
                pl.BlockSpec(w2.shape, lambda k: (0, 0)),
                pl.BlockSpec((1, w2.shape[1]), lambda k: (0, 0)),
                pl.BlockSpec(w3.shape, lambda k: (0, 0)),
                pl.BlockSpec((1, w3.shape[1]), lambda k: (0, 0)),
            ],
            out_specs=pl.BlockSpec((B, w3.shape[1]), lambda k: (0, 0)),
            scratch_shapes=[pltpu.VMEM((B, H1), jnp.float32)],
        ),
        compiler_params=pltpu.CompilerParams(
            dimension_semantics=("arbitrary",),
            vmem_limit_bytes=_VMEM_LIMIT,
        ),
    )(x, w1, b1, w2, b2, w3, b3)


# ------------------------------------------ parameters ------------------------------------------
def init_params(key):
    ks = jax.random.split(key, 18)

    def uniform(kk, shape, fan_in):
        b = 1.0 / float(fan_in) ** 0.5
        return jax.random.uniform(kk, shape, jnp.float32, -b, b)

    def conv_weight(w_oihw, k_pad):
        cout, cin, kh, kw = w_oihw.shape
        w = jnp.transpose(w_oihw, (0, 2, 3, 1)).reshape(cout, kh * kw * cin)   # K = (kh, kw, ci)
        if k_pad != kh * kw * cin:
            w = jnp.pad(w, ((0, 0), (0, k_pad - kh * kw * cin)))
        return w.astype(jnp.bfloat16)

    p = {}
    # layer1: Conv2d(3, 16, 5, 2, 2) + BatchNorm2d(16)
    w1 = uniform(ks[0], (16, 3, 5, 5), 3 * 25)
    p["w1_mat"] = conv_weight(w1, _round_up(75, 8))
    b1 = uniform(ks[1], (16,), 3 * 25)
    g1 = 1.0 + 0.1 * jax.random.normal(ks[2], (16,), jnp.float32)
    be1 = 0.1 * jax.random.normal(ks[3], (16,), jnp.float32)
    m1 = 0.1 * jax.random.normal(ks[4], (16,), jnp.float32)
    v1 = 1.0 + 0.1 * jax.random.uniform(ks[5], (16,), jnp.float32)
    s1 = g1 / jnp.sqrt(v1 + 1e-5)
    p["scale1"] = s1.reshape(16, 1)
    p["shift1"] = ((b1 - m1) * s1 + be1).reshape(16, 1)

    # layer2: Conv2d(16, 32, 5, 2, 2) + BatchNorm2d(32)
    w2 = uniform(ks[6], (32, 16, 5, 5), 16 * 25)
    p["w2_mat"] = conv_weight(w2, _round_up(400, 8))
    b2 = uniform(ks[7], (32,), 16 * 25)
    g2 = 1.0 + 0.1 * jax.random.normal(ks[8], (32,), jnp.float32)
    be2 = 0.1 * jax.random.normal(ks[9], (32,), jnp.float32)
    m2 = 0.1 * jax.random.normal(ks[10], (32,), jnp.float32)
    v2 = 1.0 + 0.1 * jax.random.uniform(ks[11], (32,), jnp.float32)
    s2 = g2 / jnp.sqrt(v2 + 1e-5)
    p["scale2"] = s2.reshape(32, 1)
    p["shift2"] = ((b2 - m2) * s2 + be2).reshape(32, 1)

    # fc1: Linear(32*14*14, 120);  fc2: Linear(120, 84), Linear(84, 5)
    p["fc1_w"] = uniform(ks[12], (6272, 120), 6272).astype(jnp.bfloat16)   # halves largest weight DMA
    p["fc1_b"] = uniform(ks[13], (1, 120), 6272)
    p["fc2_w"] = uniform(ks[14], (120, 84), 120)
    p["fc2_b"] = uniform(ks[15], (1, 84), 120)
    p["fc3_w"] = uniform(ks[16], (84, 5), 84)
    p["fc3_b"] = uniform(ks[17], (1, 5), 84)
    return p


# -------------------------------------------- forward --------------------------------------------
@jax.jit
def cnn_forward(x_nchw, params):
    x = x_nchw.astype(jnp.float32)
    B = x.shape[0]
    # layer1: conv(3->16, k5, s2, p2) + BN + sigmoid + maxpool2  -> (B, 16, 56, 56)
    at1, hp1, wp1 = _im2col_pooled(x, ksize=5, stride=2, pad=2, pool=2)        # (B, 4, 80, 3200)
    y = conv_bn_sig_pool(at1, params["w1_mat"], params["scale1"], params["shift1"], tile_p=640)
    y = y[:, :, :hp1 * wp1].reshape(B, params["w1_mat"].shape[0], hp1, wp1)    # bf16 NCHW
    # layer2: conv(16->32, k5, s2, p2) + BN + sigmoid + maxpool2 -> (B, 32, 14, 14)
    at2, hp2, wp2 = _im2col_pooled(y, ksize=5, stride=2, pad=2, pool=2)        # (B, 4, 400, 256)
    y = conv_bn_sig_pool(at2, params["w2_mat"], params["scale2"], params["shift2"], tile_p=128)
    # channel-major output == torch's x.view(B, -1) order -> free reshape, no transpose
    feat = y[:, :, :hp2 * wp2].reshape(B, -1)                                  # (B, 6272) bf16
    return fc_stack(feat, params["fc1_w"], params["fc1_b"],
                    params["fc2_w"], params["fc2_b"],
                    params["fc3_w"], params["fc3_b"])                          # (B, 5)


if __name__ == "__main__":
    key = jax.random.PRNGKey(0)
    k_in, k_param = jax.random.split(key)
    # Spatial size 224 is forced by the hard-coded 32*14*14 flatten in fc1.
    x = jax.random.normal(k_in, (2, 3, 224, 224), jnp.float32)
    params = init_params(k_param)
    out = cnn_forward(x, params)
    out = jax.block_until_ready(out)
    assert out.shape == (2, 5)
    assert bool(jnp.all(jnp.isfinite(out)))
    print("KERNEL_OK")
</pallas_src>

<mosaic_0001>
module attributes {stable_mosaic.version = 11 : i64} {
  func.func @_conv_bn_pool_sig_kernel(%arg0: i32, %arg1: i32, %arg2: memref<1x4x80x640xbf16, #tpu.memory_space<vmem>>, %arg3: memref<16x80xbf16, #tpu.memory_space<vmem>>, %arg4: memref<16x1xf32, #tpu.memory_space<vmem>>, %arg5: memref<16x1xf32, #tpu.memory_space<vmem>>, %arg6: memref<1x16x640xbf16, #tpu.memory_space<vmem>>) attributes {dimension_semantics = [#tpu.dimension_semantics<parallel>, #tpu.dimension_semantics<parallel>], iteration_bounds = array<i64: 2, 5>, scalar_prefetch = 0 : i64, scratch_operands = 0 : i64, tpu.core_type = #tpu.core_type<tc>, window_params = [{transform_indices = @transform_0, window_bounds = array<i64: 1, 4, 80, 640>}, {pipeline_mode = #tpu.pipeline_mode<synchronous>, transform_indices = @transform_1, window_bounds = array<i64: 16, 80>}, {pipeline_mode = #tpu.pipeline_mode<synchronous>, transform_indices = @transform_2, window_bounds = array<i64: 16, 1>}, {pipeline_mode = #tpu.pipeline_mode<synchronous>, transform_indices = @transform_3, window_bounds = array<i64: 16, 1>}, {transform_indices = @transform_4, window_bounds = array<i64: 1, 16, 640>}]} {
    %c0 = arith.constant 0 : index
    %c0_0 = arith.constant 0 : index
    %0 = vector.load %arg3[%c0, %c0_0] : memref<16x80xbf16, #tpu.memory_space<vmem>>, vector<16x80xbf16>
    %c0_1 = arith.constant 0 : index
    %c0_2 = arith.constant 0 : index
    %1 = vector.load %arg4[%c0_1, %c0_2] : memref<16x1xf32, #tpu.memory_space<vmem>>, vector<16x1xf32>
    %2 = vector.shape_cast %1 : vector<16x1xf32> to vector<16x1xf32>
    %3 = vector.broadcast %2 : vector<16x1xf32> to vector<16x640xf32>
    %c0_3 = arith.constant 0 : index
    %c0_4 = arith.constant 0 : index
    %4 = vector.load %arg5[%c0_3, %c0_4] : memref<16x1xf32, #tpu.memory_space<vmem>>, vector<16x1xf32>
    %5 = vector.shape_cast %4 : vector<16x1xf32> to vector<16x1xf32>
    %6 = vector.broadcast %5 : vector<16x1xf32> to vector<16x640xf32>
    %c0_5 = arith.constant 0 : index
    %c0_6 = arith.constant 0 : index
    %c0_7 = arith.constant 0 : index
    %c0_8 = arith.constant 0 : index
    %7 = vector.load %arg2[%c0_5, %c0_6, %c0_7, %c0_8] : memref<1x4x80x640xbf16, #tpu.memory_space<vmem>>, vector<1x1x80x640xbf16>
    %8 = vector.shape_cast %7 : vector<1x1x80x640xbf16> to vector<80x640xbf16>
    %cst = arith.constant dense<0.000000e+00> : vector<16x640xf32>
    %9 = tpu.matmul %0, %8, %cst {dimension_numbers = #tpu.dot_dimension_numbers<[1], [0], [0], [1], [0, 0, 1, 1], [], []>} : vector<16x80xbf16>, vector<80x640xbf16>, vector<16x640xf32> -> vector<16x640xf32>
    %10 = arith.mulf %9, %3 : vector<16x640xf32>
    %11 = arith.addf %10, %6 : vector<16x640xf32>
    %c0_9 = arith.constant 0 : index
    %c1 = arith.constant 1 : index
    %c0_10 = arith.constant 0 : index
    %c0_11 = arith.constant 0 : index
    %12 = vector.load %arg2[%c0_9, %c1, %c0_10, %c0_11] : memref<1x4x80x640xbf16, #tpu.memory_space<vmem>>, vector<1x1x80x640xbf16>
    %13 = vector.shape_cast %12 : vector<1x1x80x640xbf16> to vector<80x640xbf16>
    %cst_12 = arith.constant dense<0.000000e+00> : vector<16x640xf32>
    %14 = tpu.matmul %0, %13, %cst_12 {dimension_numbers = #tpu.dot_dimension_numbers<[1], [0], [0], [1], [0, 0, 1, 1], [], []>} : vector<16x80xbf16>, vector<80x640xbf16>, vector<16x640xf32> -> vector<16x640xf32>
    %15 = arith.mulf %14, %3 : vector<16x640xf32>
    %16 = arith.addf %15, %6 : vector<16x640xf32>
    %17 = arith.maximumf %11, %16 : vector<16x640xf32>
    %c0_13 = arith.constant 0 : index
    %c2 = arith.constant 2 : index
    %c0_14 = arith.constant 0 : index
    %c0_15 = arith.constant 0 : index
    %18 = vector.load %arg2[%c0_13, %c2, %c0_14, %c0_15] : memref<1x4x80x640xbf16, #tpu.memory_space<vmem>>, vector<1x1x80x640xbf16>
    %19 = vector.shape_cast %18 : vector<1x1x80x640xbf16> to vector<80x640xbf16>
    %cst_16 = arith.constant dense<0.000000e+00> : vector<16x640xf32>
    %20 = tpu.matmul %0, %19, %cst_16 {dimension_numbers = #tpu.dot_dimension_numbers<[1], [0], [0], [1], [0, 0, 1, 1], [], []>} : vector<16x80xbf16>, vector<80x640xbf16>, vector<16x640xf32> -> vector<16x640xf32>
    %21 = arith.mulf %20, %3 : vector<16x640xf32>
    %22 = arith.addf %21, %6 : vector<16x640xf32>
    %23 = arith.maximumf %17, %22 : vector<16x640xf32>
    %c0_17 = arith.constant 0 : index
    %c3 = arith.constant 3 : index
    %c0_18 = arith.constant 0 : index
    %c0_19 = arith.constant 0 : index
    %24 = vector.load %arg2[%c0_17, %c3, %c0_18, %c0_19] : memref<1x4x80x640xbf16, #tpu.memory_space<vmem>>, vector<1x1x80x640xbf16>
    %25 = vector.shape_cast %24 : vector<1x1x80x640xbf16> to vector<80x640xbf16>
    %cst_20 = arith.constant dense<0.000000e+00> : vector<16x640xf32>
    %26 = tpu.matmul %0, %25, %cst_20 {dimension_numbers = #tpu.dot_dimension_numbers<[1], [0], [0], [1], [0, 0, 1, 1], [], []>} : vector<16x80xbf16>, vector<80x640xbf16>, vector<16x640xf32> -> vector<16x640xf32>
    %27 = arith.mulf %26, %3 : vector<16x640xf32>
    %28 = arith.addf %27, %6 : vector<16x640xf32>
    %29 = arith.maximumf %23, %28 : vector<16x640xf32>
    %cst_21 = arith.constant -6.000000e+01 : f32
    %30 = vector.broadcast %cst_21 : f32 to vector<16x640xf32>
    %31 = arith.maximumf %29, %30 : vector<16x640xf32>
    %cst_22 = arith.constant 0.000000e+00 : f32
    %32 = vector.broadcast %cst_22 : f32 to vector<16x640xf32>
    %33 = arith.subf %32, %31 : vector<16x640xf32>
    %34 = math.exp %33 : vector<16x640xf32>
    %cst_23 = arith.constant 1.000000e+00 : f32
    %35 = vector.broadcast %cst_23 : f32 to vector<16x640xf32>
    %36 = arith.addf %35, %34 : vector<16x640xf32>
    %37 = tpu.reciprocal %36 {approx = true} : vector<16x640xf32> -> vector<16x640xf32>
    %38 = arith.truncf %37 : vector<16x640xf32> to vector<16x640xbf16>
    %c0_24 = arith.constant 0 : index
    %c0_25 = arith.constant 0 : index
    %c0_26 = arith.constant 0 : index
    %39 = vector.load %arg6[%c0_24, %c0_25, %c0_26] : memref<1x16x640xbf16, #tpu.memory_space<vmem>>, vector<1x16x640xbf16>
    %40 = vector.shape_cast %39 : vector<1x16x640xbf16> to vector<16x640xbf16>
    %41 = vector.shape_cast %38 : vector<16x640xbf16> to vector<1x16x640xbf16>
    tpu.vector_store %arg6[%c0_24, %c0_25, %c0_26], %41 {strides = array<i32>} : memref<1x16x640xbf16, #tpu.memory_space<vmem>>, vector<1x16x640xbf16>,
    return
  }
  func.func @transform_0(%arg0: i32, %arg1: i32) -> (i32, i32, i32, i32) {
    %c0_i32 = arith.constant 0 : i32
    %c0_i32_0 = arith.constant 0 : i32
    %c0_i32_1 = arith.constant 0 : i32
    return %arg0, %c0_i32, %c0_i32_0, %arg1 : i32, i32, i32, i32
  }
  func.func @transform_1(%arg0: i32, %arg1: i32) -> (i32, i32) {
    %c0_i32 = arith.constant 0 : i32
    %c0_i32_0 = arith.constant 0 : i32
    %c0_i32_1 = arith.constant 0 : i32
    return %c0_i32, %c0_i32_0 : i32, i32
  }
  func.func @transform_2(%arg0: i32, %arg1: i32) -> (i32, i32) {
    %c0_i32 = arith.constant 0 : i32
    %c0_i32_0 = arith.constant 0 : i32
    %c0_i32_1 = arith.constant 0 : i32
    return %c0_i32, %c0_i32_0 : i32, i32
  }
  func.func @transform_3(%arg0: i32, %arg1: i32) -> (i32, i32) {
    %c0_i32 = arith.constant 0 : i32
    %c0_i32_0 = arith.constant 0 : i32
    %c0_i32_1 = arith.constant 0 : i32
    return %c0_i32, %c0_i32_0 : i32, i32
  }
  func.func @transform_4(%arg0: i32, %arg1: i32) -> (i32, i32, i32) {
    %c0_i32 = arith.constant 0 : i32
    %c0_i32_0 = arith.constant 0 : i32
    return %arg0, %c0_i32, %arg1 : i32, i32, i32
  }
}

module attributes {stable_mosaic.version = 11 : i64} {
  func.func @_conv_bn_pool_sig_kernel(%arg0: i32, %arg1: i32, %arg2: memref<1x4x400x128xbf16, #tpu.memory_space<vmem>>, %arg3: memref<32x400xbf16, #tpu.memory_space<vmem>>, %arg4: memref<32x1xf32, #tpu.memory_space<vmem>>, %arg5: memref<32x1xf32, #tpu.memory_space<vmem>>, %arg6: memref<1x32x128xbf16, #tpu.memory_space<vmem>>) attributes {dimension_semantics = [#tpu.dimension_semantics<parallel>, #tpu.dimension_semantics<parallel>], iteration_bounds = array<i64: 2, 2>, scalar_prefetch = 0 : i64, scratch_operands = 0 : i64, tpu.core_type = #tpu.core_type<tc>, window_params = [{transform_indices = @transform_0, window_bounds = array<i64: 1, 4, 400, 128>}, {pipeline_mode = #tpu.pipeline_mode<synchronous>, transform_indices = @transform_1, window_bounds = array<i64: 32, 400>}, {pipeline_mode = #tpu.pipeline_mode<synchronous>, transform_indices = @transform_2, window_bounds = array<i64: 32, 1>}, {pipeline_mode = #tpu.pipeline_mode<synchronous>, transform_indices = @transform_3, window_bounds = array<i64: 32, 1>}, {transform_indices = @transform_4, window_bounds = array<i64: 1, 32, 128>}]} {
    %c0 = arith.constant 0 : index
    %c0_0 = arith.constant 0 : index
    %0 = vector.load %arg3[%c0, %c0_0] : memref<32x400xbf16, #tpu.memory_space<vmem>>, vector<32x400xbf16>
    %c0_1 = arith.constant 0 : index
    %c0_2 = arith.constant 0 : index
    %1 = vector.load %arg4[%c0_1, %c0_2] : memref<32x1xf32, #tpu.memory_space<vmem>>, vector<32x1xf32>
    %2 = vector.shape_cast %1 : vector<32x1xf32> to vector<32x1xf32>
    %3 = vector.broadcast %2 : vector<32x1xf32> to vector<32x128xf32>
    %c0_3 = arith.constant 0 : index
    %c0_4 = arith.constant 0 : index
    %4 = vector.load %arg5[%c0_3, %c0_4] : memref<32x1xf32, #tpu.memory_space<vmem>>, vector<32x1xf32>
    %5 = vector.shape_cast %4 : vector<32x1xf32> to vector<32x1xf32>
    %6 = vector.broadcast %5 : vector<32x1xf32> to vector<32x128xf32>
    %c0_5 = arith.constant 0 : index
    %c0_6 = arith.constant 0 : index
    %c0_7 = arith.constant 0 : index
    %c0_8 = arith.constant 0 : index
    %7 = vector.load %arg2[%c0_5, %c0_6, %c0_7, %c0_8] : memref<1x4x400x128xbf16, #tpu.memory_space<vmem>>, vector<1x1x400x128xbf16>
    %8 = vector.shape_cast %7 : vector<1x1x400x128xbf16> to vector<400x128xbf16>
    %cst = arith.constant dense<0.000000e+00> : vector<32x128xf32>
    %9 = tpu.matmul %0, %8, %cst {dimension_numbers = #tpu.dot_dimension_numbers<[1], [0], [0], [1], [0, 0, 1, 1], [], []>} : vector<32x400xbf16>, vector<400x128xbf16>, vector<32x128xf32> -> vector<32x128xf32>
    %10 = arith.mulf %9, %3 : vector<32x128xf32>
    %11 = arith.addf %10, %6 : vector<32x128xf32>
    %c0_9 = arith.constant 0 : index
    %c1 = arith.constant 1 : index
    %c0_10 = arith.constant 0 : index
    %c0_11 = arith.constant 0 : index
    %12 = vector.load %arg2[%c0_9, %c1, %c0_10, %c0_11] : memref<1x4x400x128xbf16, #tpu.memory_space<vmem>>, vector<1x1x400x128xbf16>
    %13 = vector.shape_cast %12 : vector<1x1x400x128xbf16> to vector<400x128xbf16>
    %cst_12 = arith.constant dense<0.000000e+00> : vector<32x128xf32>
    %14 = tpu.matmul %0, %13, %cst_12 {dimension_numbers = #tpu.dot_dimension_numbers<[1], [0], [0], [1], [0, 0, 1, 1], [], []>} : vector<32x400xbf16>, vector<400x128xbf16>, vector<32x128xf32> -> vector<32x128xf32>
    %15 = arith.mulf %14, %3 : vector<32x128xf32>
    %16 = arith.addf %15, %6 : vector<32x128xf32>
    %17 = arith.maximumf %11, %16 : vector<32x128xf32>
    %c0_13 = arith.constant 0 : index
    %c2 = arith.constant 2 : index
    %c0_14 = arith.constant 0 : index
    %c0_15 = arith.constant 0 : index
    %18 = vector.load %arg2[%c0_13, %c2, %c0_14, %c0_15] : memref<1x4x400x128xbf16, #tpu.memory_space<vmem>>, vector<1x1x400x128xbf16>
    %19 = vector.shape_cast %18 : vector<1x1x400x128xbf16> to vector<400x128xbf16>
    %cst_16 = arith.constant dense<0.000000e+00> : vector<32x128xf32>
    %20 = tpu.matmul %0, %19, %cst_16 {dimension_numbers = #tpu.dot_dimension_numbers<[1], [0], [0], [1], [0, 0, 1, 1], [], []>} : vector<32x400xbf16>, vector<400x128xbf16>, vector<32x128xf32> -> vector<32x128xf32>
    %21 = arith.mulf %20, %3 : vector<32x128xf32>
    %22 = arith.addf %21, %6 : vector<32x128xf32>
    %23 = arith.maximumf %17, %22 : vector<32x128xf32>
    %c0_17 = arith.constant 0 : index
    %c3 = arith.constant 3 : index
    %c0_18 = arith.constant 0 : index
    %c0_19 = arith.constant 0 : index
    %24 = vector.load %arg2[%c0_17, %c3, %c0_18, %c0_19] : memref<1x4x400x128xbf16, #tpu.memory_space<vmem>>, vector<1x1x400x128xbf16>
    %25 = vector.shape_cast %24 : vector<1x1x400x128xbf16> to vector<400x128xbf16>
    %cst_20 = arith.constant dense<0.000000e+00> : vector<32x128xf32>
    %26 = tpu.matmul %0, %25, %cst_20 {dimension_numbers = #tpu.dot_dimension_numbers<[1], [0], [0], [1], [0, 0, 1, 1], [], []>} : vector<32x400xbf16>, vector<400x128xbf16>, vector<32x128xf32> -> vector<32x128xf32>
    %27 = arith.mulf %26, %3 : vector<32x128xf32>
    %28 = arith.addf %27, %6 : vector<32x128xf32>
    %29 = arith.maximumf %23, %28 : vector<32x128xf32>
    %cst_21 = arith.constant -6.000000e+01 : f32
    %30 = vector.broadcast %cst_21 : f32 to vector<32x128xf32>
    %31 = arith.maximumf %29, %30 : vector<32x128xf32>
    %cst_22 = arith.constant 0.000000e+00 : f32
    %32 = vector.broadcast %cst_22 : f32 to vector<32x128xf32>
    %33 = arith.subf %32, %31 : vector<32x128xf32>
    %34 = math.exp %33 : vector<32x128xf32>
    %cst_23 = arith.constant 1.000000e+00 : f32
    %35 = vector.broadcast %cst_23 : f32 to vector<32x128xf32>
    %36 = arith.addf %35, %34 : vector<32x128xf32>
    %37 = tpu.reciprocal %36 {approx = true} : vector<32x128xf32> -> vector<32x128xf32>
    %38 = arith.truncf %37 : vector<32x128xf32> to vector<32x128xbf16>
    %c0_24 = arith.constant 0 : index
    %c0_25 = arith.constant 0 : index
    %c0_26 = arith.constant 0 : index
    %39 = vector.load %arg6[%c0_24, %c0_25, %c0_26] : memref<1x32x128xbf16, #tpu.memory_space<vmem>>, vector<1x32x128xbf16>
    %40 = vector.shape_cast %39 : vector<1x32x128xbf16> to vector<32x128xbf16>
    %41 = vector.shape_cast %38 : vector<32x128xbf16> to vector<1x32x128xbf16>
    tpu.vector_store %arg6[%c0_24, %c0_25, %c0_26], %41 {strides = array<i32>} : memref<1x32x128xbf16, #tpu.memory_space<vmem>>, vector<1x32x128xbf16>,
    return
  }
  func.func @transform_0(%arg0: i32, %arg1: i32) -> (i32, i32, i32, i32) {
    %c0_i32 = arith.constant 0 : i32
    %c0_i32_0 = arith.constant 0 : i32
    %c0_i32_1 = arith.constant 0 : i32
    return %arg0, %c0_i32, %c0_i32_0, %arg1 : i32, i32, i32, i32
  }
  func.func @transform_1(%arg0: i32, %arg1: i32) -> (i32, i32) {
    %c0_i32 = arith.constant 0 : i32
    %c0_i32_0 = arith.constant 0 : i32
    %c0_i32_1 = arith.constant 0 : i32
    return %c0_i32, %c0_i32_0 : i32, i32
  }
  func.func @transform_2(%arg0: i32, %arg1: i32) -> (i32, i32) {
    %c0_i32 = arith.constant 0 : i32
    %c0_i32_0 = arith.constant 0 : i32
    %c0_i32_1 = arith.constant 0 : i32
    return %c0_i32, %c0_i32_0 : i32, i32
  }
  func.func @transform_3(%arg0: i32, %arg1: i32) -> (i32, i32) {
    %c0_i32 = arith.constant 0 : i32
    %c0_i32_0 = arith.constant 0 : i32
    %c0_i32_1 = arith.constant 0 : i32
    return %c0_i32, %c0_i32_0 : i32, i32
  }
  func.func @transform_4(%arg0: i32, %arg1: i32) -> (i32, i32, i32) {
    %c0_i32 = arith.constant 0 : i32
    %c0_i32_0 = arith.constant 0 : i32
    return %arg0, %c0_i32, %arg1 : i32, i32, i32
  }
}

module attributes {stable_mosaic.version = 11 : i64} {
  func.func @_fc_kernel(%arg0: i32, %arg1: memref<2x896xbf16, #tpu.memory_space<vmem>>, %arg2: memref<896x120xbf16, #tpu.memory_space<vmem>>, %arg3: memref<1x120xf32, #tpu.memory_space<vmem>>, %arg4: memref<120x84xf32, #tpu.memory_space<vmem>>, %arg5: memref<1x84xf32, #tpu.memory_space<vmem>>, %arg6: memref<84x5xf32, #tpu.memory_space<vmem>>, %arg7: memref<1x5xf32, #tpu.memory_space<vmem>>, %arg8: memref<2x5xf32, #tpu.memory_space<vmem>>, %arg9: memref<2x120xf32, #tpu.memory_space<vmem>>) attributes {dimension_semantics = [#tpu.dimension_semantics<arbitrary>], iteration_bounds = array<i64: 7>, scalar_prefetch = 0 : i64, scratch_operands = 1 : i64, tpu.core_type = #tpu.core_type<tc>, window_params = [{transform_indices = @transform_0, window_bounds = array<i64: 2, 896>}, {transform_indices = @transform_1, window_bounds = array<i64: 896, 120>}, {pipeline_mode = #tpu.pipeline_mode<synchronous>, transform_indices = @transform_2, window_bounds = array<i64: 1, 120>}, {pipeline_mode = #tpu.pipeline_mode<synchronous>, transform_indices = @transform_3, window_bounds = array<i64: 120, 84>}, {pipeline_mode = #tpu.pipeline_mode<synchronous>, transform_indices = @transform_4, window_bounds = array<i64: 1, 84>}, {pipeline_mode = #tpu.pipeline_mode<synchronous>, transform_indices = @transform_5, window_bounds = array<i64: 84, 5>}, {pipeline_mode = #tpu.pipeline_mode<synchronous>, transform_indices = @transform_6, window_bounds = array<i64: 1, 5>}, {pipeline_mode = #tpu.pipeline_mode<synchronous>, transform_indices = @transform_7, window_bounds = array<i64: 2, 5>}]} {
    %c0_i32 = arith.constant 0 : i32
    %0 = arith.cmpi eq, %arg0, %c0_i32 : i32
    %1 = arith.extui %0 : i1 to i32
    %c0_i32_0 = arith.constant 0 : i32
    %2 = arith.cmpi ne, %1, %c0_i32_0 : i32
    scf.if %2 {
      %cst_9 = arith.constant 0.000000e+00 : f32
      %12 = vector.broadcast %cst_9 : f32 to vector<2x120xf32>
      %c0_10 = arith.constant 0 : index
      %c0_11 = arith.constant 0 : index
      %13 = vector.load %arg9[%c0_10, %c0_11] : memref<2x120xf32, #tpu.memory_space<vmem>>, vector<2x120xf32>
      tpu.vector_store %arg9[%c0_10, %c0_11], %12 {strides = array<i32>} : memref<2x120xf32, #tpu.memory_space<vmem>>, vector<2x120xf32>,
    } else {
    }
    %c0 = arith.constant 0 : index
    %c0_1 = arith.constant 0 : index
    %3 = vector.load %arg9[%c0, %c0_1] : memref<2x120xf32, #tpu.memory_space<vmem>>, vector<2x120xf32>
    %c0_2 = arith.constant 0 : index
    %c0_3 = arith.constant 0 : index
    %4 = vector.load %arg1[%c0_2, %c0_3] : memref<2x896xbf16, #tpu.memory_space<vmem>>, vector<2x896xbf16>
    %c0_4 = arith.constant 0 : index
    %c0_5 = arith.constant 0 : index
    %5 = vector.load %arg2[%c0_4, %c0_5] : memref<896x120xbf16, #tpu.memory_space<vmem>>, vector<896x120xbf16>
    %cst = arith.constant dense<0.000000e+00> : vector<2x120xf32>
    %6 = tpu.matmul %4, %5, %cst {dimension_numbers = #tpu.dot_dimension_numbers<[1], [0], [0], [1], [0, 0, 1, 1], [], []>} : vector<2x896xbf16>, vector<896x120xbf16>, vector<2x120xf32> -> vector<2x120xf32>
    %7 = arith.addf %3, %6 : vector<2x120xf32>
    %c0_6 = arith.constant 0 : index
    %c0_7 = arith.constant 0 : index
    %8 = vector.load %arg9[%c0_6, %c0_7] : memref<2x120xf32, #tpu.memory_space<vmem>>, vector<2x120xf32>
    tpu.vector_store %arg9[%c0_6, %c0_7], %7 {strides = array<i32>} : memref<2x120xf32, #tpu.memory_space<vmem>>, vector<2x120xf32>,
    %c6_i32 = arith.constant 6 : i32
    %9 = arith.cmpi eq, %arg0, %c6_i32 : i32
    %10 = arith.extui %9 : i1 to i32
    %c0_i32_8 = arith.constant 0 : i32
    %11 = arith.cmpi ne, %10, %c0_i32_8 : i32
    scf.if %11 {
      %c0_9 = arith.constant 0 : index
      %c0_10 = arith.constant 0 : index
      %12 = vector.load %arg9[%c0_9, %c0_10] : memref<2x120xf32, #tpu.memory_space<vmem>>, vector<2x120xf32>
      %c0_11 = arith.constant 0 : index
      %c0_12 = arith.constant 0 : index
      %13 = vector.load %arg3[%c0_11, %c0_12] : memref<1x120xf32, #tpu.memory_space<vmem>>, vector<1x120xf32>
      %14 = vector.broadcast %13 : vector<1x120xf32> to vector<2x120xf32>
      %15 = arith.addf %12, %14 : vector<2x120xf32>
      %cst_13 = arith.constant -6.000000e+01 : f32
      %16 = vector.broadcast %cst_13 : f32 to vector<2x120xf32>
      %17 = arith.maximumf %15, %16 : vector<2x120xf32>
      %cst_14 = arith.constant 0.000000e+00 : f32
      %18 = vector.broadcast %cst_14 : f32 to vector<2x120xf32>
      %19 = arith.subf %18, %17 : vector<2x120xf32>
      %20 = math.exp %19 : vector<2x120xf32>
      %cst_15 = arith.constant 1.000000e+00 : f32
      %21 = vector.broadcast %cst_15 : f32 to vector<2x120xf32>
      %22 = arith.addf %21, %20 : vector<2x120xf32>
      %23 = tpu.reciprocal %22 {approx = true} : vector<2x120xf32> -> vector<2x120xf32>
      %c0_16 = arith.constant 0 : index
      %c0_17 = arith.constant 0 : index
      %24 = vector.load %arg4[%c0_16, %c0_17] : memref<120x84xf32, #tpu.memory_space<vmem>>, vector<120x84xf32>
      %cst_18 = arith.constant dense<0.000000e+00> : vector<2x84xf32>
      %25 = tpu.matmul %23, %24, %cst_18 {dimension_numbers = #tpu.dot_dimension_numbers<[1], [0], [0], [1], [0, 0, 1, 1], [], []>} : vector<2x120xf32>, vector<120x84xf32>, vector<2x84xf32> -> vector<2x84xf32>
      %c0_19 = arith.constant 0 : index
      %c0_20 = arith.constant 0 : index
      %26 = vector.load %arg5[%c0_19, %c0_20] : memref<1x84xf32, #tpu.memory_space<vmem>>, vector<1x84xf32>
      %27 = vector.broadcast %26 : vector<1x84xf32> to vector<2x84xf32>
      %28 = arith.addf %25, %27 : vector<2x84xf32>
      %cst_21 = arith.constant -6.000000e+01 : f32
      %29 = vector.broadcast %cst_21 : f32 to vector<2x84xf32>
      %30 = arith.maximumf %28, %29 : vector<2x84xf32>
      %cst_22 = arith.constant 0.000000e+00 : f32
      %31 = vector.broadcast %cst_22 : f32 to vector<2x84xf32>
      %32 = arith.subf %31, %30 : vector<2x84xf32>
      %33 = math.exp %32 : vector<2x84xf32>
      %cst_23 = arith.constant 1.000000e+00 : f32
      %34 = vector.broadcast %cst_23 : f32 to vector<2x84xf32>
      %35 = arith.addf %34, %33 : vector<2x84xf32>
      %36 = tpu.reciprocal %35 {approx = true} : vector<2x84xf32> -> vector<2x84xf32>
      %c0_24 = arith.constant 0 : index
      %c0_25 = arith.constant 0 : index
      %37 = vector.load %arg6[%c0_24, %c0_25] : memref<84x5xf32, #tpu.memory_space<vmem>>, vector<84x5xf32>
      %cst_26 = arith.constant dense<0.000000e+00> : vector<2x5xf32>
      %38 = tpu.matmul %36, %37, %cst_26 {dimension_numbers = #tpu.dot_dimension_numbers<[1], [0], [0], [1], [0, 0, 1, 1], [], []>} : vector<2x84xf32>, vector<84x5xf32>, vector<2x5xf32> -> vector<2x5xf32>
      %c0_27 = arith.constant 0 : index
      %c0_28 = arith.constant 0 : index
      %39 = vector.load %arg7[%c0_27, %c0_28] : memref<1x5xf32, #tpu.memory_space<vmem>>, vector<1x5xf32>
      %40 = vector.broadcast %39 : vector<1x5xf32> to vector<2x5xf32>
      %41 = arith.addf %38, %40 : vector<2x5xf32>
      %c0_29 = arith.constant 0 : index
      %c0_30 = arith.constant 0 : index
      %42 = vector.load %arg8[%c0_29, %c0_30] : memref<2x5xf32, #tpu.memory_space<vmem>>, vector<2x5xf32>
      tpu.vector_store %arg8[%c0_29, %c0_30], %41 {strides = array<i32>} : memref<2x5xf32, #tpu.memory_space<vmem>>, vector<2x5xf32>,
    } else {
    }
    return
  }
  func.func @transform_0(%arg0: i32) -> (i32, i32) {
    %c0_i32 = arith.constant 0 : i32
    %c0_i32_0 = arith.constant 0 : i32
    return %c0_i32, %arg0 : i32, i32
  }
  func.func @transform_1(%arg0: i32) -> (i32, i32) {
    %c0_i32 = arith.constant 0 : i32
    %c0_i32_0 = arith.constant 0 : i32
    return %arg0, %c0_i32 : i32, i32
  }
  func.func @transform_2(%arg0: i32) -> (i32, i32) {
    %c0_i32 = arith.constant 0 : i32
    %c0_i32_0 = arith.constant 0 : i32
    %c0_i32_1 = arith.constant 0 : i32
    return %c0_i32, %c0_i32_0 : i32, i32
  }
  func.func @transform_3(%arg0: i32) -> (i32, i32) {
    %c0_i32 = arith.constant 0 : i32
    %c0_i32_0 = arith.constant 0 : i32
    %c0_i32_1 = arith.constant 0 : i32
    return %c0_i32, %c0_i32_0 : i32, i32
  }
  func.func @transform_4(%arg0: i32) -> (i32, i32) {
    %c0_i32 = arith.constant 0 : i32
    %c0_i32_0 = arith.constant 0 : i32
    %c0_i32_1 = arith.constant 0 : i32
    return %c0_i32, %c0_i32_0 : i32, i32
  }
  func.func @transform_5(%arg0: i32) -> (i32, i32) {
    %c0_i32 = arith.constant 0 : i32
    %c0_i32_0 = arith.constant 0 : i32
    %c0_i32_1 = arith.constant 0 : i32
    return %c0_i32, %c0_i32_0 : i32, i32
  }
  func.func @transform_6(%arg0: i32) -> (i32, i32) {
    %c0_i32 = arith.constant 0 : i32
    %c0_i32_0 = arith.constant 0 : i32
    %c0_i32_1 = arith.constant 0 : i32
    return %c0_i32, %c0_i32_0 : i32, i32
  }
  func.func @transform_7(%arg0: i32) -> (i32, i32) {
    %c0_i32 = arith.constant 0 : i32
    %c0_i32_0 = arith.constant 0 : i32
    %c0_i32_1 = arith.constant 0 : i32
    return %c0_i32, %c0_i32_0 : i32, i32
  }
}

</mosaic_0001>

<llo_original>
// kernel: cnn_forward.3
$region0: #{cnn_forward.3}
  #allocation0 [shape = 'u32[]', space=smem, size = 0x4, offset = 0x4, fixed_abs, tag = 'smem constant byte address 0x4 - core index']
  #allocation1 [shape = 'u32[144,128]{1,0:T(1,128)}', space=vmem, size = 0x12000, scoped, tag = 'internal scratch']
  %s0 = inlined_call_operand.vmem [shape: bf16[2,4,80,3200], index: 0, kind: input, shape index: {}]
  %s1 = inlined_call_operand.vmem [shape: bf16[16,80], index: 1, kind: input, shape index: {}]
  %s2 = inlined_call_operand.vmem [shape: f32[16,1], index: 2, kind: input, shape index: {}]
  %s3 = inlined_call_operand.vmem [shape: f32[16,1], index: 3, kind: input, shape index: {}]
  %s4 = inlined_call_operand.vmem [shape: bf16[2,16,3200], index: 4, kind: output, shape index: {}]
  %s5 = sld [smem:[#allocation0]]
  $region97: #{cnn_forward.3} parent=0
    _
  %s7 = ssub.s32 1, %s5
  %s8 = scalar_select 0, %s7, %s5
  $region1: #{cnn_forward.3} parent=0
    #allocation2 [shape = 'u8[819200]{0}', space=vmem, size = 0xc8000, scoped, tag = 'input window, operand 0']
    #allocation3 [shape = 'u8[40960]{0}', space=vmem, size = 0xa000, scoped, tag = 'output window, operand 0']
    loop: start=0, step=1, limit=12
    $region2: #{cnn_forward.3} parent=1 // loop_pre_header
      _
    $region3: #{cnn_forward.3} parent=1 // loop_header
      %s10 = sphi 0, %s14
      %p11 = scmp.ge.s32.totalorder %s10, 12
      %s17 = sphi 0, %s29
      %s18 = sphi 0, %s25
      %s19 = sphi 0, %s17
      %s20 = sphi 0, %s18
      %s21 = sphi 0, %s19
      %s22 = sphi 0, %s20
      %s34 = sphi 0, %s36
      %s37 = sphi 0, %s34
      %s38 = sphi 0, %s37
      %s54 = sphi 0, %s38
      %s58 = sphi 0, %s58
      %s60 = sphi 0, %s58
      %s61 = sphi 0, %s60
      %s75 = sphi 0, %s61
      %s79 = sphi 0, %s79
      %s81 = sphi 0, %s79
      %s82 = sphi 0, %s81
      %s96 = sphi 0, %s82
      %s100 = sphi 0, %s100
      %s102 = sphi 0, %s100
      %s103 = sphi 0, %s102
      %s117 = sphi 0, %s103
      %s125 = sphi 0, %s127
      %s128 = sphi 0, %s125
      %s129 = sphi 0, %s128
      %s145 = sphi 0, %s129
    $region4: #{cnn_forward.3} parent=1 // loop_header_branch
      %13 = sbr.rel (%p11) target = $region8
    $region5: #{cnn_forward.3} parent=1 // loop_body
      %s15 = ssub.s32 %s10, 1
      %s16 = ssub.s32 %s10, 2
      %s23 = sadd.s32 1, %s18
      %p24 = scmp.ge.s32.totalorder %s23, 5
      %s25 = scalar_select %p24, 0, %s23
      %s26 = sadd.s32 1, %s17
      %s27 = scalar_select %p24, %s26, %s17
      %p28 = scmp.ge.s32.totalorder %s27, 2
      %s29 = scalar_select %p28, 0, %s27
      %s30 = ssub.s32 %s17, %s29
      %s31 = ssub.s32 %s18, %s25
      %s32 = sor.u32 %s30, %s31
      %p33 = scmp.eq.s32.totalorder %s32, 0
      %s35 = sadd.s32 %s34, 1
      %s36 = scalar_select %p33, %s34, %s35
      %p39 = pneg %p33
      %p40 = scmp.eq.s32.totalorder %s10, 9
      %p41 = por %p39, %p40
      %p42 = scmp.ne.s32.totalorder %s34, %s37
      %p43 = scmp.eq.s32.totalorder %s10, 0
      %p44 = por %p42, %p43
      %p45 = scmp.ne.s32.totalorder %s34, %s37
      %p46 = scmp.eq.s32.totalorder %s15, 9
      %p47 = por %p45, %p46
      %p48 = scmp.ne.s32.totalorder %s37, %s38
      %p49 = scmp.eq.s32.totalorder %s15, 0
      %p50 = por %p48, %p49
      %p51 = scmp.ne.s32.totalorder %s37, %s38
      %p52 = scmp.eq.s32.totalorder %s16, 9
      %p53 = por %p51, %p52
      %p55 = scmp.ne.s32.totalorder %s38, %s54
      %p56 = scmp.eq.s32.totalorder %s16, 0
      %p57 = por %p55, %p56
      %s59 = sadd.s32 %s58, 1
      %p62 = scmp.eq.s32.totalorder %s10, 9
      %p63 = scmp.ne.s32.totalorder %s58, %s60
      %p64 = scmp.eq.s32.totalorder %s10, 0
      %p65 = por %p63, %p64
      %p66 = scmp.ne.s32.totalorder %s58, %s60
      %p67 = scmp.eq.s32.totalorder %s15, 9
      %p68 = por %p66, %p67
      %p69 = scmp.ne.s32.totalorder %s60, %s61
      %p70 = scmp.eq.s32.totalorder %s15, 0
      %p71 = por %p69, %p70
      %p72 = scmp.ne.s32.totalorder %s60, %s61
      %p73 = scmp.eq.s32.totalorder %s16, 9
      %p74 = por %p72, %p73
      %p76 = scmp.ne.s32.totalorder %s61, %s75
      %p77 = scmp.eq.s32.totalorder %s16, 0
      %p78 = por %p76, %p77
      %s80 = sadd.s32 %s79, 1
      %p83 = scmp.eq.s32.totalorder %s10, 9
      %p84 = scmp.ne.s32.totalorder %s79, %s81
      %p85 = scmp.eq.s32.totalorder %s10, 0
      %p86 = por %p84, %p85
      %p87 = scmp.ne.s32.totalorder %s79, %s81
      %p88 = scmp.eq.s32.totalorder %s15, 9
      %p89 = por %p87, %p88
      %p90 = scmp.ne.s32.totalorder %s81, %s82
      %p91 = scmp.eq.s32.totalorder %s15, 0
      %p92 = por %p90, %p91
      %p93 = scmp.ne.s32.totalorder %s81, %s82
      %p94 = scmp.eq.s32.totalorder %s16, 9
      %p95 = por %p93, %p94
      %p97 = scmp.ne.s32.totalorder %s82, %s96
      %p98 = scmp.eq.s32.totalorder %s16, 0
      %p99 = por %p97, %p98
      %s101 = sadd.s32 %s100, 1
      %p104 = scmp.eq.s32.totalorder %s10, 9
      %p105 = scmp.ne.s32.totalorder %s100, %s102
      %p106 = scmp.eq.s32.totalorder %s10, 0
      %p107 = por %p105, %p106
      %p108 = scmp.ne.s32.totalorder %s100, %s102
      %p109 = scmp.eq.s32.totalorder %s15, 9
      %p110 = por %p108, %p109
      %p111 = scmp.ne.s32.totalorder %s102, %s103
      %p112 = scmp.eq.s32.totalorder %s15, 0
      %p113 = por %p111, %p112
      %p114 = scmp.ne.s32.totalorder %s102, %s103
      %p115 = scmp.eq.s32.totalorder %s16, 9
      %p116 = por %p114, %p115
      %p118 = scmp.ne.s32.totalorder %s103, %s117
      %p119 = scmp.eq.s32.totalorder %s16, 0
      %p120 = por %p118, %p119
      %s121 = ssub.s32 %s17, %s29
      %s122 = ssub.s32 %s18, %s25
      %s123 = sor.u32 %s121, %s122
      %p124 = scmp.eq.s32.totalorder %s123, 0
      %s126 = sadd.s32 %s125, 1
      %s127 = scalar_select %p124, %s125, %s126
      %p130 = pneg %p124
      %p131 = scmp.eq.s32.totalorder %s10, 9
      %p132 = por %p130, %p131
      %p133 = scmp.ne.s32.totalorder %s125, %s128
      %p134 = scmp.eq.s32.totalorder %s10, 0
      %p135 = por %p133, %p134
      %p136 = scmp.ne.s32.totalorder %s125, %s128
      %p137 = scmp.eq.s32.totalorder %s15, 9
      %p138 = por %p136, %p137
      %p139 = scmp.ne.s32.totalorder %s128, %s129
      %p140 = scmp.eq.s32.totalorder %s15, 0
      %p141 = por %p139, %p140
      %p142 = scmp.ne.s32.totalorder %s128, %s129
      %p143 = scmp.eq.s32.totalorder %s16, 9
      %p144 = por %p142, %p143
      %p146 = scmp.ne.s32.totalorder %s129, %s145
      %p147 = scmp.eq.s32.totalorder %s16, 0
      %p148 = por %p146, %p147
      %p149 = scmp.le.s32.totalorder 1, %s10
      %p150 = scmp.lt.s32.totalorder %s10, 11
      %p151 = pnand %p149, %p150
      %p152 = pneg %p151
      // Predicated region
      $region9: #{cnn_forward.3} parent=5 // pred_check
        _
      $region10: #{cnn_forward.3} parent=5 // pred_check_branch
        %154 = sbr.rel (%p151) target = $region12
      $region11: #{cnn_forward.3} parent=5 // pred_region
        %s155 = ssub.s32 %s10, 1
        // Predicated region
        $region13: #{cnn_forward.3} parent=11 // pred_check
          %p156 = pneg %p71
        $region14: #{cnn_forward.3} parent=11 // pred_check_branch
          %158 = sbr.rel (%p156) target = $region16
        $region15: #{cnn_forward.3} parent=11 // pred_region
          _
        $region16: #{cnn_forward.3} parent=11 // pred_fallthru
          _
        // Predicated region
        $region17: #{cnn_forward.3} parent=11 // pred_check
          %p159 = pneg %p92
        $region18: #{cnn_forward.3} parent=11 // pred_check_branch
          %161 = sbr.rel (%p159) target = $region20
        $region19: #{cnn_forward.3} parent=11 // pred_region
          _
        $region20: #{cnn_forward.3} parent=11 // pred_fallthru
          _
        // Predicated region
        $region21: #{cnn_forward.3} parent=11 // pred_check
          %p162 = pneg %p113
        $region22: #{cnn_forward.3} parent=11 // pred_check_branch
          %164 = sbr.rel (%p162) target = $region24
        $region23: #{cnn_forward.3} parent=11 // pred_region
          _
        $region24: #{cnn_forward.3} parent=11 // pred_fallthru
          _
      $region12: #{cnn_forward.3} parent=5 // pred_fallthru
        _
      %p165 = scmp.lt.s32.totalorder %s10, 10
      // Predicated region
      $region25: #{cnn_forward.3} parent=5 // pred_check
        %p166 = pneg %p165
      $region26: #{cnn_forward.3} parent=5 // pred_check_branch
        %168 = sbr.rel (%p166) target = $region28
      $region27: #{cnn_forward.3} parent=5 // pred_region
        // Predicated region
        $region29: #{cnn_forward.3} parent=27 // pred_check
          %p169 = pneg %p44
        $region30: #{cnn_forward.3} parent=27 // pred_check_branch
          %171 = sbr.rel (%p169) target = $region32
        $region31: #{cnn_forward.3} parent=27 // pred_region
          %s172 = sand.u32 %s34, 1
          %s173 = sand.u32 %s34, 1
          %s174 = smul.addr %s173, 800
          %s175 = scalar_lea.vmem [#allocation2], %s174
          %s176 = smul.u32 5, %s18
          %s177 = smul.addr %s17, 1000
          %s178 = sadd.s32 %s176, %s177
          %s179 = smul.addr %s178, 4
          %s180 = scalar_lea.vmem %s0, %s179
          // Predicated region
          $region33: #{cnn_forward.3} parent=31 // pred_check
            _
          $region34: #{cnn_forward.3} parent=31 // pred_check_branch
            %182 = sbr.rel (0) target = $region36
          $region35: #{cnn_forward.3} parent=31 // pred_region
            // Predicated region
            $region37: #{cnn_forward.3} parent=35 // pred_check
              _
            $region38: #{cnn_forward.3} parent=35 // pred_check_branch
              %184 = sbr.rel (0) target = $region40
            $region39: #{cnn_forward.3} parent=35 // pred_region
              %s185 = scalar_lea.vmem %s180, 16
              %s186 = scalar_lea.vmem %s175, 16 [#allocation2]
              loop: start=0, step=1, limit=1
              $region41: #{cnn_forward.3} parent=39 // loop_pre_header
                _
              $region42: #{cnn_forward.3} parent=39 // loop_header
                %s188 = sphi 0, %s192
                %p189 = scmp.ge.s32.totalorder %s188, 1
                %s193 = sphi %s180, %s180
                %s194 = sphi %s175, %s175
              $region43: #{cnn_forward.3} parent=39 // loop_header_branch
                %191 = sbr.rel (%p189) target = $region47
              $region44: #{cnn_forward.3} parent=39 // loop_body
                %v195 = vld [vmem:[%s193] sm:$0xff]
                %196 = vst [vmem:[%s194] sm:$0xff] %v195
                %v197 = vld [vmem:[%s193 + $0x8] sm:$0xff]
                %198 = vst [vmem:[%s194 + $0x8] sm:$0xff] %v197
                %v199 = vld [vmem:[%s193 + $0x64] sm:$0xff]
                %200 = vst [vmem:[%s194 + $0x14] sm:$0xff] %v199
                %v201 = vld [vmem:[%s193 + $0x6c] sm:$0xff]
                %202 = vst [vmem:[%s194 + $0x1c] sm:$0xff] %v201
                %v203 = vld [vmem:[%s193 + $0xc8] sm:$0xff]
                %204 = vst [vmem:[%s194 + $0x28] sm:$0xff] %v203
                %v205 = vld [vmem:[%s193 + $0xd0] sm:$0xff]
                %206 = vst [vmem:[%s194 + $0x30] sm:$0xff] %v205
                %v207 = vld [vmem:[%s193 + $0x12c] sm:$0xff]
                %208 = vst [vmem:[%s194 + $0x3c] sm:$0xff] %v207
                %v209 = vld [vmem:[%s193 + $0x134] sm:$0xff]
                %210 = vst [vmem:[%s194 + $0x44] sm:$0xff] %v209
                %v211 = vld [vmem:[%s193 + $0x190] sm:$0xff]
                %212 = vst [vmem:[%s194 + $0x50] sm:$0xff] %v211
                %v213 = vld [vmem:[%s193 + $0x198] sm:$0xff]
                %214 = vst [vmem:[%s194 + $0x58] sm:$0xff] %v213
                %v215 = vld [vmem:[%s193 + $0x1f4] sm:$0xff]
                %216 = vst [vmem:[%s194 + $0x64] sm:$0xff] %v215
                %v217 = vld [vmem:[%s193 + $0x1fc] sm:$0xff]
                %218 = vst [vmem:[%s194 + $0x6c] sm:$0xff] %v217
                %v219 = vld [vmem:[%s193 + $0x258] sm:$0xff]
                %220 = vst [vmem:[%s194 + $0x78] sm:$0xff] %v219
                %v221 = vld [vmem:[%s193 + $0x260] sm:$0xff]
                %222 = vst [vmem:[%s194 + $0x80] sm:$0xff] %v221
                %v223 = vld [vmem:[%s193 + $0x2bc] sm:$0xff]
                %224 = vst [vmem:[%s194 + $0x8c] sm:$0xff] %v223
                %v225 = vld [vmem:[%s193 + $0x2c4] sm:$0xff]
                %226 = vst [vmem:[%s194 + $0x94] sm:$0xff] %v225
                %v227 = vld [vmem:[%s193 + $0x320] sm:$0xff]
                %228 = vst [vmem:[%s194 + $0xa0] sm:$0xff] %v227
                %v229 = vld [vmem:[%s193 + $0x328] sm:$0xff]
                %230 = vst [vmem:[%s194 + $0xa8] sm:$0xff] %v229
                %v231 = vld [vmem:[%s193 + $0x384] sm:$0xff]
                %232 = vst [vmem:[%s194 + $0xb4] sm:$0xff] %v231
                %v233 = vld [vmem:[%s193 + $0x38c] sm:$0xff]
                %234 = vst [vmem:[%s194 + $0xbc] sm:$0xff] %v233
                %v235 = vld [vmem:[%s193 + $0x3e8] sm:$0xff]
                %236 = vst [vmem:[%s194 + $0xc8] sm:$0xff] %v235
                %v237 = vld [vmem:[%s193 + $0x3f0] sm:$0xff]
                %238 = vst [vmem:[%s194 + $0xd0] sm:$0xff] %v237
                %v239 = vld [vmem:[%s193 + $0x44c] sm:$0xff]
                %240 = vst [vmem:[%s194 + $0xdc] sm:$0xff] %v239
                %v241 = vld [vmem:[%s193 + $0x454] sm:$0xff]
                %242 = vst [vmem:[%s194 + $0xe4] sm:$0xff] %v241
                %v243 = vld [vmem:[%s193 + $0x4b0] sm:$0xff]
                %244 = vst [vmem:[%s194 + $0xf0] sm:$0xff] %v243
                %v245 = vld [vmem:[%s193 + $0x4b8] sm:$0xff]
                %246 = vst [vmem:[%s194 + $0xf8] sm:$0xff] %v245
                %v247 = vld [vmem:[%s193 + $0x514] sm:$0xff]
                %248 = vst [vmem:[%s194 + $0x104] sm:$0xff] %v247
                %v249 = vld [vmem:[%s193 + $0x51c] sm:$0xff]
                %250 = vst [vmem:[%s194 + $0x10c] sm:$0xff] %v249
                %v251 = vld [vmem:[%s193 + $0x578] sm:$0xff]
                %252 = vst [vmem:[%s194 + $0x118] sm:$0xff] %v251
                %v253 = vld [vmem:[%s193 + $0x580] sm:$0xff]
                %254 = vst [vmem:[%s194 + $0x120] sm:$0xff] %v253
                %v255 = vld [vmem:[%s193 + $0x5dc] sm:$0xff]
                %256 = vst [vmem:[%s194 + $0x12c] sm:$0xff] %v255
                %v257 = vld [vmem:[%s193 + $0x5e4] sm:$0xff]
                %258 = vst [vmem:[%s194 + $0x134] sm:$0xff] %v257
                %v259 = vld [vmem:[%s193 + $0x640] sm:$0xff]
                %260 = vst [vmem:[%s194 + $0x140] sm:$0xff] %v259
                %v261 = vld [vmem:[%s193 + $0x648] sm:$0xff]
                %262 = vst [vmem:[%s194 + $0x148] sm:$0xff] %v261
                %v263 = vld [vmem:[%s193 + $0x6a4] sm:$0xff]
                %264 = vst [vmem:[%s194 + $0x154] sm:$0xff] %v263
                %v265 = vld [vmem:[%s193 + $0x6ac] sm:$0xff]
                %266 = vst [vmem:[%s194 + $0x15c] sm:$0xff] %v265
                %v267 = vld [vmem:[%s193 + $0x708] sm:$0xff]
                %268 = vst [vmem:[%s194 + $0x168] sm:$0xff] %v267
                %v269 = vld [vmem:[%s193 + $0x710] sm:$0xff]
                %270 = vst [vmem:[%s194 + $0x170] sm:$0xff] %v269
                %v271 = vld [vmem:[%s193 + $0x76c] sm:$0xff]
                %272 = vst [vmem:[%s194 + $0x17c] sm:$0xff] %v271
                %v273 = vld [vmem:[%s193 + $0x774] sm:$0xff]
                %274 = vst [vmem:[%s194 + $0x184] sm:$0xff] %v273
                %v275 = vld [vmem:[%s193 + $0x7d0] sm:$0xff]
                %276 = vst [vmem:[%s194 + $0x190] sm:$0xff] %v275
                %v277 = vld [vmem:[%s193 + $0x7d8] sm:$0xff]
                %278 = vst [vmem:[%s194 + $0x198] sm:$0xff] %v277
                %v279 = vld [vmem:[%s193 + $0x834] sm:$0xff]
                %280 = vst [vmem:[%s194 + $0x1a4] sm:$0xff] %v279
                %v281 = vld [vmem:[%s193 + $0x83c] sm:$0xff]
                %282 = vst [vmem:[%s194 + $0x1ac] sm:$0xff] %v281
                %v283 = vld [vmem:[%s193 + $0x898] sm:$0xff]
                %284 = vst [vmem:[%s194 + $0x1b8] sm:$0xff] %v283
                %v285 = vld [vmem:[%s193 + $0x8a0] sm:$0xff]
                %286 = vst [vmem:[%s194 + $0x1c0] sm:$0xff] %v285
                %v287 = vld [vmem:[%s193 + $0x8fc] sm:$0xff]
                %288 = vst [vmem:[%s194 + $0x1cc] sm:$0xff] %v287
                %v289 = vld [vmem:[%s193 + $0x904] sm:$0xff]
                %290 = vst [vmem:[%s194 + $0x1d4] sm:$0xff] %v289
                %v291 = vld [vmem:[%s193 + $0x960] sm:$0xff]
                %292 = vst [vmem:[%s194 + $0x1e0] sm:$0xff] %v291
                %v293 = vld [vmem:[%s193 + $0x968] sm:$0xff]
                %294 = vst [vmem:[%s194 + $0x1e8] sm:$0xff] %v293
                %v295 = vld [vmem:[%s193 + $0x9c4] sm:$0xff]
                %296 = vst [vmem:[%s194 + $0x1f4] sm:$0xff] %v295
                %v297 = vld [vmem:[%s193 + $0x9cc] sm:$0xff]
                %298 = vst [vmem:[%s194 + $0x1fc] sm:$0xff] %v297
                %v299 = vld [vmem:[%s193 + $0xa28] sm:$0xff]
                %300 = vst [vmem:[%s194 + $0x208] sm:$0xff] %v299
                %v301 = vld [vmem:[%s193 + $0xa30] sm:$0xff]
                %302 = vst [vmem:[%s194 + $0x210] sm:$0xff] %v301
                %v303 = vld [vmem:[%s193 + $0xa8c] sm:$0xff]
                %304 = vst [vmem:[%s194 + $0x21c] sm:$0xff] %v303
                %v305 = vld [vmem:[%s193 + $0xa94] sm:$0xff]
                %306 = vst [vmem:[%s194 + $0x224] sm:$0xff] %v305
                %v307 = vld [vmem:[%s193 + $0xaf0] sm:$0xff]
                %308 = vst [vmem:[%s194 + $0x230] sm:$0xff] %v307
                %v309 = vld [vmem:[%s193 + $0xaf8] sm:$0xff]
                %310 = vst [vmem:[%s194 + $0x238] sm:$0xff] %v309
                %v311 = vld [vmem:[%s193 + $0xb54] sm:$0xff]
                %312 = vst [vmem:[%s194 + $0x244] sm:$0xff] %v311
                %v313 = vld [vmem:[%s193 + $0xb5c] sm:$0xff]
                %314 = vst [vmem:[%s194 + $0x24c] sm:$0xff] %v313
                %v315 = vld [vmem:[%s193 + $0xbb8] sm:$0xff]
                %316 = vst [vmem:[%s194 + $0x258] sm:$0xff] %v315
                %v317 = vld [vmem:[%s193 + $0xbc0] sm:$0xff]
                %318 = vst [vmem:[%s194 + $0x260] sm:$0xff] %v317
                %v319 = vld [vmem:[%s193 + $0xc1c] sm:$0xff]
                %320 = vst [vmem:[%s194 + $0x26c] sm:$0xff] %v319
                %v321 = vld [vmem:[%s193 + $0xc24] sm:$0xff]
                %322 = vst [vmem:[%s194 + $0x274] sm:$0xff] %v321
                %v323 = vld [vmem:[%s193 + $0xc80] sm:$0xff]
                %324 = vst [vmem:[%s194 + $0x280] sm:$0xff] %v323
                %v325 = vld [vmem:[%s193 + $0xc88] sm:$0xff]
                %326 = vst [vmem:[%s194 + $0x288] sm:$0xff] %v325
                %v327 = vld [vmem:[%s193 + $0xce4] sm:$0xff]
                %328 = vst [vmem:[%s194 + $0x294] sm:$0xff] %v327
                %v329 = vld [vmem:[%s193 + $0xcec] sm:$0xff]
                %330 = vst [vmem:[%s194 + $0x29c] sm:$0xff] %v329
                %v331 = vld [vmem:[%s193 + $0xd48] sm:$0xff]
                %332 = vst [vmem:[%s194 + $0x2a8] sm:$0xff] %v331
                %v333 = vld [vmem:[%s193 + $0xd50] sm:$0xff]
                %334 = vst [vmem:[%s194 + $0x2b0] sm:$0xff] %v333
                %v335 = vld [vmem:[%s193 + $0xdac] sm:$0xff]
                %336 = vst [vmem:[%s194 + $0x2bc] sm:$0xff] %v335
                %v337 = vld [vmem:[%s193 + $0xdb4] sm:$0xff]
                %338 = vst [vmem:[%s194 + $0x2c4] sm:$0xff] %v337
                %v339 = vld [vmem:[%s193 + $0xe10] sm:$0xff]
                %340 = vst [vmem:[%s194 + $0x2d0] sm:$0xff] %v339
                %v341 = vld [vmem:[%s193 + $0xe18] sm:$0xff]
                %342 = vst [vmem:[%s194 + $0x2d8] sm:$0xff] %v341
                %v343 = vld [vmem:[%s193 + $0xe74] sm:$0xff]
                %344 = vst [vmem:[%s194 + $0x2e4] sm:$0xff] %v343
                %v345 = vld [vmem:[%s193 + $0xe7c] sm:$0xff]
                %346 = vst [vmem:[%s194 + $0x2ec] sm:$0xff] %v345
                %v347 = vld [vmem:[%s193 + $0xed8] sm:$0xff]
                %348 = vst [vmem:[%s194 + $0x2f8] sm:$0xff] %v347
                %v349 = vld [vmem:[%s193 + $0xee0] sm:$0xff]
                %350 = vst [vmem:[%s194 + $0x300] sm:$0xff] %v349
                %v351 = vld [vmem:[%s193 + $0xf3c] sm:$0xff]
                %352 = vst [vmem:[%s194 + $0x30c] sm:$0xff] %v351
                %v353 = vld [vmem:[%s193 + $0xf44] sm:$0xff]
                %354 = vst [vmem:[%s194 + $0x314] sm:$0xff] %v353
              $region45: #{cnn_forward.3} parent=39 // loop_footer
                %s192 = sadd.s32 1, %s188
              $region46: #{cnn_forward.3} parent=39 // loop_footer_branch
                %187 = sbr.rel target = $region42
              $region47: #{cnn_forward.3} parent=39 // loop_exit
                _
              loop: start=0, step=1, limit=1
              $region48: #{cnn_forward.3} parent=39 // loop_pre_header
                _
              $region49: #{cnn_forward.3} parent=39 // loop_header
                %s357 = sphi 0, %s361
                %p358 = scmp.ge.s32.totalorder %s357, 1
                %s362 = sphi %s185, %s185
                %s363 = sphi %s186, %s186
              $region50: #{cnn_forward.3} parent=39 // loop_header_branch
                %360 = sbr.rel (%p358) target = $region54
              $region51: #{cnn_forward.3} parent=39 // loop_body
                %v364 = vld [vmem:[%s362] sm:$0xf]
                %365 = vst [vmem:[%s363] sm:$0xf] %v364
                %v366 = vld [vmem:[%s362 + $0x64] sm:$0xf]
                %367 = vst [vmem:[%s363 + $0x14] sm:$0xf] %v366
                %v368 = vld [vmem:[%s362 + $0xc8] sm:$0xf]
                %369 = vst [vmem:[%s363 + $0x28] sm:$0xf] %v368
                %v370 = vld [vmem:[%s362 + $0x12c] sm:$0xf]
                %371 = vst [vmem:[%s363 + $0x3c] sm:$0xf] %v370
                %v372 = vld [vmem:[%s362 + $0x190] sm:$0xf]
                %373 = vst [vmem:[%s363 + $0x50] sm:$0xf] %v372
                %v374 = vld [vmem:[%s362 + $0x1f4] sm:$0xf]
                %375 = vst [vmem:[%s363 + $0x64] sm:$0xf] %v374
                %v376 = vld [vmem:[%s362 + $0x258] sm:$0xf]
                %377 = vst [vmem:[%s363 + $0x78] sm:$0xf] %v376
                %v378 = vld [vmem:[%s362 + $0x2bc] sm:$0xf]
                %379 = vst [vmem:[%s363 + $0x8c] sm:$0xf] %v378
                %v380 = vld [vmem:[%s362 + $0x320] sm:$0xf]
                %381 = vst [vmem:[%s363 + $0xa0] sm:$0xf] %v380
                %v382 = vld [vmem:[%s362 + $0x384] sm:$0xf]
                %383 = vst [vmem:[%s363 + $0xb4] sm:$0xf] %v382
                %v384 = vld [vmem:[%s362 + $0x3e8] sm:$0xf]
                %385 = vst [vmem:[%s363 + $0xc8] sm:$0xf] %v384
                %v386 = vld [vmem:[%s362 + $0x44c] sm:$0xf]
                %387 = vst [vmem:[%s363 + $0xdc] sm:$0xf] %v386
                %v388 = vld [vmem:[%s362 + $0x4b0] sm:$0xf]
                %389 = vst [vmem:[%s363 + $0xf0] sm:$0xf] %v388
                %v390 = vld [vmem:[%s362 + $0x514] sm:$0xf]
                %391 = vst [vmem:[%s363 + $0x104] sm:$0xf] %v390
                %v392 = vld [vmem:[%s362 + $0x578] sm:$0xf]
                %393 = vst [vmem:[%s363 + $0x118] sm:$0xf] %v392
                %v394 = vld [vmem:[%s362 + $0x5dc] sm:$0xf]
                %395 = vst [vmem:[%s363 + $0x12c] sm:$0xf] %v394
                %v396 = vld [vmem:[%s362 + $0x640] sm:$0xf]
                %397 = vst [vmem:[%s363 + $0x140] sm:$0xf] %v396
                %v398 = vld [vmem:[%s362 + $0x6a4] sm:$0xf]
                %399 = vst [vmem:[%s363 + $0x154] sm:$0xf] %v398
                %v400 = vld [vmem:[%s362 + $0x708] sm:$0xf]
                %401 = vst [vmem:[%s363 + $0x168] sm:$0xf] %v400
                %v402 = vld [vmem:[%s362 + $0x76c] sm:$0xf]
                %403 = vst [vmem:[%s363 + $0x17c] sm:$0xf] %v402
                %v404 = vld [vmem:[%s362 + $0x7d0] sm:$0xf]
                %405 = vst [vmem:[%s363 + $0x190] sm:$0xf] %v404
                %v406 = vld [vmem:[%s362 + $0x834] sm:$0xf]
                %407 = vst [vmem:[%s363 + $0x1a4] sm:$0xf] %v406
                %v408 = vld [vmem:[%s362 + $0x898] sm:$0xf]
                %409 = vst [vmem:[%s363 + $0x1b8] sm:$0xf] %v408
                %v410 = vld [vmem:[%s362 + $0x8fc] sm:$0xf]
                %411 = vst [vmem:[%s363 + $0x1cc] sm:$0xf] %v410
                %v412 = vld [vmem:[%s362 + $0x960] sm:$0xf]
                %413 = vst [vmem:[%s363 + $0x1e0] sm:$0xf] %v412
                %v414 = vld [vmem:[%s362 + $0x9c4] sm:$0xf]
                %415 = vst [vmem:[%s363 + $0x1f4] sm:$0xf] %v414
                %v416 = vld [vmem:[%s362 + $0xa28] sm:$0xf]
                %417 = vst [vmem:[%s363 + $0x208] sm:$0xf] %v416
                %v418 = vld [vmem:[%s362 + $0xa8c] sm:$0xf]
                %419 = vst [vmem:[%s363 + $0x21c] sm:$0xf] %v418
                %v420 = vld [vmem:[%s362 + $0xaf0] sm:$0xf]
                %421 = vst [vmem:[%s363 + $0x230] sm:$0xf] %v420
                %v422 = vld [vmem:[%s362 + $0xb54] sm:$0xf]
                %423 = vst [vmem:[%s363 + $0x244] sm:$0xf] %v422
                %v424 = vld [vmem:[%s362 + $0xbb8] sm:$0xf]
                %425 = vst [vmem:[%s363 + $0x258] sm:$0xf] %v424
                %v426 = vld [vmem:[%s362 + $0xc1c] sm:$0xf]
                %427 = vst [vmem:[%s363 + $0x26c] sm:$0xf] %v426
                %v428 = vld [vmem:[%s362 + $0xc80] sm:$0xf]
                %429 = vst [vmem:[%s363 + $0x280] sm:$0xf] %v428
                %v430 = vld [vmem:[%s362 + $0xce4] sm:$0xf]
                %431 = vst [vmem:[%s363 + $0x294] sm:$0xf] %v430
                %v432 = vld [vmem:[%s362 + $0xd48] sm:$0xf]
                %433 = vst [vmem:[%s363 + $0x2a8] sm:$0xf] %v432
                %v434 = vld [vmem:[%s362 + $0xdac] sm:$0xf]
                %435 = vst [vmem:[%s363 + $0x2bc] sm:$0xf] %v434
                %v436 = vld [vmem:[%s362 + $0xe10] sm:$0xf]
                %437 = vst [vmem:[%s363 + $0x2d0] sm:$0xf] %v436
                %v438 = vld [vmem:[%s362 + $0xe74] sm:$0xf]
                %439 = vst [vmem:[%s363 + $0x2e4] sm:$0xf] %v438
                %v440 = vld [vmem:[%s362 + $0xed8] sm:$0xf]
                %441 = vst [vmem:[%s363 + $0x2f8] sm:$0xf] %v440
                %v442 = vld [vmem:[%s362 + $0xf3c] sm:$0xf]
                %443 = vst [vmem:[%s363 + $0x30c] sm:$0xf] %v442
              $region52: #{cnn_forward.3} parent=39 // loop_footer
                %s361 = sadd.s32 1, %s357
              $region53: #{cnn_forward.3} parent=39 // loop_footer_branch
                %356 = sbr.rel target = $region49
              $region54: #{cnn_forward.3} parent=39 // loop_exit
                _
            $region40: #{cnn_forward.3} parent=35 // pred_fallthru
              _
          $region36: #{cnn_forward.3} parent=31 // pred_fallthru
            _
          %444 = vnop
        $region32: #{cnn_forward.3} parent=27 // pred_fallthru
          _
      $region28: #{cnn_forward.3} parent=5 // pred_fallthru
        _
      %p445 = scmp.le.s32.totalorder 1, %s10
      %p446 = scmp.lt.s32.totalorder %s10, 11
      %p447 = pnand %p445, %p446
      %p448 = pneg %p447
      // Predicated region
      $region55: #{cnn_forward.3} parent=5 // pred_check
        _
      $region56: #{cnn_forward.3} parent=5 // pred_check_branch
        %450 = sbr.rel (%p447) target = $region58
      $region57: #{cnn_forward.3} parent=5 // pred_region
        %s451 = ssub.s32 %s10, 1
        %s452 = sand.u32 %s37, 1
        %s453 = sand.u32 %s37, 1
        %s454 = smul.addr %s453, 800
        %s455 = scalar_lea.vmem [#allocation2], %s454
        // Predicated region
        $region59: #{cnn_forward.3} parent=57 // pred_check
          %p456 = pneg %p50
        $region60: #{cnn_forward.3} parent=57 // pred_check_branch
          %458 = sbr.rel (%p456) target = $region62
        $region61: #{cnn_forward.3} parent=57 // pred_region
          _
        $region62: #{cnn_forward.3} parent=57 // pred_fallthru
          _
        %s459 = sand.u32 %s37, 1
        %s460 = sand.u32 %s37, 1
        %s461 = smul.addr %s460, 800
        %s462 = scalar_lea.vmem [#allocation2], %s461
        %p463 = pneg %p50
        %p464 = pneg %p47
        %p465 = pneg %p71
        %p466 = pneg %p68
        %p467 = pneg %p92
        %p468 = pneg %p89
        %p469 = pneg %p113
        %p470 = pneg %p110
        %p471 = pneg %p141
        %p472 = pneg %p138
        %s473 = sand.u32 %s128, 1
        %s474 = sand.u32 %s128, 1
        %s475 = smul.addr %s474, 40
        %s476 = scalar_lea.vmem [#allocation3], %s475
        %s477 = smul.u32 5, %s20
        %s478 = smul.u32 5, %s20
        %v480 = vld [vmem:[%s1] sm:$0xf]
        %v481 = vld [vmem:[%s1 + $0x4] sm:$0xf]
        %v482 = vld [vmem:[%s2] sm:$0xff]
        %v483 = vld [vmem:[%s2 + $0x8] sm:$0xff]
        %485 = vset.pattern.permute.xlu0 0
        %486 = vperm.xlu0 %485, %v482
        %v487 = vpop.permute.xlu0 %486
        %490 = vset.pattern.permute.xlu0 0
        %491 = vperm.xlu0 %490, %v483
        %v492 = vpop.permute.xlu0 %491
        %v494 = vld [vmem:[%s3] sm:$0xff]
        %v495 = vld [vmem:[%s3 + $0x8] sm:$0xff]
        %497 = vset.pattern.permute.xlu0 0
        %498 = vperm.xlu0 %497, %v494
        %v499 = vpop.permute.xlu0 %498
        %502 = vset.pattern.permute.xlu0 0
        %503 = vperm.xlu0 %502, %v495
        %v504 = vpop.permute.xlu0 %503
        %v506 = vld [vmem:[%s455] sm:$0xff]
        %v507 = vld [vmem:[%s455 + $0x8] sm:$0xff]
        %v508 = vld [vmem:[%s455 + $0x10] sm:$0xf]
        %v509 = vld [vmem:[%s455 + $0x14] sm:$0xff]
        %v510 = vld [vmem:[%s455 + $0x1c] sm:$0xff]
        %v511 = vld [vmem:[%s455 + $0x24] sm:$0xf]
        %v512 = vld [vmem:[%s455 + $0x28] sm:$0xff]
        %v513 = vld [vmem:[%s455 + $0x30] sm:$0xff]
        %v514 = vld [vmem:[%s455 + $0x38] sm:$0xf]
        %v515 = vld [vmem:[%s455 + $0x3c] sm:$0xff]
        %v516 = vld [vmem:[%s455 + $0x44] sm:$0xff]
        %v517 = vld [vmem:[%s455 + $0x4c] sm:$0xf]
        %v518 = vld [vmem:[%s455 + $0x50] sm:$0xff]
        %v519 = vld [vmem:[%s455 + $0x58] sm:$0xff]
        %v520 = vld [vmem:[%s455 + $0x60] sm:$0xf]
        %v521 = vld [vmem:[%s455 + $0x64] sm:$0xff]
        %v522 = vld [vmem:[%s455 + $0x6c] sm:$0xff]
        %v523 = vld [vmem:[%s455 + $0x74] sm:$0xf]
        %v524 = vld [vmem:[%s455 + $0x78] sm:$0xff]
        %v525 = vld [vmem:[%s455 + $0x80] sm:$0xff]
        %v526 = vld [vmem:[%s455 + $0x88] sm:$0xf]
        %v527 = vld [vmem:[%s455 + $0x8c] sm:$0xff]
        %v528 = vld [vmem:[%s455 + $0x94] sm:$0xff]
        %v529 = vld [vmem:[%s455 + $0x9c] sm:$0xf]
        %v530 = vld [vmem:[%s455 + $0xa0] sm:$0xff]
        %v531 = vld [vmem:[%s455 + $0xa8] sm:$0xff]
        %v532 = vld [vmem:[%s455 + $0xb0] sm:$0xf]
        %v533 = vld [vmem:[%s455 + $0xb4] sm:$0xff]
        %v534 = vld [vmem:[%s455 + $0xbc] sm:$0xff]
        %v535 = vld [vmem:[%s455 + $0xc4] sm:$0xf]
        %v538 = vunpack.c.l.b16 %v480
        %v539 = vunpack.c.l.b16 %v481
        %v540 = vpack.c.b16 %v539, %v538
        %v571 = vunpack.c.l.b16 %v506
        %v572 = vunpack.c.h.b16 %v506
        %v573 = vunpack.c.l.b16 %v507
        %v574 = vunpack.c.h.b16 %v507
        %v575 = vunpack.c.l.b16 %v508
        %v576 = vunpack.c.l.b16 %v509
        %v577 = vunpack.c.h.b16 %v509
        %v578 = vunpack.c.l.b16 %v510
        %v579 = vunpack.c.h.b16 %v510
        %v580 = vunpack.c.l.b16 %v511
        %v581 = vunpack.c.l.b16 %v512
        %v582 = vunpack.c.h.b16 %v512
        %v583 = vunpack.c.l.b16 %v513
        %v584 = vunpack.c.h.b16 %v513
        %v585 = vunpack.c.l.b16 %v514
        %v586 = vunpack.c.l.b16 %v515
        %v587 = vunpack.c.h.b16 %v515
        %v588 = vunpack.c.l.b16 %v516
        %v589 = vunpack.c.h.b16 %v516
        %v590 = vunpack.c.l.b16 %v517
        %v591 = vunpack.c.l.b16 %v518
        %v592 = vunpack.c.h.b16 %v518
        %v593 = vunpack.c.l.b16 %v519
        %v594 = vunpack.c.h.b16 %v519
        %v595 = vunpack.c.l.b16 %v520
        %v596 = vunpack.c.l.b16 %v521
        %v597 = vunpack.c.h.b16 %v521
        %v598 = vunpack.c.l.b16 %v522
        %v599 = vunpack.c.h.b16 %v522
        %v600 = vunpack.c.l.b16 %v523
        %v601 = vunpack.c.l.b16 %v524
        %v602 = vunpack.c.h.b16 %v524
        %v603 = vunpack.c.l.b16 %v525
        %v604 = vunpack.c.h.b16 %v525
        %v605 = vunpack.c.l.b16 %v526
        %v606 = vunpack.c.l.b16 %v527
        %v607 = vunpack.c.h.b16 %v527
        %v608 = vunpack.c.l.b16 %v528
        %v609 = vunpack.c.h.b16 %v528
        %v610 = vunpack.c.l.b16 %v529
        %v611 = vunpack.c.l.b16 %v530
        %v612 = vunpack.c.h.b16 %v530
        %v613 = vunpack.c.l.b16 %v531
        %v614 = vunpack.c.h.b16 %v531
        %v615 = vunpack.c.l.b16 %v532
        %v616 = vunpack.c.l.b16 %v533
        %v617 = vunpack.c.h.b16 %v533
        %v618 = vunpack.c.l.b16 %v534
        %v619 = vunpack.c.h.b16 %v534
        %v620 = vunpack.c.l.b16 %v535
        %v621 = vpack.c.b16 %v576, %v571
        %v622 = vpack.c.b16 %v577, %v572
        %v623 = vpack.c.b16 %v578, %v573
        %v624 = vpack.c.b16 %v579, %v574
        %v625 = vpack.c.b16 %v580, %v575
        %v626 = vpack.c.b16 %v586, %v581
        %v627 = vpack.c.b16 %v587, %v582
        %v628 = vpack.c.b16 %v588, %v583
        %v629 = vpack.c.b16 %v589, %v584
        %v630 = vpack.c.b16 %v590, %v585
        %v631 = vpack.c.b16 %v596, %v591
        %v632 = vpack.c.b16 %v597, %v592
        %v633 = vpack.c.b16 %v598, %v593
        %v634 = vpack.c.b16 %v599, %v594
        %v635 = vpack.c.b16 %v600, %v595
        %v636 = vpack.c.b16 %v606, %v601
        %v637 = vpack.c.b16 %v607, %v602
        %v638 = vpack.c.b16 %v608, %v603
        %v639 = vpack.c.b16 %v609, %v604
        %v640 = vpack.c.b16 %v610, %v605
        %v641 = vpack.c.b16 %v616, %v611
        %v642 = vpack.c.b16 %v617, %v612
        %v643 = vpack.c.b16 %v618, %v613
        %v644 = vpack.c.b16 %v619, %v614
        %v645 = vpack.c.b16 %v620, %v615
        %vm671 = vcmask 654336
        %v673 = vsel %vm671, %v540, 0
        %675 = vmatprep.subr.bf16.mxu0 %v622
        %676 = vmatpush1.bf16.msra.mxu0 %v621
        %677 = vmatprep.subr.bf16.mxu0 %v627
        %678 = vmatpush1.bf16.msra.mxu0 %v626
        %679 = vmatprep.subr.bf16.mxu0 %v632
        %680 = vmatpush1.bf16.msra.mxu0 %v631
        %681 = vmatprep.subr.bf16.mxu0 %v637
        %682 = vmatpush1.bf16.msra.mxu0 %v636
        %683 = vmatprep.subr.bf16.mxu0 %v642
        %684 = vmatpush1.bf16.msra.mxu0 %v641
        %685 = vmatprep.subr.bf16.mxu0 0
        %686 = vmatpush1.bf16.msra.mxu0 0
        %687 = vmatprep.subr.bf16.mxu0 0
        %688 = vmatpush1.bf16.msra.mxu0 0
        %689 = vmatprep.subr.bf16.mxu0 0
        %690 = vmatpush1.bf16.msra.mxu0 0
        %691 = vmatprep.subr.bf16.mxu0 0
        %692 = vmatpush1.bf16.msra.mxu0 0
        %693 = vmatprep.subr.bf16.mxu0 0
        %694 = vmatpush1.bf16.msra.mxu0 0
        %695 = vmatprep.subr.bf16.mxu0 0
        %696 = vmatpush1.bf16.msra.mxu0 0
        %697 = vmatprep.subr.bf16.mxu0 0
        %698 = vmatpush1.bf16.msra.mxu0 0
        %699 = vmatprep.subr.bf16.mxu0 0
        %700 = vmatpush1.bf16.msra.mxu0 0
        %701 = vmatprep.subr.bf16.mxu0 0
        %702 = vmatpush1.bf16.msra.mxu0 0
        %703 = vmatprep.subr.bf16.mxu0 0
        %704 = vmatpush1.bf16.msra.mxu0 0
        %705 = vmatprep.subr.bf16.mxu0 0
        %706 = vmatpush1.bf16.msra.mxu0 0
        %707 = vmatprep.mubr.bf16.mxu0 0
        %708 = vmatmul.mubr.bf16.gmra.mrb[0].mxu0 %v673
        %v709 = vpop.f32.mrb[0].mxu0
        %v710 = vadd.f32 0.0, %v709
        %v711 = vpop.f32.mrb[0].mxu0
        %v712 = vadd.f32 0.0, %v711
        %v713 = vpop.f32.mrb[0].mxu0
        %v714 = vadd.f32 0.0, %v713
        %v715 = vpop.f32.mrb[0].mxu0
        %v716 = vadd.f32 0.0, %v715
        %717 = vdwg.mxu0
        %718 = vmatprep.subr.bf16.mxu0 %v624
        %719 = vmatpush1.bf16.msra.mxu0 %v623
        %720 = vmatprep.subr.bf16.mxu0 %v629
        %721 = vmatpush1.bf16.msra.mxu0 %v628
        %722 = vmatprep.subr.bf16.mxu0 %v634
        %723 = vmatpush1.bf16.msra.mxu0 %v633
        %724 = vmatprep.subr.bf16.mxu0 %v639
        %725 = vmatpush1.bf16.msra.mxu0 %v638
        %726 = vmatprep.subr.bf16.mxu0 %v644
        %727 = vmatpush1.bf16.msra.mxu0 %v643
        %728 = vmatprep.subr.bf16.mxu0 0
        %729 = vmatpush1.bf16.msra.mxu0 0
        %730 = vmatprep.subr.bf16.mxu0 0
        %731 = vmatpush1.bf16.msra.mxu0 0
        %732 = vmatprep.subr.bf16.mxu0 0
        %733 = vmatpush1.bf16.msra.mxu0 0
        %734 = vmatprep.subr.bf16.mxu0 0
        %735 = vmatpush1.bf16.msra.mxu0 0
        %736 = vmatprep.subr.bf16.mxu0 0
        %737 = vmatpush1.bf16.msra.mxu0 0
        %738 = vmatprep.subr.bf16.mxu0 0
        %739 = vmatpush1.bf16.msra.mxu0 0
        %740 = vmatprep.subr.bf16.mxu0 0
        %741 = vmatpush1.bf16.msra.mxu0 0
        %742 = vmatprep.subr.bf16.mxu0 0
        %743 = vmatpush1.bf16.msra.mxu0 0
        %744 = vmatprep.subr.bf16.mxu0 0
        %745 = vmatpush1.bf16.msra.mxu0 0
        %746 = vmatprep.subr.bf16.mxu0 0
        %747 = vmatpush1.bf16.msra.mxu0 0
        %748 = vmatprep.subr.bf16.mxu0 0
        %749 = vmatpush1.bf16.msra.mxu0 0
        %750 = vmatprep.mubr.bf16.mxu0 0
        %751 = vmatmul.mubr.bf16.gmra.mrb[0].mxu0 %v673
        %v752 = vpop.f32.mrb[0].mxu0
        %v753 = vadd.f32 0.0, %v752
        %v754 = vpop.f32.mrb[0].mxu0
        %v755 = vadd.f32 0.0, %v754
        %v756 = vpop.f32.mrb[0].mxu0
        %v757 = vadd.f32 0.0, %v756
        %v758 = vpop.f32.mrb[0].mxu0
        %v759 = vadd.f32 0.0, %v758
        %760 = vdwg.mxu0
        %761 = vmatprep.subr.bf16.mxu0 0
        %762 = vmatpush1.bf16.msra.mxu0 %v625
        %763 = vmatprep.subr.bf16.mxu0 0
        %764 = vmatpush1.bf16.msra.mxu0 %v630
        %765 = vmatprep.subr.bf16.mxu0 0
        %766 = vmatpush1.bf16.msra.mxu0 %v635
        %767 = vmatprep.subr.bf16.mxu0 0
        %768 = vmatpush1.bf16.msra.mxu0 %v640
        %769 = vmatprep.subr.bf16.mxu0 0
        %770 = vmatpush1.bf16.msra.mxu0 %v645
        %771 = vmatprep.subr.bf16.mxu0 0
        %772 = vmatpush1.bf16.msra.mxu0 0
        %773 = vmatprep.subr.bf16.mxu0 0
        %774 = vmatpush1.bf16.msra.mxu0 0
        %775 = vmatprep.subr.bf16.mxu0 0
        %776 = vmatpush1.bf16.msra.mxu0 0
        %777 = vmatprep.subr.bf16.mxu0 0
        %778 = vmatpush1.bf16.msra.mxu0 0
        %779 = vmatprep.subr.bf16.mxu0 0
        %780 = vmatpush1.bf16.msra.mxu0 0
        %781 = vmatprep.subr.bf16.mxu0 0
        %782 = vmatpush1.bf16.msra.mxu0 0
        %783 = vmatprep.subr.bf16.mxu0 0
        %784 = vmatpush1.bf16.msra.mxu0 0
        %785 = vmatprep.subr.bf16.mxu0 0
        %786 = vmatpush1.bf16.msra.mxu0 0
        %787 = vmatprep.subr.bf16.mxu0 0
        %788 = vmatpush1.bf16.msra.mxu0 0
        %789 = vmatprep.subr.bf16.mxu0 0
        %790 = vmatpush1.bf16.msra.mxu0 0
        %791 = vmatprep.subr.bf16.mxu0 0
        %792 = vmatpush1.bf16.msra.mxu0 0
        %793 = vmatprep.mubr.bf16.mxu0 0
        %794 = vmatmul.mubr.bf16.gmra.mrb[0].mxu0 %v673
        %v795 = vpop.f32.mrb[0].mxu0
        %v796 = vadd.f32 0.0, %v795
        %v797 = vpop.f32.mrb[0].mxu0
        %v798 = vpop.f32.mrb[0].mxu0
        %v799 = vadd.f32 0.0, %v798
        %v800 = vpop.f32.mrb[0].mxu0
        %801 = vdwg.mxu0
        %v802 = vmul.f32 %v710, %v487
        %v803 = vmul.f32 %v712, %v487
        %v804 = vmul.f32 %v753, %v487
        %v805 = vmul.f32 %v755, %v487
        %v806 = vmul.f32 %v796, %v487
        %v807 = vmul.f32 %v714, %v492
        %v808 = vmul.f32 %v716, %v492
        %v809 = vmul.f32 %v757, %v492
        %v810 = vmul.f32 %v759, %v492
        %v811 = vmul.f32 %v799, %v492
        %v812 = vadd.f32 %v802, %v499
        %v813 = vadd.f32 %v803, %v499
        %v814 = vadd.f32 %v804, %v499
        %v815 = vadd.f32 %v805, %v499
        %v816 = vadd.f32 %v806, %v499
        %v817 = vadd.f32 %v807, %v504
        %v818 = vadd.f32 %v808, %v504
        %v819 = vadd.f32 %v809, %v504
        %v820 = vadd.f32 %v810, %v504
        %v821 = vadd.f32 %v811, %v504
        %s822 = scalar_lea.vmem %s455, 200 [#allocation2]
        %v823 = vld [vmem:[%s822] sm:$0xff]
        %v824 = vld [vmem:[%s822 + $0x8] sm:$0xff]
        %v825 = vld [vmem:[%s822 + $0x10] sm:$0xf]
        %v826 = vld [vmem:[%s822 + $0x14] sm:$0xff]
        %v827 = vld [vmem:[%s822 + $0x1c] sm:$0xff]
        %v828 = vld [vmem:[%s822 + $0x24] sm:$0xf]
        %v829 = vld [vmem:[%s822 + $0x28] sm:$0xff]
        %v830 = vld [vmem:[%s822 + $0x30] sm:$0xff]
        %v831 = vld [vmem:[%s822 + $0x38] sm:$0xf]
        %v832 = vld [vmem:[%s822 + $0x3c] sm:$0xff]
        %v833 = vld [vmem:[%s822 + $0x44] sm:$0xff]
        %v834 = vld [vmem:[%s822 + $0x4c] sm:$0xf]
        %v835 = vld [vmem:[%s822 + $0x50] sm:$0xff]
        %v836 = vld [vmem:[%s822 + $0x58] sm:$0xff]
        %v837 = vld [vmem:[%s822 + $0x60] sm:$0xf]
        %v838 = vld [vmem:[%s822 + $0x64] sm:$0xff]
        %v839 = vld [vmem:[%s822 + $0x6c] sm:$0xff]
        %v840 = vld [vmem:[%s822 + $0x74] sm:$0xf]
        %v841 = vld [vmem:[%s822 + $0x78] sm:$0xff]
        %v842 = vld [vmem:[%s822 + $0x80] sm:$0xff]
        %v843 = vld [vmem:[%s822 + $0x88] sm:$0xf]
        %v844 = vld [vmem:[%s822 + $0x8c] sm:$0xff]
        %v845 = vld [vmem:[%s822 + $0x94] sm:$0xff]
        %v846 = vld [vmem:[%s822 + $0x9c] sm:$0xf]
        %v847 = vld [vmem:[%s822 + $0xa0] sm:$0xff]
        %v848 = vld [vmem:[%s822 + $0xa8] sm:$0xff]
        %v849 = vld [vmem:[%s822 + $0xb0] sm:$0xf]
        %v850 = vld [vmem:[%s822 + $0xb4] sm:$0xff]
        %v851 = vld [vmem:[%s822 + $0xbc] sm:$0xff]
        %v852 = vld [vmem:[%s822 + $0xc4] sm:$0xf]
        %v883 = vunpack.c.l.b16 %v823
        %v884 = vunpack.c.h.b16 %v823
        %v885 = vunpack.c.l.b16 %v824
        %v886 = vunpack.c.h.b16 %v824
        %v887 = vunpack.c.l.b16 %v825
        %v888 = vunpack.c.l.b16 %v826
        %v889 = vunpack.c.h.b16 %v826
        %v890 = vunpack.c.l.b16 %v827
        %v891 = vunpack.c.h.b16 %v827
        %v892 = vunpack.c.l.b16 %v828
        %v893 = vunpack.c.l.b16 %v829
        %v894 = vunpack.c.h.b16 %v829
        %v895 = vunpack.c.l.b16 %v830
        %v896 = vunpack.c.h.b16 %v830
        %v897 = vunpack.c.l.b16 %v831
        %v898 = vunpack.c.l.b16 %v832
        %v899 = vunpack.c.h.b16 %v832
        %v900 = vunpack.c.l.b16 %v833
        %v901 = vunpack.c.h.b16 %v833
        %v902 = vunpack.c.l.b16 %v834
        %v903 = vunpack.c.l.b16 %v835
        %v904 = vunpack.c.h.b16 %v835
        %v905 = vunpack.c.l.b16 %v836
        %v906 = vunpack.c.h.b16 %v836
        %v907 = vunpack.c.l.b16 %v837
        %v908 = vunpack.c.l.b16 %v838
        %v909 = vunpack.c.h.b16 %v838
        %v910 = vunpack.c.l.b16 %v839
        %v911 = vunpack.c.h.b16 %v839
        %v912 = vunpack.c.l.b16 %v840
        %v913 = vunpack.c.l.b16 %v841
        %v914 = vunpack.c.h.b16 %v841
        %v915 = vunpack.c.l.b16 %v842
        %v916 = vunpack.c.h.b16 %v842
        %v917 = vunpack.c.l.b16 %v843
        %v918 = vunpack.c.l.b16 %v844
        %v919 = vunpack.c.h.b16 %v844
        %v920 = vunpack.c.l.b16 %v845
        %v921 = vunpack.c.h.b16 %v845
        %v922 = vunpack.c.l.b16 %v846
        %v923 = vunpack.c.l.b16 %v847
        %v924 = vunpack.c.h.b16 %v847
        %v925 = vunpack.c.l.b16 %v848
        %v926 = vunpack.c.h.b16 %v848
        %v927 = vunpack.c.l.b16 %v849
        %v928 = vunpack.c.l.b16 %v850
        %v929 = vunpack.c.h.b16 %v850
        %v930 = vunpack.c.l.b16 %v851
        %v931 = vunpack.c.h.b16 %v851
        %v932 = vunpack.c.l.b16 %v852
        %v933 = vpack.c.b16 %v888, %v883
        %v934 = vpack.c.b16 %v889, %v884
        %v935 = vpack.c.b16 %v890, %v885
        %v936 = vpack.c.b16 %v891, %v886
        %v937 = vpack.c.b16 %v892, %v887
        %v938 = vpack.c.b16 %v898, %v893
        %v939 = vpack.c.b16 %v899, %v894
        %v940 = vpack.c.b16 %v900, %v895
        %v941 = vpack.c.b16 %v901, %v896
        %v942 = vpack.c.b16 %v902, %v897
        %v943 = vpack.c.b16 %v908, %v903
        %v944 = vpack.c.b16 %v909, %v904
        %v945 = vpack.c.b16 %v910, %v905
        %v946 = vpack.c.b16 %v911, %v906
        %v947 = vpack.c.b16 %v912, %v907
        %v948 = vpack.c.b16 %v918, %v913
        %v949 = vpack.c.b16 %v919, %v914
        %v950 = vpack.c.b16 %v920, %v915
        %v951 = vpack.c.b16 %v921, %v916
        %v952 = vpack.c.b16 %v922, %v917
        %v953 = vpack.c.b16 %v928, %v923
        %v954 = vpack.c.b16 %v929, %v924
        %v955 = vpack.c.b16 %v930, %v925
        %v956 = vpack.c.b16 %v931, %v926
        %v957 = vpack.c.b16 %v932, %v927
        %983 = vmatprep.subr.bf16.mxu0 %v934
        %984 = vmatpush1.bf16.msra.mxu0 %v933
        %985 = vmatprep.subr.bf16.mxu0 %v939
        %986 = vmatpush1.bf16.msra.mxu0 %v938
        %987 = vmatprep.subr.bf16.mxu0 %v944
        %988 = vmatpush1.bf16.msra.mxu0 %v943
        %989 = vmatprep.subr.bf16.mxu0 %v949
        %990 = vmatpush1.bf16.msra.mxu0 %v948
        %991 = vmatprep.subr.bf16.mxu0 %v954
        %992 = vmatpush1.bf16.msra.mxu0 %v953
        %993 = vmatprep.subr.bf16.mxu0 0
        %994 = vmatpush1.bf16.msra.mxu0 0
        %995 = vmatprep.subr.bf16.mxu0 0
        %996 = vmatpush1.bf16.msra.mxu0 0
        %997 = vmatprep.subr.bf16.mxu0 0
        %998 = vmatpush1.bf16.msra.mxu0 0
        %999 = vmatprep.subr.bf16.mxu0 0
        %1000 = vmatpush1.bf16.msra.mxu0 0
        %1001 = vmatprep.subr.bf16.mxu0 0
        %1002 = vmatpush1.bf16.msra.mxu0 0
        %1003 = vmatprep.subr.bf16.mxu0 0
        %1004 = vmatpush1.bf16.msra.mxu0 0
        %1005 = vmatprep.subr.bf16.mxu0 0
        %1006 = vmatpush1.bf16.msra.mxu0 0
        %1007 = vmatprep.subr.bf16.mxu0 0
        %1008 = vmatpush1.bf16.msra.mxu0 0
        %1009 = vmatprep.subr.bf16.mxu0 0
        %1010 = vmatpush1.bf16.msra.mxu0 0
        %1011 = vmatprep.subr.bf16.mxu0 0
        %1012 = vmatpush1.bf16.msra.mxu0 0
        %1013 = vmatprep.subr.bf16.mxu0 0
        %1014 = vmatpush1.bf16.msra.mxu0 0
        %1015 = vmatprep.mubr.bf16.mxu0 0
        %1016 = vmatmul.mubr.bf16.gmra.mrb[0].mxu0 %v673
        %v1017 = vpop.f32.mrb[0].mxu0
        %v1018 = vadd.f32 0.0, %v1017
        %v1019 = vpop.f32.mrb[0].mxu0
        %v1020 = vadd.f32 0.0, %v1019
        %v1021 = vpop.f32.mrb[0].mxu0
        %v1022 = vadd.f32 0.0, %v1021
        %v1023 = vpop.f32.mrb[0].mxu0
        %v1024 = vadd.f32 0.0, %v1023
        %1025 = vdwg.mxu0
        %1026 = vmatprep.subr.bf16.mxu0 %v936
        %1027 = vmatpush1.bf16.msra.mxu0 %v935
        %1028 = vmatprep.subr.bf16.mxu0 %v941
        %1029 = vmatpush1.bf16.msra.mxu0 %v940
        %1030 = vmatprep.subr.bf16.mxu0 %v946
        %1031 = vmatpush1.bf16.msra.mxu0 %v945
        %1032 = vmatprep.subr.bf16.mxu0 %v951
        %1033 = vmatpush1.bf16.msra.mxu0 %v950
        %1034 = vmatprep.subr.bf16.mxu0 %v956
        %1035 = vmatpush1.bf16.msra.mxu0 %v955
        %1036 = vmatprep.subr.bf16.mxu0 0
        %1037 = vmatpush1.bf16.msra.mxu0 0
        %1038 = vmatprep.subr.bf16.mxu0 0
        %1039 = vmatpush1.bf16.msra.mxu0 0
        %1040 = vmatprep.subr.bf16.mxu0 0
        %1041 = vmatpush1.bf16.msra.mxu0 0
        %1042 = vmatprep.subr.bf16.mxu0 0
        %1043 = vmatpush1.bf16.msra.mxu0 0
        %1044 = vmatprep.subr.bf16.mxu0 0
        %1045 = vmatpush1.bf16.msra.mxu0 0
        %1046 = vmatprep.subr.bf16.mxu0 0
        %1047 = vmatpush1.bf16.msra.mxu0 0
        %1048 = vmatprep.subr.bf16.mxu0 0
        %1049 = vmatpush1.bf16.msra.mxu0 0
        %1050 = vmatprep.subr.bf16.mxu0 0
        %1051 = vmatpush1.bf16.msra.mxu0 0
        %1052 = vmatprep.subr.bf16.mxu0 0
        %1053 = vmatpush1.bf16.msra.mxu0 0
        %1054 = vmatprep.subr.bf16.mxu0 0
        %1055 = vmatpush1.bf16.msra.mxu0 0
        %1056 = vmatprep.subr.bf16.mxu0 0
        %1057 = vmatpush1.bf16.msra.mxu0 0
        %1058 = vmatprep.mubr.bf16.mxu0 0
        %1059 = vmatmul.mubr.bf16.gmra.mrb[0].mxu0 %v673
        %v1060 = vpop.f32.mrb[0].mxu0
        %v1061 = vadd.f32 0.0, %v1060
        %v1062 = vpop.f32.mrb[0].mxu0
        %v1063 = vadd.f32 0.0, %v1062
        %v1064 = vpop.f32.mrb[0].mxu0
        %v1065 = vadd.f32 0.0, %v1064
        %v1066 = vpop.f32.mrb[0].mxu0
        %v1067 = vadd.f32 0.0, %v1066
        %1068 = vdwg.mxu0
        %1069 = vmatprep.subr.bf16.mxu0 0
        %1070 = vmatpush1.bf16.msra.mxu0 %v937
        %1071 = vmatprep.subr.bf16.mxu0 0
        %1072 = vmatpush1.bf16.msra.mxu0 %v942
        %1073 = vmatprep.subr.bf16.mxu0 0
        %1074 = vmatpush1.bf16.msra.mxu0 %v947
        %1075 = vmatprep.subr.bf16.mxu0 0
        %1076 = vmatpush1.bf16.msra.mxu0 %v952
        %1077 = vmatprep.subr.bf16.mxu0 0
        %1078 = vmatpush1.bf16.msra.mxu0 %v957
        %1079 = vmatprep.subr.bf16.mxu0 0
        %1080 = vmatpush1.bf16.msra.mxu0 0
        %1081 = vmatprep.subr.bf16.mxu0 0
        %1082 = vmatpush1.bf16.msra.mxu0 0
        %1083 = vmatprep.subr.bf16.mxu0 0
        %1084 = vmatpush1.bf16.msra.mxu0 0
        %1085 = vmatprep.subr.bf16.mxu0 0
        %1086 = vmatpush1.bf16.msra.mxu0 0
        %1087 = vmatprep.subr.bf16.mxu0 0
        %1088 = vmatpush1.bf16.msra.mxu0 0
        %1089 = vmatprep.subr.bf16.mxu0 0
        %1090 = vmatpush1.bf16.msra.mxu0 0
        %1091 = vmatprep.subr.bf16.mxu0 0
        %1092 = vmatpush1.bf16.msra.mxu0 0
        %1093 = vmatprep.subr.bf16.mxu0 0
        %1094 = vmatpush1.bf16.msra.mxu0 0
        %1095 = vmatprep.subr.bf16.mxu0 0
        %1096 = vmatpush1.bf16.msra.mxu0 0
        %1097 = vmatprep.subr.bf16.mxu0 0
        %1098 = vmatpush1.bf16.msra.mxu0 0
        %1099 = vmatprep.subr.bf16.mxu0 0
        %1100 = vmatpush1.bf16.msra.mxu0 0
        %1101 = vmatprep.mubr.bf16.mxu0 0
        %1102 = vmatmul.mubr.bf16.gmra.mrb[0].mxu0 %v673
        %v1103 = vpop.f32.mrb[0].mxu0
        %v1104 = vadd.f32 0.0, %v1103
        %v1105 = vpop.f32.mrb[0].mxu0
        %v1106 = vpop.f32.mrb[0].mxu0
        %v1107 = vadd.f32 0.0, %v1106
        %v1108 = vpop.f32.mrb[0].mxu0
        %1109 = vdwg.mxu0
        %v1110 = vmul.f32 %v1018, %v487
        %v1111 = vmul.f32 %v1020, %v487
        %v1112 = vmul.f32 %v1061, %v487
        %v1113 = vmul.f32 %v1063, %v487
        %v1114 = vmul.f32 %v1104, %v487
        %v1115 = vmul.f32 %v1022, %v492
        %v1116 = vmul.f32 %v1024, %v492
        %v1117 = vmul.f32 %v1065, %v492
        %v1118 = vmul.f32 %v1067, %v492
        %v1119 = vmul.f32 %v1107, %v492
        %v1120 = vadd.f32 %v1110, %v499
        %v1121 = vadd.f32 %v1111, %v499
        %v1122 = vadd.f32 %v1112, %v499
        %v1123 = vadd.f32 %v1113, %v499
        %v1124 = vadd.f32 %v1114, %v499
        %v1125 = vadd.f32 %v1115, %v504
        %v1126 = vadd.f32 %v1116, %v504
        %v1127 = vadd.f32 %v1117, %v504
        %v1128 = vadd.f32 %v1118, %v504
        %v1129 = vadd.f32 %v1119, %v504
        %v1130 = vmax.f32 %v812, %v1120
        %v1131 = vmax.f32 %v813, %v1121
        %v1132 = vmax.f32 %v814, %v1122
        %v1133 = vmax.f32 %v815, %v1123
        %v1134 = vmax.f32 %v816, %v1124
        %v1135 = vmax.f32 %v817, %v1125
        %v1136 = vmax.f32 %v818, %v1126
        %v1137 = vmax.f32 %v819, %v1127
        %v1138 = vmax.f32 %v820, %v1128
        %v1139 = vmax.f32 %v821, %v1129
        %s1140 = scalar_lea.vmem %s455, 400 [#allocation2]
        %v1141 = vld [vmem:[%s1140] sm:$0xff]
        %v1142 = vld [vmem:[%s1140 + $0x8] sm:$0xff]
        %v1143 = vld [vmem:[%s1140 + $0x10] sm:$0xf]
        %v1144 = vld [vmem:[%s1140 + $0x14] sm:$0xff]
        %v1145 = vld [vmem:[%s1140 + $0x1c] sm:$0xff]
        %v1146 = vld [vmem:[%s1140 + $0x24] sm:$0xf]
        %v1147 = vld [vmem:[%s1140 + $0x28] sm:$0xff]
        %v1148 = vld [vmem:[%s1140 + $0x30] sm:$0xff]
        %v1149 = vld [vmem:[%s1140 + $0x38] sm:$0xf]
        %v1150 = vld [vmem:[%s1140 + $0x3c] sm:$0xff]
        %v1151 = vld [vmem:[%s1140 + $0x44] sm:$0xff]
        %v1152 = vld [vmem:[%s1140 + $0x4c] sm:$0xf]
        %v1153 = vld [vmem:[%s1140 + $0x50] sm:$0xff]
        %v1154 = vld [vmem:[%s1140 + $0x58] sm:$0xff]
        %v1155 = vld [vmem:[%s1140 + $0x60] sm:$0xf]
        %v1156 = vld [vmem:[%s1140 + $0x64] sm:$0xff]
        %v1157 = vld [vmem:[%s1140 + $0x6c] sm:$0xff]
        %v1158 = vld [vmem:[%s1140 + $0x74] sm:$0xf]
        %v1159 = vld [vmem:[%s1140 + $0x78] sm:$0xff]
        %v1160 = vld [vmem:[%s1140 + $0x80] sm:$0xff]
        %v1161 = vld [vmem:[%s1140 + $0x88] sm:$0xf]
        %v1162 = vld [vmem:[%s1140 + $0x8c] sm:$0xff]
        %v1163 = vld [vmem:[%s1140 + $0x94] sm:$0xff]
        %v1164 = vld [vmem:[%s1140 + $0x9c] sm:$0xf]
        %v1165 = vld [vmem:[%s1140 + $0xa0] sm:$0xff]
        %v1166 = vld [vmem:[%s1140 + $0xa8] sm:$0xff]
        %v1167 = vld [vmem:[%s1140 + $0xb0] sm:$0xf]
        %v1168 = vld [vmem:[%s1140 + $0xb4] sm:$0xff]
        %v1169 = vld [vmem:[%s1140 + $0xbc] sm:$0xff]
        %v1170 = vld [vmem:[%s1140 + $0xc4] sm:$0xf]
        %v1201 = vunpack.c.l.b16 %v1141
        %v1202 = vunpack.c.h.b16 %v1141
        %v1203 = vunpack.c.l.b16 %v1142
        %v1204 = vunpack.c.h.b16 %v1142
        %v1205 = vunpack.c.l.b16 %v1143
        %v1206 = vunpack.c.l.b16 %v1144
        %v1207 = vunpack.c.h.b16 %v1144
        %v1208 = vunpack.c.l.b16 %v1145
        %v1209 = vunpack.c.h.b16 %v1145
        %v1210 = vunpack.c.l.b16 %v1146
        %v1211 = vunpack.c.l.b16 %v1147
        %v1212 = vunpack.c.h.b16 %v1147
        %v1213 = vunpack.c.l.b16 %v1148
        %v1214 = vunpack.c.h.b16 %v1148
        %v1215 = vunpack.c.l.b16 %v1149
        %v1216 = vunpack.c.l.b16 %v1150
        %v1217 = vunpack.c.h.b16 %v1150
        %v1218 = vunpack.c.l.b16 %v1151
        %v1219 = vunpack.c.h.b16 %v1151
        %v1220 = vunpack.c.l.b16 %v1152
        %v1221 = vunpack.c.l.b16 %v1153
        %v1222 = vunpack.c.h.b16 %v1153
        %v1223 = vunpack.c.l.b16 %v1154
        %v1224 = vunpack.c.h.b16 %v1154
        %v1225 = vunpack.c.l.b16 %v1155
        %v1226 = vunpack.c.l.b16 %v1156
        %v1227 = vunpack.c.h.b16 %v1156
        %v1228 = vunpack.c.l.b16 %v1157
        %v1229 = vunpack.c.h.b16 %v1157
        %v1230 = vunpack.c.l.b16 %v1158
        %v1231 = vunpack.c.l.b16 %v1159
        %v1232 = vunpack.c.h.b16 %v1159
        %v1233 = vunpack.c.l.b16 %v1160
        %v1234 = vunpack.c.h.b16 %v1160
        %v1235 = vunpack.c.l.b16 %v1161
        %v1236 = vunpack.c.l.b16 %v1162
        %v1237 = vunpack.c.h.b16 %v1162
        %v1238 = vunpack.c.l.b16 %v1163
        %v1239 = vunpack.c.h.b16 %v1163
        %v1240 = vunpack.c.l.b16 %v1164
        %v1241 = vunpack.c.l.b16 %v1165
        %v1242 = vunpack.c.h.b16 %v1165
        %v1243 = vunpack.c.l.b16 %v1166
        %v1244 = vunpack.c.h.b16 %v1166
        %v1245 = vunpack.c.l.b16 %v1167
        %v1246 = vunpack.c.l.b16 %v1168
        %v1247 = vunpack.c.h.b16 %v1168
        %v1248 = vunpack.c.l.b16 %v1169
        %v1249 = vunpack.c.h.b16 %v1169
        %v1250 = vunpack.c.l.b16 %v1170
        %v1251 = vpack.c.b16 %v1206, %v1201
        %v1252 = vpack.c.b16 %v1207, %v1202
        %v1253 = vpack.c.b16 %v1208, %v1203
        %v1254 = vpack.c.b16 %v1209, %v1204
        %v1255 = vpack.c.b16 %v1210, %v1205
        %v1256 = vpack.c.b16 %v1216, %v1211
        %v1257 = vpack.c.b16 %v1217, %v1212
        %v1258 = vpack.c.b16 %v1218, %v1213
        %v1259 = vpack.c.b16 %v1219, %v1214
        %v1260 = vpack.c.b16 %v1220, %v1215
        %v1261 = vpack.c.b16 %v1226, %v1221
        %v1262 = vpack.c.b16 %v1227, %v1222
        %v1263 = vpack.c.b16 %v1228, %v1223
        %v1264 = vpack.c.b16 %v1229, %v1224
        %v1265 = vpack.c.b16 %v1230, %v1225
        %v1266 = vpack.c.b16 %v1236, %v1231
        %v1267 = vpack.c.b16 %v1237, %v1232
        %v1268 = vpack.c.b16 %v1238, %v1233
        %v1269 = vpack.c.b16 %v1239, %v1234
        %v1270 = vpack.c.b16 %v1240, %v1235
        %v1271 = vpack.c.b16 %v1246, %v1241
        %v1272 = vpack.c.b16 %v1247, %v1242
        %v1273 = vpack.c.b16 %v1248, %v1243
        %v1274 = vpack.c.b16 %v1249, %v1244
        %v1275 = vpack.c.b16 %v1250, %v1245
        %1301 = vmatprep.subr.bf16.mxu0 %v1252
        %1302 = vmatpush1.bf16.msra.mxu0 %v1251
        %1303 = vmatprep.subr.bf16.mxu0 %v1257
        %1304 = vmatpush1.bf16.msra.mxu0 %v1256
        %1305 = vmatprep.subr.bf16.mxu0 %v1262
        %1306 = vmatpush1.bf16.msra.mxu0 %v1261
        %1307 = vmatprep.subr.bf16.mxu0 %v1267
        %1308 = vmatpush1.bf16.msra.mxu0 %v1266
        %1309 = vmatprep.subr.bf16.mxu0 %v1272
        %1310 = vmatpush1.bf16.msra.mxu0 %v1271
        %1311 = vmatprep.subr.bf16.mxu0 0
        %1312 = vmatpush1.bf16.msra.mxu0 0
        %1313 = vmatprep.subr.bf16.mxu0 0
        %1314 = vmatpush1.bf16.msra.mxu0 0
        %1315 = vmatprep.subr.bf16.mxu0 0
        %1316 = vmatpush1.bf16.msra.mxu0 0
        %1317 = vmatprep.subr.bf16.mxu0 0
        %1318 = vmatpush1.bf16.msra.mxu0 0
        %1319 = vmatprep.subr.bf16.mxu0 0
        %1320 = vmatpush1.bf16.msra.mxu0 0
        %1321 = vmatprep.subr.bf16.mxu0 0
        %1322 = vmatpush1.bf16.msra.mxu0 0
        %1323 = vmatprep.subr.bf16.mxu0 0
        %1324 = vmatpush1.bf16.msra.mxu0 0
        %1325 = vmatprep.subr.bf16.mxu0 0
        %1326 = vmatpush1.bf16.msra.mxu0 0
        %1327 = vmatprep.subr.bf16.mxu0 0
        %1328 = vmatpush1.bf16.msra.mxu0 0
        %1329 = vmatprep.subr.bf16.mxu0 0
        %1330 = vmatpush1.bf16.msra.mxu0 0
        %1331 = vmatprep.subr.bf16.mxu0 0
        %1332 = vmatpush1.bf16.msra.mxu0 0
        %1333 = vmatprep.mubr.bf16.mxu0 0
        %1334 = vmatmul.mubr.bf16.gmra.mrb[0].mxu0 %v673
        %v1335 = vpop.f32.mrb[0].mxu0
        %v1336 = vadd.f32 0.0, %v1335
        %v1337 = vpop.f32.mrb[0].mxu0
        %v1338 = vadd.f32 0.0, %v1337
        %v1339 = vpop.f32.mrb[0].mxu0
        %v1340 = vadd.f32 0.0, %v1339
        %v1341 = vpop.f32.mrb[0].mxu0
        %v1342 = vadd.f32 0.0, %v1341
        %1343 = vdwg.mxu0
        %1344 = vmatprep.subr.bf16.mxu0 %v1254
        %1345 = vmatpush1.bf16.msra.mxu0 %v1253
        %1346 = vmatprep.subr.bf16.mxu0 %v1259
        %1347 = vmatpush1.bf16.msra.mxu0 %v1258
        %1348 = vmatprep.subr.bf16.mxu0 %v1264
        %1349 = vmatpush1.bf16.msra.mxu0 %v1263
        %1350 = vmatprep.subr.bf16.mxu0 %v1269
        %1351 = vmatpush1.bf16.msra.mxu0 %v1268
        %1352 = vmatprep.subr.bf16.mxu0 %v1274
        %1353 = vmatpush1.bf16.msra.mxu0 %v1273
        %1354 = vmatprep.subr.bf16.mxu0 0
        %1355 = vmatpush1.bf16.msra.mxu0 0
        %1356 = vmatprep.subr.bf16.mxu0 0
        %1357 = vmatpush1.bf16.msra.mxu0 0
        %1358 = vmatprep.subr.bf16.mxu0 0
        %1359 = vmatpush1.bf16.msra.mxu0 0
        %1360 = vmatprep.subr.bf16.mxu0 0
        %1361 = vmatpush1.bf16.msra.mxu0 0
        %1362 = vmatprep.subr.bf16.mxu0 0
        %1363 = vmatpush1.bf16.msra.mxu0 0
        %1364 = vmatprep.subr.bf16.mxu0 0
        %1365 = vmatpush1.bf16.msra.mxu0 0
        %1366 = vmatprep.subr.bf16.mxu0 0
        %1367 = vmatpush1.bf16.msra.mxu0 0
        %1368 = vmatprep.subr.bf16.mxu0 0
        %1369 = vmatpush1.bf16.msra.mxu0 0
        %1370 = vmatprep.subr.bf16.mxu0 0
        %1371 = vmatpush1.bf16.msra.mxu0 0
        %1372 = vmatprep.subr.bf16.mxu0 0
        %1373 = vmatpush1.bf16.msra.mxu0 0
        %1374 = vmatprep.subr.bf16.mxu0 0
        %1375 = vmatpush1.bf16.msra.mxu0 0
        %1376 = vmatprep.mubr.bf16.mxu0 0
        %1377 = vmatmul.mubr.bf16.gmra.mrb[0].mxu0 %v673
        %v1378 = vpop.f32.mrb[0].mxu0
        %v1379 = vadd.f32 0.0, %v1378
        %v1380 = vpop.f32.mrb[0].mxu0
        %v1381 = vadd.f32 0.0, %v1380
        %v1382 = vpop.f32.mrb[0].mxu0
        %v1383 = vadd.f32 0.0, %v1382
        %v1384 = vpop.f32.mrb[0].mxu0
        %v1385 = vadd.f32 0.0, %v1384
        %1386 = vdwg.mxu0
        %1387 = vmatprep.subr.bf16.mxu0 0
        %1388 = vmatpush1.bf16.msra.mxu0 %v1255
        %1389 = vmatprep.subr.bf16.mxu0 0
        %1390 = vmatpush1.bf16.msra.mxu0 %v1260
        %1391 = vmatprep.subr.bf16.mxu0 0
        %1392 = vmatpush1.bf16.msra.mxu0 %v1265
        %1393 = vmatprep.subr.bf16.mxu0 0
        %1394 = vmatpush1.bf16.msra.mxu0 %v1270
        %1395 = vmatprep.subr.bf16.mxu0 0
        %1396 = vmatpush1.bf16.msra.mxu0 %v1275
        %1397 = vmatprep.subr.bf16.mxu0 0
        %1398 = vmatpush1.bf16.msra.mxu0 0
        %1399 = vmatprep.subr.bf16.mxu0 0
        %1400 = vmatpush1.bf16.msra.mxu0 0
        %1401 = vmatprep.subr.bf16.mxu0 0
        %1402 = vmatpush1.bf16.msra.mxu0 0
        %1403 = vmatprep.subr.bf16.mxu0 0
        %1404 = vmatpush1.bf16.msra.mxu0 0
        %1405 = vmatprep.subr.bf16.mxu0 0
        %1406 = vmatpush1.bf16.msra.mxu0 0
        %1407 = vmatprep.subr.bf16.mxu0 0
        %1408 = vmatpush1.bf16.msra.mxu0 0
        %1409 = vmatprep.subr.bf16.mxu0 0
        %1410 = vmatpush1.bf16.msra.mxu0 0
        %1411 = vmatprep.subr.bf16.mxu0 0
        %1412 = vmatpush1.bf16.msra.mxu0 0
        %1413 = vmatprep.subr.bf16.mxu0 0
        %1414 = vmatpush1.bf16.msra.mxu0 0
        %1415 = vmatprep.subr.bf16.mxu0 0
        %1416 = vmatpush1.bf16.msra.mxu0 0
        %1417 = vmatprep.subr.bf16.mxu0 0
        %1418 = vmatpush1.bf16.msra.mxu0 0
        %1419 = vmatprep.mubr.bf16.mxu0 0
        %1420 = vmatmul.mubr.bf16.gmra.mrb[0].mxu0 %v673
        %v1421 = vpop.f32.mrb[0].mxu0
        %v1422 = vadd.f32 0.0, %v1421
        %v1423 = vpop.f32.mrb[0].mxu0
        %v1424 = vpop.f32.mrb[0].mxu0
        %v1425 = vadd.f32 0.0, %v1424
        %v1426 = vpop.f32.mrb[0].mxu0
        %1427 = vdwg.mxu0
        %v1428 = vmul.f32 %v1336, %v487
        %v1429 = vmul.f32 %v1338, %v487
        %v1430 = vmul.f32 %v1379, %v487
        %v1431 = vmul.f32 %v1381, %v487
        %v1432 = vmul.f32 %v1422, %v487
        %v1433 = vmul.f32 %v1340, %v492
        %v1434 = vmul.f32 %v1342, %v492
        %v1435 = vmul.f32 %v1383, %v492
        %v1436 = vmul.f32 %v1385, %v492
        %v1437 = vmul.f32 %v1425, %v492
        %v1438 = vadd.f32 %v1428, %v499
        %v1439 = vadd.f32 %v1429, %v499
        %v1440 = vadd.f32 %v1430, %v499
        %v1441 = vadd.f32 %v1431, %v499
        %v1442 = vadd.f32 %v1432, %v499
        %v1443 = vadd.f32 %v1433, %v504
        %v1444 = vadd.f32 %v1434, %v504
        %v1445 = vadd.f32 %v1435, %v504
        %v1446 = vadd.f32 %v1436, %v504
        %v1447 = vadd.f32 %v1437, %v504
        %v1448 = vmax.f32 %v1130, %v1438
        %v1449 = vmax.f32 %v1131, %v1439
        %v1450 = vmax.f32 %v1132, %v1440
        %v1451 = vmax.f32 %v1133, %v1441
        %v1452 = vmax.f32 %v1134, %v1442
        %v1453 = vmax.f32 %v1135, %v1443
        %v1454 = vmax.f32 %v1136, %v1444
        %v1455 = vmax.f32 %v1137, %v1445
        %v1456 = vmax.f32 %v1138, %v1446
        %v1457 = vmax.f32 %v1139, %v1447
        %s1458 = scalar_lea.vmem %s455, 600 [#allocation2]
        %v1459 = vld [vmem:[%s1458] sm:$0xff]
        %v1460 = vld [vmem:[%s1458 + $0x8] sm:$0xff]
        %v1461 = vld [vmem:[%s1458 + $0x10] sm:$0xf]
        %v1462 = vld [vmem:[%s1458 + $0x14] sm:$0xff]
        %v1463 = vld [vmem:[%s1458 + $0x1c] sm:$0xff]
        %v1464 = vld [vmem:[%s1458 + $0x24] sm:$0xf]
        %v1465 = vld [vmem:[%s1458 + $0x28] sm:$0xff]
        %v1466 = vld [vmem:[%s1458 + $0x30] sm:$0xff]
        %v1467 = vld [vmem:[%s1458 + $0x38] sm:$0xf]
        %v1468 = vld [vmem:[%s1458 + $0x3c] sm:$0xff]
        %v1469 = vld [vmem:[%s1458 + $0x44] sm:$0xff]
        %v1470 = vld [vmem:[%s1458 + $0x4c] sm:$0xf]
        %v1471 = vld [vmem:[%s1458 + $0x50] sm:$0xff]
        %v1472 = vld [vmem:[%s1458 + $0x58] sm:$0xff]
        %v1473 = vld [vmem:[%s1458 + $0x60] sm:$0xf]
        %v1474 = vld [vmem:[%s1458 + $0x64] sm:$0xff]
        %v1475 = vld [vmem:[%s1458 + $0x6c] sm:$0xff]
        %v1476 = vld [vmem:[%s1458 + $0x74] sm:$0xf]
        %v1477 = vld [vmem:[%s1458 + $0x78] sm:$0xff]
        %v1478 = vld [vmem:[%s1458 + $0x80] sm:$0xff]
        %v1479 = vld [vmem:[%s1458 + $0x88] sm:$0xf]
        %v1480 = vld [vmem:[%s1458 + $0x8c] sm:$0xff]
        %v1481 = vld [vmem:[%s1458 + $0x94] sm:$0xff]
        %v1482 = vld [vmem:[%s1458 + $0x9c] sm:$0xf]
        %v1483 = vld [vmem:[%s1458 + $0xa0] sm:$0xff]
        %v1484 = vld [vmem:[%s1458 + $0xa8] sm:$0xff]
        %v1485 = vld [vmem:[%s1458 + $0xb0] sm:$0xf]
        %v1486 = vld [vmem:[%s1458 + $0xb4] sm:$0xff]
        %v1487 = vld [vmem:[%s1458 + $0xbc] sm:$0xff]
        %v1488 = vld [vmem:[%s1458 + $0xc4] sm:$0xf]
        %v1519 = vunpack.c.l.b16 %v1459
        %v1520 = vunpack.c.h.b16 %v1459
        %v1521 = vunpack.c.l.b16 %v1460
        %v1522 = vunpack.c.h.b16 %v1460
        %v1523 = vunpack.c.l.b16 %v1461
        %v1524 = vunpack.c.l.b16 %v1462
        %v1525 = vunpack.c.h.b16 %v1462
        %v1526 = vunpack.c.l.b16 %v1463
        %v1527 = vunpack.c.h.b16 %v1463
        %v1528 = vunpack.c.l.b16 %v1464
        %v1529 = vunpack.c.l.b16 %v1465
        %v1530 = vunpack.c.h.b16 %v1465
        %v1531 = vunpack.c.l.b16 %v1466
        %v1532 = vunpack.c.h.b16 %v1466
        %v1533 = vunpack.c.l.b16 %v1467
        %v1534 = vunpack.c.l.b16 %v1468
        %v1535 = vunpack.c.h.b16 %v1468
        %v1536 = vunpack.c.l.b16 %v1469
        %v1537 = vunpack.c.h.b16 %v1469
        %v1538 = vunpack.c.l.b16 %v1470
        %v1539 = vunpack.c.l.b16 %v1471
        %v1540 = vunpack.c.h.b16 %v1471
        %v1541 = vunpack.c.l.b16 %v1472
        %v1542 = vunpack.c.h.b16 %v1472
        %v1543 = vunpack.c.l.b16 %v1473
        %v1544 = vunpack.c.l.b16 %v1474
        %v1545 = vunpack.c.h.b16 %v1474
        %v1546 = vunpack.c.l.b16 %v1475
        %v1547 = vunpack.c.h.b16 %v1475
        %v1548 = vunpack.c.l.b16 %v1476
        %v1549 = vunpack.c.l.b16 %v1477
        %v1550 = vunpack.c.h.b16 %v1477
        %v1551 = vunpack.c.l.b16 %v1478
        %v1552 = vunpack.c.h.b16 %v1478
        %v1553 = vunpack.c.l.b16 %v1479
        %v1554 = vunpack.c.l.b16 %v1480
        %v1555 = vunpack.c.h.b16 %v1480
        %v1556 = vunpack.c.l.b16 %v1481
        %v1557 = vunpack.c.h.b16 %v1481
        %v1558 = vunpack.c.l.b16 %v1482
        %v1559 = vunpack.c.l.b16 %v1483
        %v1560 = vunpack.c.h.b16 %v1483
        %v1561 = vunpack.c.l.b16 %v1484
        %v1562 = vunpack.c.h.b16 %v1484
        %v1563 = vunpack.c.l.b16 %v1485
        %v1564 = vunpack.c.l.b16 %v1486
        %v1565 = vunpack.c.h.b16 %v1486
        %v1566 = vunpack.c.l.b16 %v1487
        %v1567 = vunpack.c.h.b16 %v1487
        %v1568 = vunpack.c.l.b16 %v1488
        %v1569 = vpack.c.b16 %v1524, %v1519
        %v1570 = vpack.c.b16 %v1525, %v1520
        %v1571 = vpack.c.b16 %v1526, %v1521
        %v1572 = vpack.c.b16 %v1527, %v1522
        %v1573 = vpack.c.b16 %v1528, %v1523
        %v1574 = vpack.c.b16 %v1534, %v1529
        %v1575 = vpack.c.b16 %v1535, %v1530
        %v1576 = vpack.c.b16 %v1536, %v1531
        %v1577 = vpack.c.b16 %v1537, %v1532
        %v1578 = vpack.c.b16 %v1538, %v1533
        %v1579 = vpack.c.b16 %v1544, %v1539
        %v1580 = vpack.c.b16 %v1545, %v1540
        %v1581 = vpack.c.b16 %v1546, %v1541
        %v1582 = vpack.c.b16 %v1547, %v1542
        %v1583 = vpack.c.b16 %v1548, %v1543
        %v1584 = vpack.c.b16 %v1554, %v1549
        %v1585 = vpack.c.b16 %v1555, %v1550
        %v1586 = vpack.c.b16 %v1556, %v1551
        %v1587 = vpack.c.b16 %v1557, %v1552
        %v1588 = vpack.c.b16 %v1558, %v1553
        %v1589 = vpack.c.b16 %v1564, %v1559
        %v1590 = vpack.c.b16 %v1565, %v1560
        %v1591 = vpack.c.b16 %v1566, %v1561
        %v1592 = vpack.c.b16 %v1567, %v1562
        %v1593 = vpack.c.b16 %v1568, %v1563
        %1619 = vmatprep.subr.bf16.mxu0 %v1570
        %1620 = vmatpush1.bf16.msra.mxu0 %v1569
        %1621 = vmatprep.subr.bf16.mxu0 %v1575
        %1622 = vmatpush1.bf16.msra.mxu0 %v1574
        %1623 = vmatprep.subr.bf16.mxu0 %v1580
        %1624 = vmatpush1.bf16.msra.mxu0 %v1579
        %1625 = vmatprep.subr.bf16.mxu0 %v1585
        %1626 = vmatpush1.bf16.msra.mxu0 %v1584
        %1627 = vmatprep.subr.bf16.mxu0 %v1590
        %1628 = vmatpush1.bf16.msra.mxu0 %v1589
        %1629 = vmatprep.subr.bf16.mxu0 0
        %1630 = vmatpush1.bf16.msra.mxu0 0
        %1631 = vmatprep.subr.bf16.mxu0 0
        %1632 = vmatpush1.bf16.msra.mxu0 0
        %1633 = vmatprep.subr.bf16.mxu0 0
        %1634 = vmatpush1.bf16.msra.mxu0 0
        %1635 = vmatprep.subr.bf16.mxu0 0
        %1636 = vmatpush1.bf16.msra.mxu0 0
        %1637 = vmatprep.subr.bf16.mxu0 0
        %1638 = vmatpush1.bf16.msra.mxu0 0
        %1639 = vmatprep.subr.bf16.mxu0 0
        %1640 = vmatpush1.bf16.msra.mxu0 0
        %1641 = vmatprep.subr.bf16.mxu0 0
        %1642 = vmatpush1.bf16.msra.mxu0 0
        %1643 = vmatprep.subr.bf16.mxu0 0
        %1644 = vmatpush1.bf16.msra.mxu0 0
        %1645 = vmatprep.subr.bf16.mxu0 0
        %1646 = vmatpush1.bf16.msra.mxu0 0
        %1647 = vmatprep.subr.bf16.mxu0 0
        %1648 = vmatpush1.bf16.msra.mxu0 0
        %1649 = vmatprep.subr.bf16.mxu0 0
        %1650 = vmatpush1.bf16.msra.mxu0 0
        %1651 = vmatprep.mubr.bf16.mxu0 0
        %1652 = vmatmul.mubr.bf16.gmra.mrb[0].mxu0 %v673
        %v1653 = vpop.f32.mrb[0].mxu0
        %v1654 = vadd.f32 0.0, %v1653
        %v1655 = vpop.f32.mrb[0].mxu0
        %v1656 = vadd.f32 0.0, %v1655
        %v1657 = vpop.f32.mrb[0].mxu0
        %v1658 = vadd.f32 0.0, %v1657
        %v1659 = vpop.f32.mrb[0].mxu0
        %v1660 = vadd.f32 0.0, %v1659
        %1661 = vdwg.mxu0
        %1662 = vmatprep.subr.bf16.mxu0 %v1572
        %1663 = vmatpush1.bf16.msra.mxu0 %v1571
        %1664 = vmatprep.subr.bf16.mxu0 %v1577
        %1665 = vmatpush1.bf16.msra.mxu0 %v1576
        %1666 = vmatprep.subr.bf16.mxu0 %v1582
        %1667 = vmatpush1.bf16.msra.mxu0 %v1581
        %1668 = vmatprep.subr.bf16.mxu0 %v1587
        %1669 = vmatpush1.bf16.msra.mxu0 %v1586
        %1670 = vmatprep.subr.bf16.mxu0 %v1592
        %1671 = vmatpush1.bf16.msra.mxu0 %v1591
        %1672 = vmatprep.subr.bf16.mxu0 0
        %1673 = vmatpush1.bf16.msra.mxu0 0
        %1674 = vmatprep.subr.bf16.mxu0 0
        %1675 = vmatpush1.bf16.msra.mxu0 0
        %1676 = vmatprep.subr.bf16.mxu0 0
        %1677 = vmatpush1.bf16.msra.mxu0 0
        %1678 = vmatprep.subr.bf16.mxu0 0
        %1679 = vmatpush1.bf16.msra.mxu0 0
        %1680 = vmatprep.subr.bf16.mxu0 0
        %1681 = vmatpush1.bf16.msra.mxu0 0
        %1682 = vmatprep.subr.bf16.mxu0 0
        %1683 = vmatpush1.bf16.msra.mxu0 0
        %1684 = vmatprep.subr.bf16.mxu0 0
        %1685 = vmatpush1.bf16.msra.mxu0 0
        %1686 = vmatprep.subr.bf16.mxu0 0
        %1687 = vmatpush1.bf16.msra.mxu0 0
        %1688 = vmatprep.subr.bf16.mxu0 0
        %1689 = vmatpush1.bf16.msra.mxu0 0
        %1690 = vmatprep.subr.bf16.mxu0 0
        %1691 = vmatpush1.bf16.msra.mxu0 0
        %1692 = vmatprep.subr.bf16.mxu0 0
        %1693 = vmatpush1.bf16.msra.mxu0 0
        %1694 = vmatprep.mubr.bf16.mxu0 0
        %1695 = vmatmul.mubr.bf16.gmra.mrb[0].mxu0 %v673
        %v1696 = vpop.f32.mrb[0].mxu0
        %v1697 = vadd.f32 0.0, %v1696
        %v1698 = vpop.f32.mrb[0].mxu0
        %v1699 = vadd.f32 0.0, %v1698
        %v1700 = vpop.f32.mrb[0].mxu0
        %v1701 = vadd.f32 0.0, %v1700
        %v1702 = vpop.f32.mrb[0].mxu0
        %v1703 = vadd.f32 0.0, %v1702
        %1704 = vdwg.mxu0
        %1705 = vmatprep.subr.bf16.mxu0 0
        %1706 = vmatpush1.bf16.msra.mxu0 %v1573
        %1707 = vmatprep.subr.bf16.mxu0 0
        %1708 = vmatpush1.bf16.msra.mxu0 %v1578
        %1709 = vmatprep.subr.bf16.mxu0 0
        %1710 = vmatpush1.bf16.msra.mxu0 %v1583
        %1711 = vmatprep.subr.bf16.mxu0 0
        %1712 = vmatpush1.bf16.msra.mxu0 %v1588
        %1713 = vmatprep.subr.bf16.mxu0 0
        %1714 = vmatpush1.bf16.msra.mxu0 %v1593
        %1715 = vmatprep.subr.bf16.mxu0 0
        %1716 = vmatpush1.bf16.msra.mxu0 0
        %1717 = vmatprep.subr.bf16.mxu0 0
        %1718 = vmatpush1.bf16.msra.mxu0 0
        %1719 = vmatprep.subr.bf16.mxu0 0
        %1720 = vmatpush1.bf16.msra.mxu0 0
        %1721 = vmatprep.subr.bf16.mxu0 0
        %1722 = vmatpush1.bf16.msra.mxu0 0
        %1723 = vmatprep.subr.bf16.mxu0 0
        %1724 = vmatpush1.bf16.msra.mxu0 0
        %1725 = vmatprep.subr.bf16.mxu0 0
        %1726 = vmatpush1.bf16.msra.mxu0 0
        %1727 = vmatprep.subr.bf16.mxu0 0
        %1728 = vmatpush1.bf16.msra.mxu0 0
        %1729 = vmatprep.subr.bf16.mxu0 0
        %1730 = vmatpush1.bf16.msra.mxu0 0
        %1731 = vmatprep.subr.bf16.mxu0 0
        %1732 = vmatpush1.bf16.msra.mxu0 0
        %1733 = vmatprep.subr.bf16.mxu0 0
        %1734 = vmatpush1.bf16.msra.mxu0 0
        %1735 = vmatprep.subr.bf16.mxu0 0
        %1736 = vmatpush1.bf16.msra.mxu0 0
        %1737 = vmatprep.mubr.bf16.mxu0 0
        %1738 = vmatmul.mubr.bf16.gmra.mrb[0].mxu0 %v673
        %v1739 = vpop.f32.mrb[0].mxu0
        %v1740 = vadd.f32 0.0, %v1739
        %v1741 = vpop.f32.mrb[0].mxu0
        %v1742 = vpop.f32.mrb[0].mxu0
        %v1743 = vadd.f32 0.0, %v1742
        %v1744 = vpop.f32.mrb[0].mxu0
        %1745 = vdwg.mxu0
        %v1746 = vmul.f32 %v1654, %v487
        %v1747 = vmul.f32 %v1656, %v487
        %v1748 = vmul.f32 %v1697, %v487
        %v1749 = vmul.f32 %v1699, %v487
        %v1750 = vmul.f32 %v1740, %v487
        %v1751 = vmul.f32 %v1658, %v492
        %v1752 = vmul.f32 %v1660, %v492
        %v1753 = vmul.f32 %v1701, %v492
        %v1754 = vmul.f32 %v1703, %v492
        %v1755 = vmul.f32 %v1743, %v492
        %v1756 = vadd.f32 %v1746, %v499
        %v1757 = vadd.f32 %v1747, %v499
        %v1758 = vadd.f32 %v1748, %v499
        %v1759 = vadd.f32 %v1749, %v499
        %v1760 = vadd.f32 %v1750, %v499
        %v1761 = vadd.f32 %v1751, %v504
        %v1762 = vadd.f32 %v1752, %v504
        %v1763 = vadd.f32 %v1753, %v504
        %v1764 = vadd.f32 %v1754, %v504
        %v1765 = vadd.f32 %v1755, %v504
        %v1766 = vmax.f32 %v1448, %v1756
        %v1767 = vmax.f32 %v1449, %v1757
        %v1768 = vmax.f32 %v1450, %v1758
        %v1769 = vmax.f32 %v1451, %v1759
        %v1770 = vmax.f32 %v1452, %v1760
        %v1771 = vmax.f32 %v1453, %v1761
        %v1772 = vmax.f32 %v1454, %v1762
        %v1773 = vmax.f32 %v1455, %v1763
        %v1774 = vmax.f32 %v1456, %v1764
        %v1775 = vmax.f32 %v1457, %v1765
        %v1776 = vmax.f32 %v1766, -60.0
        %v1777 = vmax.f32 %v1767, -60.0
        %v1778 = vmax.f32 %v1768, -60.0
        %v1779 = vmax.f32 %v1769, -60.0
        %v1780 = vmax.f32 %v1770, -60.0
        %v1781 = vmax.f32 %v1771, -60.0
        %v1782 = vmax.f32 %v1772, -60.0
        %v1783 = vmax.f32 %v1773, -60.0
        %v1784 = vmax.f32 %v1774, -60.0
        %v1785 = vmax.f32 %v1775, -60.0
        %v1786 = vsub.f32 0.0, %v1776
        %v1787 = vsub.f32 0.0, %v1777
        %v1788 = vsub.f32 0.0, %v1778
        %v1789 = vsub.f32 0.0, %v1779
        %v1790 = vsub.f32 0.0, %v1780
        %v1791 = vsub.f32 0.0, %v1781
        %v1792 = vsub.f32 0.0, %v1782
        %v1793 = vsub.f32 0.0, %v1783
        %v1794 = vsub.f32 0.0, %v1784
        %v1795 = vsub.f32 0.0, %v1785
        %v1796 = vmul.f32 %v1786, 1.442695
        %v1797 = vpow.pop %v1796
        %v1798 = vmul.f32 %v1787, 1.442695
        %v1799 = vpow.pop %v1798
        %v1800 = vmul.f32 %v1788, 1.442695
        %v1801 = vpow.pop %v1800
        %v1802 = vmul.f32 %v1789, 1.442695
        %v1803 = vpow.pop %v1802
        %v1804 = vmul.f32 %v1790, 1.442695
        %v1805 = vpow.pop %v1804
        %v1806 = vmul.f32 %v1791, 1.442695
        %v1807 = vpow.pop %v1806
        %v1808 = vmul.f32 %v1792, 1.442695
        %v1809 = vpow.pop %v1808
        %v1810 = vmul.f32 %v1793, 1.442695
        %v1811 = vpow.pop %v1810
        %v1812 = vmul.f32 %v1794, 1.442695
        %v1813 = vpow.pop %v1812
        %v1814 = vmul.f32 %v1795, 1.442695
        %v1815 = vpow.pop %v1814
        %v1816 = vadd.f32 %v1797, 1.0
        %v1817 = vadd.f32 %v1799, 1.0
        %v1818 = vadd.f32 %v1801, 1.0
        %v1819 = vadd.f32 %v1803, 1.0
        %v1820 = vadd.f32 %v1805, 1.0
        %v1821 = vadd.f32 %v1807, 1.0
        %v1822 = vadd.f32 %v1809, 1.0
        %v1823 = vadd.f32 %v1811, 1.0
        %v1824 = vadd.f32 %v1813, 1.0
        %v1825 = vadd.f32 %v1815, 1.0
        %v1826 = vrcp.pop %v1816
        %v1827 = vrcp.pop %v1817
        %v1828 = vrcp.pop %v1818
        %v1829 = vrcp.pop %v1819
        %v1830 = vrcp.pop %v1820
        %v1831 = vrcp.pop %v1821
        %v1832 = vrcp.pop %v1822
        %v1833 = vrcp.pop %v1823
        %v1834 = vrcp.pop %v1824
        %v1835 = vrcp.pop %v1825
        %v1836 = vpack.c.bf16 %v1831, %v1826
        %v1837 = vpack.c.bf16 %v1832, %v1827
        %v1838 = vpack.c.bf16 %v1833, %v1828
        %v1839 = vpack.c.bf16 %v1834, %v1829
        %v1840 = vpack.c.bf16 %v1835, %v1830
        %v1846 = vunpack.c.l.b16 %v1836
        %v1847 = vunpack.c.l.b16 %v1837
        %v1848 = vunpack.c.l.b16 %v1838
        %v1849 = vunpack.c.l.b16 %v1839
        %v1850 = vunpack.c.l.b16 %v1840
        %v1851 = vunpack.c.h.b16 %v1836
        %v1852 = vunpack.c.h.b16 %v1837
        %v1853 = vunpack.c.h.b16 %v1838
        %v1854 = vunpack.c.h.b16 %v1839
        %v1855 = vunpack.c.h.b16 %v1840
        %v1856 = vpack.c.b16 %v1847, %v1846
        %v1857 = vpack.c.b16 %v1849, %v1848
        %v1858 = vpack.c.b16 %v1850, %v1850
        %v1859 = vpack.c.b16 %v1852, %v1851
        %v1860 = vpack.c.b16 %v1854, %v1853
        %v1861 = vpack.c.b16 %v1855, %v1855
        %1868 = vst [vmem:[%s476] sm:$0xff] %v1856
        %1869 = vst [vmem:[%s476 + $0x8] sm:$0xff] %v1857
        %1870 = vst [vmem:[%s476 + $0x10] sm:$0xf] %v1858
        %1871 = vst [vmem:[%s476 + $0x14] sm:$0xff] %v1859
        %1872 = vst [vmem:[%s476 + $0x1c] sm:$0xff] %v1860
        %1873 = vst [vmem:[%s476 + $0x24] sm:$0xf] %v1861
        %s1874 = sand.u32 %s128, 1
        %s1875 = sand.u32 %s128, 1
        %s1876 = smul.addr %s1875, 40
        %s1877 = scalar_lea.vmem [#allocation3], %s1876
        // Predicated region
        $region63: #{cnn_forward.3} parent=57 // pred_check
          %p1878 = pneg %p138
        $region64: #{cnn_forward.3} parent=57 // pred_check_branch
          %1880 = sbr.rel (%p1878) target = $region66
        $region65: #{cnn_forward.3} parent=57 // pred_region
          %s1881 = smul.u32 5, %s20
          %s1882 = smul.addr %s19, 50
          %s1883 = sadd.s32 %s1881, %s1882
          %s1884 = smul.addr %s1883, 4
          %s1885 = scalar_lea.vmem %s4, %s1884
          // Predicated region
          $region67: #{cnn_forward.3} parent=65 // pred_check
            _
          $region68: #{cnn_forward.3} parent=65 // pred_check_branch
            %1887 = sbr.rel (0) target = $region70
          $region69: #{cnn_forward.3} parent=65 // pred_region
            // Predicated region
            $region71: #{cnn_forward.3} parent=69 // pred_check
              _
            $region72: #{cnn_forward.3} parent=69 // pred_check_branch
              %1889 = sbr.rel (0) target = $region74
            $region73: #{cnn_forward.3} parent=69 // pred_region
              %s1890 = scalar_lea.vmem %s1877, 16 [#allocation3]
              %s1891 = scalar_lea.vmem %s1885, 16
              loop: start=0, step=1, limit=1
              $region75: #{cnn_forward.3} parent=73 // loop_pre_header
                _
              $region76: #{cnn_forward.3} parent=73 // loop_header
                %s1893 = sphi 0, %s1897
                %p1894 = scmp.ge.s32.totalorder %s1893, 1
                %s1898 = sphi %s1877, %s1877
                %s1899 = sphi %s1885, %s1885
              $region77: #{cnn_forward.3} parent=73 // loop_header_branch
                %1896 = sbr.rel (%p1894) target = $region81
              $region78: #{cnn_forward.3} parent=73 // loop_body
                %v1900 = vld [vmem:[%s1898] sm:$0xff]
                %1901 = vst [vmem:[%s1899] sm:$0xff] %v1900
                %v1902 = vld [vmem:[%s1898 + $0x8] sm:$0xff]
                %1903 = vst [vmem:[%s1899 + $0x8] sm:$0xff] %v1902
                %v1904 = vld [vmem:[%s1898 + $0x14] sm:$0xff]
                %1905 = vst [vmem:[%s1899 + $0x64] sm:$0xff] %v1904
                %v1906 = vld [vmem:[%s1898 + $0x1c] sm:$0xff]
                %1907 = vst [vmem:[%s1899 + $0x6c] sm:$0xff] %v1906
              $region79: #{cnn_forward.3} parent=73 // loop_footer
                %s1897 = sadd.s32 1, %s1893
              $region80: #{cnn_forward.3} parent=73 // loop_footer_branch
                %1892 = sbr.rel target = $region76
              $region81: #{cnn_forward.3} parent=73 // loop_exit
                _
              loop: start=0, step=1, limit=1
              $region82: #{cnn_forward.3} parent=73 // loop_pre_header
                _
              $region83: #{cnn_forward.3} parent=73 // loop_header
                %s1910 = sphi 0, %s1914
                %p1911 = scmp.ge.s32.totalorder %s1910, 1
                %s1915 = sphi %s1890, %s1890
                %s1916 = sphi %s1891, %s1891
              $region84: #{cnn_forward.3} parent=73 // loop_header_branch
                %1913 = sbr.rel (%p1911) target = $region88
              $region85: #{cnn_forward.3} parent=73 // loop_body
                %v1917 = vld [vmem:[%s1915] sm:$0xf]
                %1918 = vst [vmem:[%s1916] sm:$0xf] %v1917
                %v1919 = vld [vmem:[%s1915 + $0x14] sm:$0xf]
                %1920 = vst [vmem:[%s1916 + $0x64] sm:$0xf] %v1919
              $region86: #{cnn_forward.3} parent=73 // loop_footer
                %s1914 = sadd.s32 1, %s1910
              $region87: #{cnn_forward.3} parent=73 // loop_footer_branch
                %1909 = sbr.rel target = $region83
              $region88: #{cnn_forward.3} parent=73 // loop_exit
                _
            $region74: #{cnn_forward.3} parent=69 // pred_fallthru
              _
          $region70: #{cnn_forward.3} parent=65 // pred_fallthru
            _
          %1921 = vnop
        $region66: #{cnn_forward.3} parent=57 // pred_fallthru
          _
      $region58: #{cnn_forward.3} parent=5 // pred_fallthru
        _
      %p1922 = scmp.le.s32.totalorder 2, %s10
      // Predicated region
      $region89: #{cnn_forward.3} parent=5 // pred_check
        %p1923 = pneg %p1922
      $region90: #{cnn_forward.3} parent=5 // pred_check_branch
        %1925 = sbr.rel (%p1923) target = $region92
      $region91: #{cnn_forward.3} parent=5 // pred_region
        %s1926 = ssub.s32 %s10, 2
        // Predicated region
        $region93: #{cnn_forward.3} parent=91 // pred_check
          %p1927 = pneg %p144
        $region94: #{cnn_forward.3} parent=91 // pred_check_branch
          %1929 = sbr.rel (%p1927) target = $region96
        $region95: #{cnn_forward.3} parent=91 // pred_region
          %s1930 = sand.u32 %s129, 1
          %s1931 = sand.u32 %s129, 1
          %s1932 = smul.addr %s1931, 40
          %s1933 = scalar_lea.vmem [#allocation3], %s1932
        $region96: #{cnn_forward.3} parent=91 // pred_fallthru
          _
      $region92: #{cnn_forward.3} parent=5 // pred_fallthru
        _
    $region6: #{cnn_forward.3} parent=1 // loop_footer
      %s14 = sadd.s32 1, %s10
    $region7: #{cnn_forward.3} parent=1 // loop_footer_branch
      %9 = sbr.rel target = $region3
    $region8: #{cnn_forward.3} parent=1 // loop_exit
      _

// kernel: cnn_forward.4
$region0: #{cnn_forward.4}
  #allocation0 [shape = 'u32[]', space=smem, size = 0x4, offset = 0x4, fixed_abs, tag = 'smem constant byte address 0x4 - core index']
  #allocation1 [shape = 'u32[144,128]{1,0:T(1,128)}', space=vmem, size = 0x12000, scoped, tag = 'internal scratch']
  %s0 = inlined_call_operand.vmem [shape: bf16[2,4,400,256], index: 0, kind: input, shape index: {}]
  %s1 = inlined_call_operand.vmem [shape: bf16[32,400], index: 1, kind: input, shape index: {}]
  %s2 = inlined_call_operand.vmem [shape: f32[32,1], index: 2, kind: input, shape index: {}]
  %s3 = inlined_call_operand.vmem [shape: f32[32,1], index: 3, kind: input, shape index: {}]
  %s4 = inlined_call_operand.vmem [shape: bf16[2,32,256], index: 4, kind: output, shape index: {}]
  %s5 = sld [smem:[#allocation0]]
  $region127: #{cnn_forward.4} parent=0
    _
  %s7 = ssub.s32 1, %s5
  %s8 = scalar_select 0, %s7, %s5
  $region1: #{cnn_forward.4} parent=0
    #allocation2 [shape = 'u8[819200]{0}', space=vmem, size = 0xc8000, scoped, tag = 'input window, operand 0']
    #allocation3 [shape = 'u8[16384]{0}', space=vmem, size = 0x4000, scoped, tag = 'output window, operand 0']
    loop: start=0, step=1, limit=6
    $region2: #{cnn_forward.4} parent=1 // loop_pre_header
      _
    $region3: #{cnn_forward.4} parent=1 // loop_header
      %s10 = sphi 0, %s14
      %p11 = scmp.ge.s32.totalorder %s10, 6
      %s17 = sphi 0, %s29
      %s18 = sphi 0, %s25
      %s19 = sphi 0, %s17
      %s20 = sphi 0, %s18
      %s21 = sphi 0, %s19
      %s22 = sphi 0, %s20
      %s34 = sphi 0, %s36
      %s37 = sphi 0, %s34
      %s38 = sphi 0, %s37
      %s54 = sphi 0, %s38
      %s58 = sphi 0, %s58
      %s60 = sphi 0, %s58
      %s61 = sphi 0, %s60
      %s75 = sphi 0, %s61
      %s79 = sphi 0, %s79
      %s81 = sphi 0, %s79
      %s82 = sphi 0, %s81
      %s96 = sphi 0, %s82
      %s100 = sphi 0, %s100
      %s102 = sphi 0, %s100
      %s103 = sphi 0, %s102
      %s117 = sphi 0, %s103
      %s125 = sphi 0, %s127
      %s128 = sphi 0, %s125
      %s129 = sphi 0, %s128
      %s145 = sphi 0, %s129
    $region4: #{cnn_forward.4} parent=1 // loop_header_branch
      %13 = sbr.rel (%p11) target = $region8
    $region5: #{cnn_forward.4} parent=1 // loop_body
      %s15 = ssub.s32 %s10, 1
      %s16 = ssub.s32 %s10, 2
      %s23 = sadd.s32 1, %s18
      %p24 = scmp.ge.s32.totalorder %s23, 2
      %s25 = scalar_select %p24, 0, %s23
      %s26 = sadd.s32 1, %s17
      %s27 = scalar_select %p24, %s26, %s17
      %p28 = scmp.ge.s32.totalorder %s27, 2
      %s29 = scalar_select %p28, 0, %s27
      %s30 = ssub.s32 %s17, %s29
      %s31 = ssub.s32 %s18, %s25
      %s32 = sor.u32 %s30, %s31
      %p33 = scmp.eq.s32.totalorder %s32, 0
      %s35 = sadd.s32 %s34, 1
      %s36 = scalar_select %p33, %s34, %s35
      %p39 = pneg %p33
      %p40 = scmp.eq.s32.totalorder %s10, 3
      %p41 = por %p39, %p40
      %p42 = scmp.ne.s32.totalorder %s34, %s37
      %p43 = scmp.eq.s32.totalorder %s10, 0
      %p44 = por %p42, %p43
      %p45 = scmp.ne.s32.totalorder %s34, %s37
      %p46 = scmp.eq.s32.totalorder %s15, 3
      %p47 = por %p45, %p46
      %p48 = scmp.ne.s32.totalorder %s37, %s38
      %p49 = scmp.eq.s32.totalorder %s15, 0
      %p50 = por %p48, %p49
      %p51 = scmp.ne.s32.totalorder %s37, %s38
      %p52 = scmp.eq.s32.totalorder %s16, 3
      %p53 = por %p51, %p52
      %p55 = scmp.ne.s32.totalorder %s38, %s54
      %p56 = scmp.eq.s32.totalorder %s16, 0
      %p57 = por %p55, %p56
      %s59 = sadd.s32 %s58, 1
      %p62 = scmp.eq.s32.totalorder %s10, 3
      %p63 = scmp.ne.s32.totalorder %s58, %s60
      %p64 = scmp.eq.s32.totalorder %s10, 0
      %p65 = por %p63, %p64
      %p66 = scmp.ne.s32.totalorder %s58, %s60
      %p67 = scmp.eq.s32.totalorder %s15, 3
      %p68 = por %p66, %p67
      %p69 = scmp.ne.s32.totalorder %s60, %s61
      %p70 = scmp.eq.s32.totalorder %s15, 0
      %p71 = por %p69, %p70
      %p72 = scmp.ne.s32.totalorder %s60, %s61
      %p73 = scmp.eq.s32.totalorder %s16, 3
      %p74 = por %p72, %p73
      %p76 = scmp.ne.s32.totalorder %s61, %s75
      %p77 = scmp.eq.s32.totalorder %s16, 0
      %p78 = por %p76, %p77
      %s80 = sadd.s32 %s79, 1
      %p83 = scmp.eq.s32.totalorder %s10, 3
      %p84 = scmp.ne.s32.totalorder %s79, %s81
      %p85 = scmp.eq.s32.totalorder %s10, 0
      %p86 = por %p84, %p85
      %p87 = scmp.ne.s32.totalorder %s79, %s81
      %p88 = scmp.eq.s32.totalorder %s15, 3
      %p89 = por %p87, %p88
      %p90 = scmp.ne.s32.totalorder %s81, %s82
      %p91 = scmp.eq.s32.totalorder %s15, 0
      %p92 = por %p90, %p91
      %p93 = scmp.ne.s32.totalorder %s81, %s82
      %p94 = scmp.eq.s32.totalorder %s16, 3
      %p95 = por %p93, %p94
      %p97 = scmp.ne.s32.totalorder %s82, %s96
      %p98 = scmp.eq.s32.totalorder %s16, 0
      %p99 = por %p97, %p98
      %s101 = sadd.s32 %s100, 1
      %p104 = scmp.eq.s32.totalorder %s10, 3
      %p105 = scmp.ne.s32.totalorder %s100, %s102
      %p106 = scmp.eq.s32.totalorder %s10, 0
      %p107 = por %p105, %p106
      %p108 = scmp.ne.s32.totalorder %s100, %s102
      %p109 = scmp.eq.s32.totalorder %s15, 3
      %p110 = por %p108, %p109
      %p111 = scmp.ne.s32.totalorder %s102, %s103
      %p112 = scmp.eq.s32.totalorder %s15, 0
      %p113 = por %p111, %p112
      %p114 = scmp.ne.s32.totalorder %s102, %s103
      %p115 = scmp.eq.s32.totalorder %s16, 3
      %p116 = por %p114, %p115
      %p118 = scmp.ne.s32.totalorder %s103, %s117
      %p119 = scmp.eq.s32.totalorder %s16, 0
      %p120 = por %p118, %p119
      %s121 = ssub.s32 %s17, %s29
      %s122 = ssub.s32 %s18, %s25
      %s123 = sor.u32 %s121, %s122
      %p124 = scmp.eq.s32.totalorder %s123, 0
      %s126 = sadd.s32 %s125, 1
      %s127 = scalar_select %p124, %s125, %s126
      %p130 = pneg %p124
      %p131 = scmp.eq.s32.totalorder %s10, 3
      %p132 = por %p130, %p131
      %p133 = scmp.ne.s32.totalorder %s125, %s128
      %p134 = scmp.eq.s32.totalorder %s10, 0
      %p135 = por %p133, %p134
      %p136 = scmp.ne.s32.totalorder %s125, %s128
      %p137 = scmp.eq.s32.totalorder %s15, 3
      %p138 = por %p136, %p137
      %p139 = scmp.ne.s32.totalorder %s128, %s129
      %p140 = scmp.eq.s32.totalorder %s15, 0
      %p141 = por %p139, %p140
      %p142 = scmp.ne.s32.totalorder %s128, %s129
      %p143 = scmp.eq.s32.totalorder %s16, 3
      %p144 = por %p142, %p143
      %p146 = scmp.ne.s32.totalorder %s129, %s145
      %p147 = scmp.eq.s32.totalorder %s16, 0
      %p148 = por %p146, %p147
      %p149 = scmp.le.s32.totalorder 1, %s10
      %p150 = scmp.lt.s32.totalorder %s10, 5
      %p151 = pnand %p149, %p150
      %p152 = pneg %p151
      // Predicated region
      $region9: #{cnn_forward.4} parent=5 // pred_check
        _
      $region10: #{cnn_forward.4} parent=5 // pred_check_branch
        %154 = sbr.rel (%p151) target = $region12
      $region11: #{cnn_forward.4} parent=5 // pred_region
        %s155 = ssub.s32 %s10, 1
        // Predicated region
        $region13: #{cnn_forward.4} parent=11 // pred_check
          %p156 = pneg %p71
        $region14: #{cnn_forward.4} parent=11 // pred_check_branch
          %158 = sbr.rel (%p156) target = $region16
        $region15: #{cnn_forward.4} parent=11 // pred_region
          _
        $region16: #{cnn_forward.4} parent=11 // pred_fallthru
          _
        // Predicated region
        $region17: #{cnn_forward.4} parent=11 // pred_check
          %p159 = pneg %p92
        $region18: #{cnn_forward.4} parent=11 // pred_check_branch
          %161 = sbr.rel (%p159) target = $region20
        $region19: #{cnn_forward.4} parent=11 // pred_region
          _
        $region20: #{cnn_forward.4} parent=11 // pred_fallthru
          _
        // Predicated region
        $region21: #{cnn_forward.4} parent=11 // pred_check
          %p162 = pneg %p113
        $region22: #{cnn_forward.4} parent=11 // pred_check_branch
          %164 = sbr.rel (%p162) target = $region24
        $region23: #{cnn_forward.4} parent=11 // pred_region
          _
        $region24: #{cnn_forward.4} parent=11 // pred_fallthru
          _
      $region12: #{cnn_forward.4} parent=5 // pred_fallthru
        _
      %p165 = scmp.lt.s32.totalorder %s10, 4
      // Predicated region
      $region25: #{cnn_forward.4} parent=5 // pred_check
        %p166 = pneg %p165
      $region26: #{cnn_forward.4} parent=5 // pred_check_branch
        %168 = sbr.rel (%p166) target = $region28
      $region27: #{cnn_forward.4} parent=5 // pred_region
        // Predicated region
        $region29: #{cnn_forward.4} parent=27 // pred_check
          %p169 = pneg %p44
        $region30: #{cnn_forward.4} parent=27 // pred_check_branch
          %171 = sbr.rel (%p169) target = $region32
        $region31: #{cnn_forward.4} parent=27 // pred_region
          %s172 = sand.u32 %s34, 1
          %s173 = sand.u32 %s34, 1
          %s174 = smul.addr %s173, 800
          %s175 = scalar_lea.vmem [#allocation2], %s174
          %s176 = smul.addr %s17, 400
          %s177 = sadd.s32 %s18, %s176
          %s178 = smul.addr %s177, 4
          %s179 = scalar_lea.vmem %s0, %s178
          // Predicated region
          $region33: #{cnn_forward.4} parent=31 // pred_check
            _
          $region34: #{cnn_forward.4} parent=31 // pred_check_branch
            %181 = sbr.rel (0) target = $region36
          $region35: #{cnn_forward.4} parent=31 // pred_region
            // Predicated region
            $region37: #{cnn_forward.4} parent=35 // pred_check
              _
            $region38: #{cnn_forward.4} parent=35 // pred_check_branch
              %183 = sbr.rel target = $region40
            $region39: #{cnn_forward.4} parent=35 // pred_region
              // Predicated region
              $region52: #{cnn_forward.4} parent=39 // pred_check
                _
              $region53: #{cnn_forward.4} parent=39 // pred_check_branch
                %596 = sbr.rel (0) target = $region55
              $region54: #{cnn_forward.4} parent=39 // pred_region
                loop: start=0, step=1, limit=1
                $region56: #{cnn_forward.4} parent=54 // loop_pre_header
                  _
                $region57: #{cnn_forward.4} parent=54 // loop_header
                  %s598 = sphi 0, %s602
                  %p599 = scmp.ge.s32.totalorder %s598, 1
                  %s603 = sphi %s179, %s179
                  %s604 = sphi %s175, %s175
                $region58: #{cnn_forward.4} parent=54 // loop_header_branch
                  %601 = sbr.rel (%p599) target = $region62
                $region59: #{cnn_forward.4} parent=54 // loop_body
                  _
                $region60: #{cnn_forward.4} parent=54 // loop_footer
                  %s602 = sadd.s32 1, %s598
                $region61: #{cnn_forward.4} parent=54 // loop_footer_branch
                  %597 = sbr.rel target = $region57
                $region62: #{cnn_forward.4} parent=54 // loop_exit
                  _
                loop: start=0, step=1, limit=1
                $region63: #{cnn_forward.4} parent=54 // loop_pre_header
                  _
                $region64: #{cnn_forward.4} parent=54 // loop_header
                  %s607 = sphi 0, %s611
                  %p608 = scmp.ge.s32.totalorder %s607, 1
                  %s612 = sphi %s179, %s179
                  %s613 = sphi %s175, %s175
                $region65: #{cnn_forward.4} parent=54 // loop_header_branch
                  %610 = sbr.rel (%p608) target = $region69
                $region66: #{cnn_forward.4} parent=54 // loop_body
                  %v614 = vld [vmem:[%s612] sm:$0xf]
                  %615 = vst [vmem:[%s613] sm:$0xf] %v614
                  %v616 = vld [vmem:[%s612 + $0x8] sm:$0xf]
                  %617 = vst [vmem:[%s613 + $0x4] sm:$0xf] %v616
                  %v618 = vld [vmem:[%s612 + $0x10] sm:$0xf]
                  %619 = vst [vmem:[%s613 + $0x8] sm:$0xf] %v618
                  %v620 = vld [vmem:[%s612 + $0x18] sm:$0xf]
                  %621 = vst [vmem:[%s613 + $0xc] sm:$0xf] %v620
                  %v622 = vld [vmem:[%s612 + $0x20] sm:$0xf]
                  %623 = vst [vmem:[%s613 + $0x10] sm:$0xf] %v622
                  %v624 = vld [vmem:[%s612 + $0x28] sm:$0xf]
                  %625 = vst [vmem:[%s613 + $0x14] sm:$0xf] %v624
                  %v626 = vld [vmem:[%s612 + $0x30] sm:$0xf]
                  %627 = vst [vmem:[%s613 + $0x18] sm:$0xf] %v626
                  %v628 = vld [vmem:[%s612 + $0x38] sm:$0xf]
                  %629 = vst [vmem:[%s613 + $0x1c] sm:$0xf] %v628
                  %v630 = vld [vmem:[%s612 + $0x40] sm:$0xf]
                  %631 = vst [vmem:[%s613 + $0x20] sm:$0xf] %v630
                  %v632 = vld [vmem:[%s612 + $0x48] sm:$0xf]
                  %633 = vst [vmem:[%s613 + $0x24] sm:$0xf] %v632
                  %v634 = vld [vmem:[%s612 + $0x50] sm:$0xf]
                  %635 = vst [vmem:[%s613 + $0x28] sm:$0xf] %v634
                  %v636 = vld [vmem:[%s612 + $0x58] sm:$0xf]
                  %637 = vst [vmem:[%s613 + $0x2c] sm:$0xf] %v636
                  %v638 = vld [vmem:[%s612 + $0x60] sm:$0xf]
                  %639 = vst [vmem:[%s613 + $0x30] sm:$0xf] %v638
                  %v640 = vld [vmem:[%s612 + $0x68] sm:$0xf]
                  %641 = vst [vmem:[%s613 + $0x34] sm:$0xf] %v640
                  %v642 = vld [vmem:[%s612 + $0x70] sm:$0xf]
                  %643 = vst [vmem:[%s613 + $0x38] sm:$0xf] %v642
                  %v644 = vld [vmem:[%s612 + $0x78] sm:$0xf]
                  %645 = vst [vmem:[%s613 + $0x3c] sm:$0xf] %v644
                  %v646 = vld [vmem:[%s612 + $0x80] sm:$0xf]
                  %647 = vst [vmem:[%s613 + $0x40] sm:$0xf] %v646
                  %v648 = vld [vmem:[%s612 + $0x88] sm:$0xf]
                  %649 = vst [vmem:[%s613 + $0x44] sm:$0xf] %v648
                  %v650 = vld [vmem:[%s612 + $0x90] sm:$0xf]
                  %651 = vst [vmem:[%s613 + $0x48] sm:$0xf] %v650
                  %v652 = vld [vmem:[%s612 + $0x98] sm:$0xf]
                  %653 = vst [vmem:[%s613 + $0x4c] sm:$0xf] %v652
                  %v654 = vld [vmem:[%s612 + $0xa0] sm:$0xf]
                  %655 = vst [vmem:[%s613 + $0x50] sm:$0xf] %v654
                  %v656 = vld [vmem:[%s612 + $0xa8] sm:$0xf]
                  %657 = vst [vmem:[%s613 + $0x54] sm:$0xf] %v656
                  %v658 = vld [vmem:[%s612 + $0xb0] sm:$0xf]
                  %659 = vst [vmem:[%s613 + $0x58] sm:$0xf] %v658
                  %v660 = vld [vmem:[%s612 + $0xb8] sm:$0xf]
                  %661 = vst [vmem:[%s613 + $0x5c] sm:$0xf] %v660
                  %v662 = vld [vmem:[%s612 + $0xc0] sm:$0xf]
                  %663 = vst [vmem:[%s613 + $0x60] sm:$0xf] %v662
                  %v664 = vld [vmem:[%s612 + $0xc8] sm:$0xf]
                  %665 = vst [vmem:[%s613 + $0x64] sm:$0xf] %v664
                  %v666 = vld [vmem:[%s612 + $0xd0] sm:$0xf]
                  %667 = vst [vmem:[%s613 + $0x68] sm:$0xf] %v666
                  %v668 = vld [vmem:[%s612 + $0xd8] sm:$0xf]
                  %669 = vst [vmem:[%s613 + $0x6c] sm:$0xf] %v668
                  %v670 = vld [vmem:[%s612 + $0xe0] sm:$0xf]
                  %671 = vst [vmem:[%s613 + $0x70] sm:$0xf] %v670
                  %v672 = vld [vmem:[%s612 + $0xe8] sm:$0xf]
                  %673 = vst [vmem:[%s613 + $0x74] sm:$0xf] %v672
                  %v674 = vld [vmem:[%s612 + $0xf0] sm:$0xf]
                  %675 = vst [vmem:[%s613 + $0x78] sm:$0xf] %v674
                  %v676 = vld [vmem:[%s612 + $0xf8] sm:$0xf]
                  %677 = vst [vmem:[%s613 + $0x7c] sm:$0xf] %v676
                  %v678 = vld [vmem:[%s612 + $0x100] sm:$0xf]
                  %679 = vst [vmem:[%s613 + $0x80] sm:$0xf] %v678
                  %v680 = vld [vmem:[%s612 + $0x108] sm:$0xf]
                  %681 = vst [vmem:[%s613 + $0x84] sm:$0xf] %v680
                  %v682 = vld [vmem:[%s612 + $0x110] sm:$0xf]
                  %683 = vst [vmem:[%s613 + $0x88] sm:$0xf] %v682
                  %v684 = vld [vmem:[%s612 + $0x118] sm:$0xf]
                  %685 = vst [vmem:[%s613 + $0x8c] sm:$0xf] %v684
                  %v686 = vld [vmem:[%s612 + $0x120] sm:$0xf]
                  %687 = vst [vmem:[%s613 + $0x90] sm:$0xf] %v686
                  %v688 = vld [vmem:[%s612 + $0x128] sm:$0xf]
                  %689 = vst [vmem:[%s613 + $0x94] sm:$0xf] %v688
                  %v690 = vld [vmem:[%s612 + $0x130] sm:$0xf]
                  %691 = vst [vmem:[%s613 + $0x98] sm:$0xf] %v690
                  %v692 = vld [vmem:[%s612 + $0x138] sm:$0xf]
                  %693 = vst [vmem:[%s613 + $0x9c] sm:$0xf] %v692
                  %v694 = vld [vmem:[%s612 + $0x140] sm:$0xf]
                  %695 = vst [vmem:[%s613 + $0xa0] sm:$0xf] %v694
                  %v696 = vld [vmem:[%s612 + $0x148] sm:$0xf]
                  %697 = vst [vmem:[%s613 + $0xa4] sm:$0xf] %v696
                  %v698 = vld [vmem:[%s612 + $0x150] sm:$0xf]
                  %699 = vst [vmem:[%s613 + $0xa8] sm:$0xf] %v698
                  %v700 = vld [vmem:[%s612 + $0x158] sm:$0xf]
                  %701 = vst [vmem:[%s613 + $0xac] sm:$0xf] %v700
                  %v702 = vld [vmem:[%s612 + $0x160] sm:$0xf]
                  %703 = vst [vmem:[%s613 + $0xb0] sm:$0xf] %v702
                  %v704 = vld [vmem:[%s612 + $0x168] sm:$0xf]
                  %705 = vst [vmem:[%s613 + $0xb4] sm:$0xf] %v704
                  %v706 = vld [vmem:[%s612 + $0x170] sm:$0xf]
                  %707 = vst [vmem:[%s613 + $0xb8] sm:$0xf] %v706
                  %v708 = vld [vmem:[%s612 + $0x178] sm:$0xf]
                  %709 = vst [vmem:[%s613 + $0xbc] sm:$0xf] %v708
                  %v710 = vld [vmem:[%s612 + $0x180] sm:$0xf]
                  %711 = vst [vmem:[%s613 + $0xc0] sm:$0xf] %v710
                  %v712 = vld [vmem:[%s612 + $0x188] sm:$0xf]
                  %713 = vst [vmem:[%s613 + $0xc4] sm:$0xf] %v712
                  %v714 = vld [vmem:[%s612 + $0x190] sm:$0xf]
                  %715 = vst [vmem:[%s613 + $0xc8] sm:$0xf] %v714
                  %v716 = vld [vmem:[%s612 + $0x198] sm:$0xf]
                  %717 = vst [vmem:[%s613 + $0xcc] sm:$0xf] %v716
                  %v718 = vld [vmem:[%s612 + $0x1a0] sm:$0xf]
                  %719 = vst [vmem:[%s613 + $0xd0] sm:$0xf] %v718
                  %v720 = vld [vmem:[%s612 + $0x1a8] sm:$0xf]
                  %721 = vst [vmem:[%s613 + $0xd4] sm:$0xf] %v720
                  %v722 = vld [vmem:[%s612 + $0x1b0] sm:$0xf]
                  %723 = vst [vmem:[%s613 + $0xd8] sm:$0xf] %v722
                  %v724 = vld [vmem:[%s612 + $0x1b8] sm:$0xf]
                  %725 = vst [vmem:[%s613 + $0xdc] sm:$0xf] %v724
                  %v726 = vld [vmem:[%s612 + $0x1c0] sm:$0xf]
                  %727 = vst [vmem:[%s613 + $0xe0] sm:$0xf] %v726
                  %v728 = vld [vmem:[%s612 + $0x1c8] sm:$0xf]
                  %729 = vst [vmem:[%s613 + $0xe4] sm:$0xf] %v728
                  %v730 = vld [vmem:[%s612 + $0x1d0] sm:$0xf]
                  %731 = vst [vmem:[%s613 + $0xe8] sm:$0xf] %v730
                  %v732 = vld [vmem:[%s612 + $0x1d8] sm:$0xf]
                  %733 = vst [vmem:[%s613 + $0xec] sm:$0xf] %v732
                  %v734 = vld [vmem:[%s612 + $0x1e0] sm:$0xf]
                  %735 = vst [vmem:[%s613 + $0xf0] sm:$0xf] %v734
                  %v736 = vld [vmem:[%s612 + $0x1e8] sm:$0xf]
                  %737 = vst [vmem:[%s613 + $0xf4] sm:$0xf] %v736
                  %v738 = vld [vmem:[%s612 + $0x1f0] sm:$0xf]
                  %739 = vst [vmem:[%s613 + $0xf8] sm:$0xf] %v738
                  %v740 = vld [vmem:[%s612 + $0x1f8] sm:$0xf]
                  %741 = vst [vmem:[%s613 + $0xfc] sm:$0xf] %v740
                  %v742 = vld [vmem:[%s612 + $0x200] sm:$0xf]
                  %743 = vst [vmem:[%s613 + $0x100] sm:$0xf] %v742
                  %v744 = vld [vmem:[%s612 + $0x208] sm:$0xf]
                  %745 = vst [vmem:[%s613 + $0x104] sm:$0xf] %v744
                  %v746 = vld [vmem:[%s612 + $0x210] sm:$0xf]
                  %747 = vst [vmem:[%s613 + $0x108] sm:$0xf] %v746
                  %v748 = vld [vmem:[%s612 + $0x218] sm:$0xf]
                  %749 = vst [vmem:[%s613 + $0x10c] sm:$0xf] %v748
                  %v750 = vld [vmem:[%s612 + $0x220] sm:$0xf]
                  %751 = vst [vmem:[%s613 + $0x110] sm:$0xf] %v750
                  %v752 = vld [vmem:[%s612 + $0x228] sm:$0xf]
                  %753 = vst [vmem:[%s613 + $0x114] sm:$0xf] %v752
                  %v754 = vld [vmem:[%s612 + $0x230] sm:$0xf]
                  %755 = vst [vmem:[%s613 + $0x118] sm:$0xf] %v754
                  %v756 = vld [vmem:[%s612 + $0x238] sm:$0xf]
                  %757 = vst [vmem:[%s613 + $0x11c] sm:$0xf] %v756
                  %v758 = vld [vmem:[%s612 + $0x240] sm:$0xf]
                  %759 = vst [vmem:[%s613 + $0x120] sm:$0xf] %v758
                  %v760 = vld [vmem:[%s612 + $0x248] sm:$0xf]
                  %761 = vst [vmem:[%s613 + $0x124] sm:$0xf] %v760
                  %v762 = vld [vmem:[%s612 + $0x250] sm:$0xf]
                  %763 = vst [vmem:[%s613 + $0x128] sm:$0xf] %v762
                  %v764 = vld [vmem:[%s612 + $0x258] sm:$0xf]
                  %765 = vst [vmem:[%s613 + $0x12c] sm:$0xf] %v764
                  %v766 = vld [vmem:[%s612 + $0x260] sm:$0xf]
                  %767 = vst [vmem:[%s613 + $0x130] sm:$0xf] %v766
                  %v768 = vld [vmem:[%s612 + $0x268] sm:$0xf]
                  %769 = vst [vmem:[%s613 + $0x134] sm:$0xf] %v768
                  %v770 = vld [vmem:[%s612 + $0x270] sm:$0xf]
                  %771 = vst [vmem:[%s613 + $0x138] sm:$0xf] %v770
                  %v772 = vld [vmem:[%s612 + $0x278] sm:$0xf]
                  %773 = vst [vmem:[%s613 + $0x13c] sm:$0xf] %v772
                  %v774 = vld [vmem:[%s612 + $0x280] sm:$0xf]
                  %775 = vst [vmem:[%s613 + $0x140] sm:$0xf] %v774
                  %v776 = vld [vmem:[%s612 + $0x288] sm:$0xf]
                  %777 = vst [vmem:[%s613 + $0x144] sm:$0xf] %v776
                  %v778 = vld [vmem:[%s612 + $0x290] sm:$0xf]
                  %779 = vst [vmem:[%s613 + $0x148] sm:$0xf] %v778
                  %v780 = vld [vmem:[%s612 + $0x298] sm:$0xf]
                  %781 = vst [vmem:[%s613 + $0x14c] sm:$0xf] %v780
                  %v782 = vld [vmem:[%s612 + $0x2a0] sm:$0xf]
                  %783 = vst [vmem:[%s613 + $0x150] sm:$0xf] %v782
                  %v784 = vld [vmem:[%s612 + $0x2a8] sm:$0xf]
                  %785 = vst [vmem:[%s613 + $0x154] sm:$0xf] %v784
                  %v786 = vld [vmem:[%s612 + $0x2b0] sm:$0xf]
                  %787 = vst [vmem:[%s613 + $0x158] sm:$0xf] %v786
                  %v788 = vld [vmem:[%s612 + $0x2b8] sm:$0xf]
                  %789 = vst [vmem:[%s613 + $0x15c] sm:$0xf] %v788
                  %v790 = vld [vmem:[%s612 + $0x2c0] sm:$0xf]
                  %791 = vst [vmem:[%s613 + $0x160] sm:$0xf] %v790
                  %v792 = vld [vmem:[%s612 + $0x2c8] sm:$0xf]
                  %793 = vst [vmem:[%s613 + $0x164] sm:$0xf] %v792
                  %v794 = vld [vmem:[%s612 + $0x2d0] sm:$0xf]
                  %795 = vst [vmem:[%s613 + $0x168] sm:$0xf] %v794
                  %v796 = vld [vmem:[%s612 + $0x2d8] sm:$0xf]
                  %797 = vst [vmem:[%s613 + $0x16c] sm:$0xf] %v796
                  %v798 = vld [vmem:[%s612 + $0x2e0] sm:$0xf]
                  %799 = vst [vmem:[%s613 + $0x170] sm:$0xf] %v798
                  %v800 = vld [vmem:[%s612 + $0x2e8] sm:$0xf]
                  %801 = vst [vmem:[%s613 + $0x174] sm:$0xf] %v800
                  %v802 = vld [vmem:[%s612 + $0x2f0] sm:$0xf]
                  %803 = vst [vmem:[%s613 + $0x178] sm:$0xf] %v802
                  %v804 = vld [vmem:[%s612 + $0x2f8] sm:$0xf]
                  %805 = vst [vmem:[%s613 + $0x17c] sm:$0xf] %v804
                  %v806 = vld [vmem:[%s612 + $0x300] sm:$0xf]
                  %807 = vst [vmem:[%s613 + $0x180] sm:$0xf] %v806
                  %v808 = vld [vmem:[%s612 + $0x308] sm:$0xf]
                  %809 = vst [vmem:[%s613 + $0x184] sm:$0xf] %v808
                  %v810 = vld [vmem:[%s612 + $0x310] sm:$0xf]
                  %811 = vst [vmem:[%s613 + $0x188] sm:$0xf] %v810
                  %v812 = vld [vmem:[%s612 + $0x318] sm:$0xf]
                  %813 = vst [vmem:[%s613 + $0x18c] sm:$0xf] %v812
                  %v814 = vld [vmem:[%s612 + $0x320] sm:$0xf]
                  %815 = vst [vmem:[%s613 + $0x190] sm:$0xf] %v814
                  %v816 = vld [vmem:[%s612 + $0x328] sm:$0xf]
                  %817 = vst [vmem:[%s613 + $0x194] sm:$0xf] %v816
                  %v818 = vld [vmem:[%s612 + $0x330] sm:$0xf]
                  %819 = vst [vmem:[%s613 + $0x198] sm:$0xf] %v818
                  %v820 = vld [vmem:[%s612 + $0x338] sm:$0xf]
                  %821 = vst [vmem:[%s613 + $0x19c] sm:$0xf] %v820
                  %v822 = vld [vmem:[%s612 + $0x340] sm:$0xf]
                  %823 = vst [vmem:[%s613 + $0x1a0] sm:$0xf] %v822
                  %v824 = vld [vmem:[%s612 + $0x348] sm:$0xf]
                  %825 = vst [vmem:[%s613 + $0x1a4] sm:$0xf] %v824
                  %v826 = vld [vmem:[%s612 + $0x350] sm:$0xf]
                  %827 = vst [vmem:[%s613 + $0x1a8] sm:$0xf] %v826
                  %v828 = vld [vmem:[%s612 + $0x358] sm:$0xf]
                  %829 = vst [vmem:[%s613 + $0x1ac] sm:$0xf] %v828
                  %v830 = vld [vmem:[%s612 + $0x360] sm:$0xf]
                  %831 = vst [vmem:[%s613 + $0x1b0] sm:$0xf] %v830
                  %v832 = vld [vmem:[%s612 + $0x368] sm:$0xf]
                  %833 = vst [vmem:[%s613 + $0x1b4] sm:$0xf] %v832
                  %v834 = vld [vmem:[%s612 + $0x370] sm:$0xf]
                  %835 = vst [vmem:[%s613 + $0x1b8] sm:$0xf] %v834
                  %v836 = vld [vmem:[%s612 + $0x378] sm:$0xf]
                  %837 = vst [vmem:[%s613 + $0x1bc] sm:$0xf] %v836
                  %v838 = vld [vmem:[%s612 + $0x380] sm:$0xf]
                  %839 = vst [vmem:[%s613 + $0x1c0] sm:$0xf] %v838
                  %v840 = vld [vmem:[%s612 + $0x388] sm:$0xf]
                  %841 = vst [vmem:[%s613 + $0x1c4] sm:$0xf] %v840
                  %v842 = vld [vmem:[%s612 + $0x390] sm:$0xf]
                  %843 = vst [vmem:[%s613 + $0x1c8] sm:$0xf] %v842
                  %v844 = vld [vmem:[%s612 + $0x398] sm:$0xf]
                  %845 = vst [vmem:[%s613 + $0x1cc] sm:$0xf] %v844
                  %v846 = vld [vmem:[%s612 + $0x3a0] sm:$0xf]
                  %847 = vst [vmem:[%s613 + $0x1d0] sm:$0xf] %v846
                  %v848 = vld [vmem:[%s612 + $0x3a8] sm:$0xf]
                  %849 = vst [vmem:[%s613 + $0x1d4] sm:$0xf] %v848
                  %v850 = vld [vmem:[%s612 + $0x3b0] sm:$0xf]
                  %851 = vst [vmem:[%s613 + $0x1d8] sm:$0xf] %v850
                  %v852 = vld [vmem:[%s612 + $0x3b8] sm:$0xf]
                  %853 = vst [vmem:[%s613 + $0x1dc] sm:$0xf] %v852
                  %v854 = vld [vmem:[%s612 + $0x3c0] sm:$0xf]
                  %855 = vst [vmem:[%s613 + $0x1e0] sm:$0xf] %v854
                  %v856 = vld [vmem:[%s612 + $0x3c8] sm:$0xf]
                  %857 = vst [vmem:[%s613 + $0x1e4] sm:$0xf] %v856
                  %v858 = vld [vmem:[%s612 + $0x3d0] sm:$0xf]
                  %859 = vst [vmem:[%s613 + $0x1e8] sm:$0xf] %v858
                  %v860 = vld [vmem:[%s612 + $0x3d8] sm:$0xf]
                  %861 = vst [vmem:[%s613 + $0x1ec] sm:$0xf] %v860
                  %v862 = vld [vmem:[%s612 + $0x3e0] sm:$0xf]
                  %863 = vst [vmem:[%s613 + $0x1f0] sm:$0xf] %v862
                  %v864 = vld [vmem:[%s612 + $0x3e8] sm:$0xf]
                  %865 = vst [vmem:[%s613 + $0x1f4] sm:$0xf] %v864
                  %v866 = vld [vmem:[%s612 + $0x3f0] sm:$0xf]
                  %867 = vst [vmem:[%s613 + $0x1f8] sm:$0xf] %v866
                  %v868 = vld [vmem:[%s612 + $0x3f8] sm:$0xf]
                  %869 = vst [vmem:[%s613 + $0x1fc] sm:$0xf] %v868
                  %v870 = vld [vmem:[%s612 + $0x400] sm:$0xf]
                  %871 = vst [vmem:[%s613 + $0x200] sm:$0xf] %v870
                  %v872 = vld [vmem:[%s612 + $0x408] sm:$0xf]
                  %873 = vst [vmem:[%s613 + $0x204] sm:$0xf] %v872
                  %v874 = vld [vmem:[%s612 + $0x410] sm:$0xf]
                  %875 = vst [vmem:[%s613 + $0x208] sm:$0xf] %v874
                  %v876 = vld [vmem:[%s612 + $0x418] sm:$0xf]
                  %877 = vst [vmem:[%s613 + $0x20c] sm:$0xf] %v876
                  %v878 = vld [vmem:[%s612 + $0x420] sm:$0xf]
                  %879 = vst [vmem:[%s613 + $0x210] sm:$0xf] %v878
                  %v880 = vld [vmem:[%s612 + $0x428] sm:$0xf]
                  %881 = vst [vmem:[%s613 + $0x214] sm:$0xf] %v880
                  %v882 = vld [vmem:[%s612 + $0x430] sm:$0xf]
                  %883 = vst [vmem:[%s613 + $0x218] sm:$0xf] %v882
                  %v884 = vld [vmem:[%s612 + $0x438] sm:$0xf]
                  %885 = vst [vmem:[%s613 + $0x21c] sm:$0xf] %v884
                  %v886 = vld [vmem:[%s612 + $0x440] sm:$0xf]
                  %887 = vst [vmem:[%s613 + $0x220] sm:$0xf] %v886
                  %v888 = vld [vmem:[%s612 + $0x448] sm:$0xf]
                  %889 = vst [vmem:[%s613 + $0x224] sm:$0xf] %v888
                  %v890 = vld [vmem:[%s612 + $0x450] sm:$0xf]
                  %891 = vst [vmem:[%s613 + $0x228] sm:$0xf] %v890
                  %v892 = vld [vmem:[%s612 + $0x458] sm:$0xf]
                  %893 = vst [vmem:[%s613 + $0x22c] sm:$0xf] %v892
                  %v894 = vld [vmem:[%s612 + $0x460] sm:$0xf]
                  %895 = vst [vmem:[%s613 + $0x230] sm:$0xf] %v894
                  %v896 = vld [vmem:[%s612 + $0x468] sm:$0xf]
                  %897 = vst [vmem:[%s613 + $0x234] sm:$0xf] %v896
                  %v898 = vld [vmem:[%s612 + $0x470] sm:$0xf]
                  %899 = vst [vmem:[%s613 + $0x238] sm:$0xf] %v898
                  %v900 = vld [vmem:[%s612 + $0x478] sm:$0xf]
                  %901 = vst [vmem:[%s613 + $0x23c] sm:$0xf] %v900
                  %v902 = vld [vmem:[%s612 + $0x480] sm:$0xf]
                  %903 = vst [vmem:[%s613 + $0x240] sm:$0xf] %v902
                  %v904 = vld [vmem:[%s612 + $0x488] sm:$0xf]
                  %905 = vst [vmem:[%s613 + $0x244] sm:$0xf] %v904
                  %v906 = vld [vmem:[%s612 + $0x490] sm:$0xf]
                  %907 = vst [vmem:[%s613 + $0x248] sm:$0xf] %v906
                  %v908 = vld [vmem:[%s612 + $0x498] sm:$0xf]
                  %909 = vst [vmem:[%s613 + $0x24c] sm:$0xf] %v908
                  %v910 = vld [vmem:[%s612 + $0x4a0] sm:$0xf]
                  %911 = vst [vmem:[%s613 + $0x250] sm:$0xf] %v910
                  %v912 = vld [vmem:[%s612 + $0x4a8] sm:$0xf]
                  %913 = vst [vmem:[%s613 + $0x254] sm:$0xf] %v912
                  %v914 = vld [vmem:[%s612 + $0x4b0] sm:$0xf]
                  %915 = vst [vmem:[%s613 + $0x258] sm:$0xf] %v914
                  %v916 = vld [vmem:[%s612 + $0x4b8] sm:$0xf]
                  %917 = vst [vmem:[%s613 + $0x25c] sm:$0xf] %v916
                  %v918 = vld [vmem:[%s612 + $0x4c0] sm:$0xf]
                  %919 = vst [vmem:[%s613 + $0x260] sm:$0xf] %v918
                  %v920 = vld [vmem:[%s612 + $0x4c8] sm:$0xf]
                  %921 = vst [vmem:[%s613 + $0x264] sm:$0xf] %v920
                  %v922 = vld [vmem:[%s612 + $0x4d0] sm:$0xf]
                  %923 = vst [vmem:[%s613 + $0x268] sm:$0xf] %v922
                  %v924 = vld [vmem:[%s612 + $0x4d8] sm:$0xf]
                  %925 = vst [vmem:[%s613 + $0x26c] sm:$0xf] %v924
                  %v926 = vld [vmem:[%s612 + $0x4e0] sm:$0xf]
                  %927 = vst [vmem:[%s613 + $0x270] sm:$0xf] %v926
                  %v928 = vld [vmem:[%s612 + $0x4e8] sm:$0xf]
                  %929 = vst [vmem:[%s613 + $0x274] sm:$0xf] %v928
                  %v930 = vld [vmem:[%s612 + $0x4f0] sm:$0xf]
                  %931 = vst [vmem:[%s613 + $0x278] sm:$0xf] %v930
                  %v932 = vld [vmem:[%s612 + $0x4f8] sm:$0xf]
                  %933 = vst [vmem:[%s613 + $0x27c] sm:$0xf] %v932
                  %v934 = vld [vmem:[%s612 + $0x500] sm:$0xf]
                  %935 = vst [vmem:[%s613 + $0x280] sm:$0xf] %v934
                  %v936 = vld [vmem:[%s612 + $0x508] sm:$0xf]
                  %937 = vst [vmem:[%s613 + $0x284] sm:$0xf] %v936
                  %v938 = vld [vmem:[%s612 + $0x510] sm:$0xf]
                  %939 = vst [vmem:[%s613 + $0x288] sm:$0xf] %v938
                  %v940 = vld [vmem:[%s612 + $0x518] sm:$0xf]
                  %941 = vst [vmem:[%s613 + $0x28c] sm:$0xf] %v940
                  %v942 = vld [vmem:[%s612 + $0x520] sm:$0xf]
                  %943 = vst [vmem:[%s613 + $0x290] sm:$0xf] %v942
                  %v944 = vld [vmem:[%s612 + $0x528] sm:$0xf]
                  %945 = vst [vmem:[%s613 + $0x294] sm:$0xf] %v944
                  %v946 = vld [vmem:[%s612 + $0x530] sm:$0xf]
                  %947 = vst [vmem:[%s613 + $0x298] sm:$0xf] %v946
                  %v948 = vld [vmem:[%s612 + $0x538] sm:$0xf]
                  %949 = vst [vmem:[%s613 + $0x29c] sm:$0xf] %v948
                  %v950 = vld [vmem:[%s612 + $0x540] sm:$0xf]
                  %951 = vst [vmem:[%s613 + $0x2a0] sm:$0xf] %v950
                  %v952 = vld [vmem:[%s612 + $0x548] sm:$0xf]
                  %953 = vst [vmem:[%s613 + $0x2a4] sm:$0xf] %v952
                  %v954 = vld [vmem:[%s612 + $0x550] sm:$0xf]
                  %955 = vst [vmem:[%s613 + $0x2a8] sm:$0xf] %v954
                  %v956 = vld [vmem:[%s612 + $0x558] sm:$0xf]
                  %957 = vst [vmem:[%s613 + $0x2ac] sm:$0xf] %v956
                  %v958 = vld [vmem:[%s612 + $0x560] sm:$0xf]
                  %959 = vst [vmem:[%s613 + $0x2b0] sm:$0xf] %v958
                  %v960 = vld [vmem:[%s612 + $0x568] sm:$0xf]
                  %961 = vst [vmem:[%s613 + $0x2b4] sm:$0xf] %v960
                  %v962 = vld [vmem:[%s612 + $0x570] sm:$0xf]
                  %963 = vst [vmem:[%s613 + $0x2b8] sm:$0xf] %v962
                  %v964 = vld [vmem:[%s612 + $0x578] sm:$0xf]
                  %965 = vst [vmem:[%s613 + $0x2bc] sm:$0xf] %v964
                  %v966 = vld [vmem:[%s612 + $0x580] sm:$0xf]
                  %967 = vst [vmem:[%s613 + $0x2c0] sm:$0xf] %v966
                  %v968 = vld [vmem:[%s612 + $0x588] sm:$0xf]
                  %969 = vst [vmem:[%s613 + $0x2c4] sm:$0xf] %v968
                  %v970 = vld [vmem:[%s612 + $0x590] sm:$0xf]
                  %971 = vst [vmem:[%s613 + $0x2c8] sm:$0xf] %v970
                  %v972 = vld [vmem:[%s612 + $0x598] sm:$0xf]
                  %973 = vst [vmem:[%s613 + $0x2cc] sm:$0xf] %v972
                  %v974 = vld [vmem:[%s612 + $0x5a0] sm:$0xf]
                  %975 = vst [vmem:[%s613 + $0x2d0] sm:$0xf] %v974
                  %v976 = vld [vmem:[%s612 + $0x5a8] sm:$0xf]
                  %977 = vst [vmem:[%s613 + $0x2d4] sm:$0xf] %v976
                  %v978 = vld [vmem:[%s612 + $0x5b0] sm:$0xf]
                  %979 = vst [vmem:[%s613 + $0x2d8] sm:$0xf] %v978
                  %v980 = vld [vmem:[%s612 + $0x5b8] sm:$0xf]
                  %981 = vst [vmem:[%s613 + $0x2dc] sm:$0xf] %v980
                  %v982 = vld [vmem:[%s612 + $0x5c0] sm:$0xf]
                  %983 = vst [vmem:[%s613 + $0x2e0] sm:$0xf] %v982
                  %v984 = vld [vmem:[%s612 + $0x5c8] sm:$0xf]
                  %985 = vst [vmem:[%s613 + $0x2e4] sm:$0xf] %v984
                  %v986 = vld [vmem:[%s612 + $0x5d0] sm:$0xf]
                  %987 = vst [vmem:[%s613 + $0x2e8] sm:$0xf] %v986
                  %v988 = vld [vmem:[%s612 + $0x5d8] sm:$0xf]
                  %989 = vst [vmem:[%s613 + $0x2ec] sm:$0xf] %v988
                  %v990 = vld [vmem:[%s612 + $0x5e0] sm:$0xf]
                  %991 = vst [vmem:[%s613 + $0x2f0] sm:$0xf] %v990
                  %v992 = vld [vmem:[%s612 + $0x5e8] sm:$0xf]
                  %993 = vst [vmem:[%s613 + $0x2f4] sm:$0xf] %v992
                  %v994 = vld [vmem:[%s612 + $0x5f0] sm:$0xf]
                  %995 = vst [vmem:[%s613 + $0x2f8] sm:$0xf] %v994
                  %v996 = vld [vmem:[%s612 + $0x5f8] sm:$0xf]
                  %997 = vst [vmem:[%s613 + $0x2fc] sm:$0xf] %v996
                  %v998 = vld [vmem:[%s612 + $0x600] sm:$0xf]
                  %999 = vst [vmem:[%s613 + $0x300] sm:$0xf] %v998
                  %v1000 = vld [vmem:[%s612 + $0x608] sm:$0xf]
                  %1001 = vst [vmem:[%s613 + $0x304] sm:$0xf] %v1000
                  %v1002 = vld [vmem:[%s612 + $0x610] sm:$0xf]
                  %1003 = vst [vmem:[%s613 + $0x308] sm:$0xf] %v1002
                  %v1004 = vld [vmem:[%s612 + $0x618] sm:$0xf]
                  %1005 = vst [vmem:[%s613 + $0x30c] sm:$0xf] %v1004
                  %v1006 = vld [vmem:[%s612 + $0x620] sm:$0xf]
                  %1007 = vst [vmem:[%s613 + $0x310] sm:$0xf] %v1006
                  %v1008 = vld [vmem:[%s612 + $0x628] sm:$0xf]
                  %1009 = vst [vmem:[%s613 + $0x314] sm:$0xf] %v1008
                  %v1010 = vld [vmem:[%s612 + $0x630] sm:$0xf]
                  %1011 = vst [vmem:[%s613 + $0x318] sm:$0xf] %v1010
                  %v1012 = vld [vmem:[%s612 + $0x638] sm:$0xf]
                  %1013 = vst [vmem:[%s613 + $0x31c] sm:$0xf] %v1012
                $region67: #{cnn_forward.4} parent=54 // loop_footer
                  %s611 = sadd.s32 1, %s607
                $region68: #{cnn_forward.4} parent=54 // loop_footer_branch
                  %606 = sbr.rel target = $region64
                $region69: #{cnn_forward.4} parent=54 // loop_exit
                  _
              $region55: #{cnn_forward.4} parent=39 // pred_fallthru
                _
            $region40: #{cnn_forward.4} parent=35 // pred_fallthru
              _
            // Predicated region
            $region41: #{cnn_forward.4} parent=35 // pred_check
              _
            $region42: #{cnn_forward.4} parent=35 // pred_check_branch
              %185 = sbr.rel (0) target = $region44
            $region43: #{cnn_forward.4} parent=35 // pred_region
              loop: start=0, step=1, limit=1
              $region45: #{cnn_forward.4} parent=43 // loop_pre_header
                _
              $region46: #{cnn_forward.4} parent=43 // loop_header
                %s188 = sphi 0, %s192
                %p189 = scmp.ge.s32.totalorder %s188, 1
                %s193 = sphi %s179, %s179
                %s194 = sphi %s175, %s175
              $region47: #{cnn_forward.4} parent=43 // loop_header_branch
                %191 = sbr.rel (%p189) target = $region51
              $region48: #{cnn_forward.4} parent=43 // loop_body
                %v195 = vld [vmem:[%s193] sm:$0xf]
                %196 = vst [vmem:[%s194] sm:$0xf] %v195
                %v197 = vld [vmem:[%s193 + $0x8] sm:$0xf]
                %198 = vst [vmem:[%s194 + $0x4] sm:$0xf] %v197
                %v199 = vld [vmem:[%s193 + $0x10] sm:$0xf]
                %200 = vst [vmem:[%s194 + $0x8] sm:$0xf] %v199
                %v201 = vld [vmem:[%s193 + $0x18] sm:$0xf]
                %202 = vst [vmem:[%s194 + $0xc] sm:$0xf] %v201
                %v203 = vld [vmem:[%s193 + $0x20] sm:$0xf]
                %204 = vst [vmem:[%s194 + $0x10] sm:$0xf] %v203
                %v205 = vld [vmem:[%s193 + $0x28] sm:$0xf]
                %206 = vst [vmem:[%s194 + $0x14] sm:$0xf] %v205
                %v207 = vld [vmem:[%s193 + $0x30] sm:$0xf]
                %208 = vst [vmem:[%s194 + $0x18] sm:$0xf] %v207
                %v209 = vld [vmem:[%s193 + $0x38] sm:$0xf]
                %210 = vst [vmem:[%s194 + $0x1c] sm:$0xf] %v209
                %v211 = vld [vmem:[%s193 + $0x40] sm:$0xf]
                %212 = vst [vmem:[%s194 + $0x20] sm:$0xf] %v211
                %v213 = vld [vmem:[%s193 + $0x48] sm:$0xf]
                %214 = vst [vmem:[%s194 + $0x24] sm:$0xf] %v213
                %v215 = vld [vmem:[%s193 + $0x50] sm:$0xf]
                %216 = vst [vmem:[%s194 + $0x28] sm:$0xf] %v215
                %v217 = vld [vmem:[%s193 + $0x58] sm:$0xf]
                %218 = vst [vmem:[%s194 + $0x2c] sm:$0xf] %v217
                %v219 = vld [vmem:[%s193 + $0x60] sm:$0xf]
                %220 = vst [vmem:[%s194 + $0x30] sm:$0xf] %v219
                %v221 = vld [vmem:[%s193 + $0x68] sm:$0xf]
                %222 = vst [vmem:[%s194 + $0x34] sm:$0xf] %v221
                %v223 = vld [vmem:[%s193 + $0x70] sm:$0xf]
                %224 = vst [vmem:[%s194 + $0x38] sm:$0xf] %v223
                %v225 = vld [vmem:[%s193 + $0x78] sm:$0xf]
                %226 = vst [vmem:[%s194 + $0x3c] sm:$0xf] %v225
                %v227 = vld [vmem:[%s193 + $0x80] sm:$0xf]
                %228 = vst [vmem:[%s194 + $0x40] sm:$0xf] %v227
                %v229 = vld [vmem:[%s193 + $0x88] sm:$0xf]
                %230 = vst [vmem:[%s194 + $0x44] sm:$0xf] %v229
                %v231 = vld [vmem:[%s193 + $0x90] sm:$0xf]
                %232 = vst [vmem:[%s194 + $0x48] sm:$0xf] %v231
                %v233 = vld [vmem:[%s193 + $0x98] sm:$0xf]
                %234 = vst [vmem:[%s194 + $0x4c] sm:$0xf] %v233
                %v235 = vld [vmem:[%s193 + $0xa0] sm:$0xf]
                %236 = vst [vmem:[%s194 + $0x50] sm:$0xf] %v235
                %v237 = vld [vmem:[%s193 + $0xa8] sm:$0xf]
                %238 = vst [vmem:[%s194 + $0x54] sm:$0xf] %v237
                %v239 = vld [vmem:[%s193 + $0xb0] sm:$0xf]
                %240 = vst [vmem:[%s194 + $0x58] sm:$0xf] %v239
                %v241 = vld [vmem:[%s193 + $0xb8] sm:$0xf]
                %242 = vst [vmem:[%s194 + $0x5c] sm:$0xf] %v241
                %v243 = vld [vmem:[%s193 + $0xc0] sm:$0xf]
                %244 = vst [vmem:[%s194 + $0x60] sm:$0xf] %v243
                %v245 = vld [vmem:[%s193 + $0xc8] sm:$0xf]
                %246 = vst [vmem:[%s194 + $0x64] sm:$0xf] %v245
                %v247 = vld [vmem:[%s193 + $0xd0] sm:$0xf]
                %248 = vst [vmem:[%s194 + $0x68] sm:$0xf] %v247
                %v249 = vld [vmem:[%s193 + $0xd8] sm:$0xf]
                %250 = vst [vmem:[%s194 + $0x6c] sm:$0xf] %v249
                %v251 = vld [vmem:[%s193 + $0xe0] sm:$0xf]
                %252 = vst [vmem:[%s194 + $0x70] sm:$0xf] %v251
                %v253 = vld [vmem:[%s193 + $0xe8] sm:$0xf]
                %254 = vst [vmem:[%s194 + $0x74] sm:$0xf] %v253
                %v255 = vld [vmem:[%s193 + $0xf0] sm:$0xf]
                %256 = vst [vmem:[%s194 + $0x78] sm:$0xf] %v255
                %v257 = vld [vmem:[%s193 + $0xf8] sm:$0xf]
                %258 = vst [vmem:[%s194 + $0x7c] sm:$0xf] %v257
                %v259 = vld [vmem:[%s193 + $0x100] sm:$0xf]
                %260 = vst [vmem:[%s194 + $0x80] sm:$0xf] %v259
                %v261 = vld [vmem:[%s193 + $0x108] sm:$0xf]
                %262 = vst [vmem:[%s194 + $0x84] sm:$0xf] %v261
                %v263 = vld [vmem:[%s193 + $0x110] sm:$0xf]
                %264 = vst [vmem:[%s194 + $0x88] sm:$0xf] %v263
                %v265 = vld [vmem:[%s193 + $0x118] sm:$0xf]
                %266 = vst [vmem:[%s194 + $0x8c] sm:$0xf] %v265
                %v267 = vld [vmem:[%s193 + $0x120] sm:$0xf]
                %268 = vst [vmem:[%s194 + $0x90] sm:$0xf] %v267
                %v269 = vld [vmem:[%s193 + $0x128] sm:$0xf]
                %270 = vst [vmem:[%s194 + $0x94] sm:$0xf] %v269
                %v271 = vld [vmem:[%s193 + $0x130] sm:$0xf]
                %272 = vst [vmem:[%s194 + $0x98] sm:$0xf] %v271
                %v273 = vld [vmem:[%s193 + $0x138] sm:$0xf]
                %274 = vst [vmem:[%s194 + $0x9c] sm:$0xf] %v273
                %v275 = vld [vmem:[%s193 + $0x140] sm:$0xf]
                %276 = vst [vmem:[%s194 + $0xa0] sm:$0xf] %v275
                %v277 = vld [vmem:[%s193 + $0x148] sm:$0xf]
                %278 = vst [vmem:[%s194 + $0xa4] sm:$0xf] %v277
                %v279 = vld [vmem:[%s193 + $0x150] sm:$0xf]
                %280 = vst [vmem:[%s194 + $0xa8] sm:$0xf] %v279
                %v281 = vld [vmem:[%s193 + $0x158] sm:$0xf]
                %282 = vst [vmem:[%s194 + $0xac] sm:$0xf] %v281
                %v283 = vld [vmem:[%s193 + $0x160] sm:$0xf]
                %284 = vst [vmem:[%s194 + $0xb0] sm:$0xf] %v283
                %v285 = vld [vmem:[%s193 + $0x168] sm:$0xf]
                %286 = vst [vmem:[%s194 + $0xb4] sm:$0xf] %v285
                %v287 = vld [vmem:[%s193 + $0x170] sm:$0xf]
                %288 = vst [vmem:[%s194 + $0xb8] sm:$0xf] %v287
                %v289 = vld [vmem:[%s193 + $0x178] sm:$0xf]
                %290 = vst [vmem:[%s194 + $0xbc] sm:$0xf] %v289
                %v291 = vld [vmem:[%s193 + $0x180] sm:$0xf]
                %292 = vst [vmem:[%s194 + $0xc0] sm:$0xf] %v291
                %v293 = vld [vmem:[%s193 + $0x188] sm:$0xf]
                %294 = vst [vmem:[%s194 + $0xc4] sm:$0xf] %v293
                %v295 = vld [vmem:[%s193 + $0x190] sm:$0xf]
                %296 = vst [vmem:[%s194 + $0xc8] sm:$0xf] %v295
                %v297 = vld [vmem:[%s193 + $0x198] sm:$0xf]
                %298 = vst [vmem:[%s194 + $0xcc] sm:$0xf] %v297
                %v299 = vld [vmem:[%s193 + $0x1a0] sm:$0xf]
                %300 = vst [vmem:[%s194 + $0xd0] sm:$0xf] %v299
                %v301 = vld [vmem:[%s193 + $0x1a8] sm:$0xf]
                %302 = vst [vmem:[%s194 + $0xd4] sm:$0xf] %v301
                %v303 = vld [vmem:[%s193 + $0x1b0] sm:$0xf]
                %304 = vst [vmem:[%s194 + $0xd8] sm:$0xf] %v303
                %v305 = vld [vmem:[%s193 + $0x1b8] sm:$0xf]
                %306 = vst [vmem:[%s194 + $0xdc] sm:$0xf] %v305
                %v307 = vld [vmem:[%s193 + $0x1c0] sm:$0xf]
                %308 = vst [vmem:[%s194 + $0xe0] sm:$0xf] %v307
                %v309 = vld [vmem:[%s193 + $0x1c8] sm:$0xf]
                %310 = vst [vmem:[%s194 + $0xe4] sm:$0xf] %v309
                %v311 = vld [vmem:[%s193 + $0x1d0] sm:$0xf]
                %312 = vst [vmem:[%s194 + $0xe8] sm:$0xf] %v311
                %v313 = vld [vmem:[%s193 + $0x1d8] sm:$0xf]
                %314 = vst [vmem:[%s194 + $0xec] sm:$0xf] %v313
                %v315 = vld [vmem:[%s193 + $0x1e0] sm:$0xf]
                %316 = vst [vmem:[%s194 + $0xf0] sm:$0xf] %v315
                %v317 = vld [vmem:[%s193 + $0x1e8] sm:$0xf]
                %318 = vst [vmem:[%s194 + $0xf4] sm:$0xf] %v317
                %v319 = vld [vmem:[%s193 + $0x1f0] sm:$0xf]
                %320 = vst [vmem:[%s194 + $0xf8] sm:$0xf] %v319
                %v321 = vld [vmem:[%s193 + $0x1f8] sm:$0xf]
                %322 = vst [vmem:[%s194 + $0xfc] sm:$0xf] %v321
                %v323 = vld [vmem:[%s193 + $0x200] sm:$0xf]
                %324 = vst [vmem:[%s194 + $0x100] sm:$0xf] %v323
                %v325 = vld [vmem:[%s193 + $0x208] sm:$0xf]
                %326 = vst [vmem:[%s194 + $0x104] sm:$0xf] %v325
                %v327 = vld [vmem:[%s193 + $0x210] sm:$0xf]
                %328 = vst [vmem:[%s194 + $0x108] sm:$0xf] %v327
                %v329 = vld [vmem:[%s193 + $0x218] sm:$0xf]
                %330 = vst [vmem:[%s194 + $0x10c] sm:$0xf] %v329
                %v331 = vld [vmem:[%s193 + $0x220] sm:$0xf]
                %332 = vst [vmem:[%s194 + $0x110] sm:$0xf] %v331
                %v333 = vld [vmem:[%s193 + $0x228] sm:$0xf]
                %334 = vst [vmem:[%s194 + $0x114] sm:$0xf] %v333
                %v335 = vld [vmem:[%s193 + $0x230] sm:$0xf]
                %336 = vst [vmem:[%s194 + $0x118] sm:$0xf] %v335
                %v337 = vld [vmem:[%s193 + $0x238] sm:$0xf]
                %338 = vst [vmem:[%s194 + $0x11c] sm:$0xf] %v337
                %v339 = vld [vmem:[%s193 + $0x240] sm:$0xf]
                %340 = vst [vmem:[%s194 + $0x120] sm:$0xf] %v339
                %v341 = vld [vmem:[%s193 + $0x248] sm:$0xf]
                %342 = vst [vmem:[%s194 + $0x124] sm:$0xf] %v341
                %v343 = vld [vmem:[%s193 + $0x250] sm:$0xf]
                %344 = vst [vmem:[%s194 + $0x128] sm:$0xf] %v343
                %v345 = vld [vmem:[%s193 + $0x258] sm:$0xf]
                %346 = vst [vmem:[%s194 + $0x12c] sm:$0xf] %v345
                %v347 = vld [vmem:[%s193 + $0x260] sm:$0xf]
                %348 = vst [vmem:[%s194 + $0x130] sm:$0xf] %v347
                %v349 = vld [vmem:[%s193 + $0x268] sm:$0xf]
                %350 = vst [vmem:[%s194 + $0x134] sm:$0xf] %v349
                %v351 = vld [vmem:[%s193 + $0x270] sm:$0xf]
                %352 = vst [vmem:[%s194 + $0x138] sm:$0xf] %v351
                %v353 = vld [vmem:[%s193 + $0x278] sm:$0xf]
                %354 = vst [vmem:[%s194 + $0x13c] sm:$0xf] %v353
                %v355 = vld [vmem:[%s193 + $0x280] sm:$0xf]
                %356 = vst [vmem:[%s194 + $0x140] sm:$0xf] %v355
                %v357 = vld [vmem:[%s193 + $0x288] sm:$0xf]
                %358 = vst [vmem:[%s194 + $0x144] sm:$0xf] %v357
                %v359 = vld [vmem:[%s193 + $0x290] sm:$0xf]
                %360 = vst [vmem:[%s194 + $0x148] sm:$0xf] %v359
                %v361 = vld [vmem:[%s193 + $0x298] sm:$0xf]
                %362 = vst [vmem:[%s194 + $0x14c] sm:$0xf] %v361
                %v363 = vld [vmem:[%s193 + $0x2a0] sm:$0xf]
                %364 = vst [vmem:[%s194 + $0x150] sm:$0xf] %v363
                %v365 = vld [vmem:[%s193 + $0x2a8] sm:$0xf]
                %366 = vst [vmem:[%s194 + $0x154] sm:$0xf] %v365
                %v367 = vld [vmem:[%s193 + $0x2b0] sm:$0xf]
                %368 = vst [vmem:[%s194 + $0x158] sm:$0xf] %v367
                %v369 = vld [vmem:[%s193 + $0x2b8] sm:$0xf]
                %370 = vst [vmem:[%s194 + $0x15c] sm:$0xf] %v369
                %v371 = vld [vmem:[%s193 + $0x2c0] sm:$0xf]
                %372 = vst [vmem:[%s194 + $0x160] sm:$0xf] %v371
                %v373 = vld [vmem:[%s193 + $0x2c8] sm:$0xf]
                %374 = vst [vmem:[%s194 + $0x164] sm:$0xf] %v373
                %v375 = vld [vmem:[%s193 + $0x2d0] sm:$0xf]
                %376 = vst [vmem:[%s194 + $0x168] sm:$0xf] %v375
                %v377 = vld [vmem:[%s193 + $0x2d8] sm:$0xf]
                %378 = vst [vmem:[%s194 + $0x16c] sm:$0xf] %v377
                %v379 = vld [vmem:[%s193 + $0x2e0] sm:$0xf]
                %380 = vst [vmem:[%s194 + $0x170] sm:$0xf] %v379
                %v381 = vld [vmem:[%s193 + $0x2e8] sm:$0xf]
                %382 = vst [vmem:[%s194 + $0x174] sm:$0xf] %v381
                %v383 = vld [vmem:[%s193 + $0x2f0] sm:$0xf]
                %384 = vst [vmem:[%s194 + $0x178] sm:$0xf] %v383
                %v385 = vld [vmem:[%s193 + $0x2f8] sm:$0xf]
                %386 = vst [vmem:[%s194 + $0x17c] sm:$0xf] %v385
                %v387 = vld [vmem:[%s193 + $0x300] sm:$0xf]
                %388 = vst [vmem:[%s194 + $0x180] sm:$0xf] %v387
                %v389 = vld [vmem:[%s193 + $0x308] sm:$0xf]
                %390 = vst [vmem:[%s194 + $0x184] sm:$0xf] %v389
                %v391 = vld [vmem:[%s193 + $0x310] sm:$0xf]
                %392 = vst [vmem:[%s194 + $0x188] sm:$0xf] %v391
                %v393 = vld [vmem:[%s193 + $0x318] sm:$0xf]
                %394 = vst [vmem:[%s194 + $0x18c] sm:$0xf] %v393
                %v395 = vld [vmem:[%s193 + $0x320] sm:$0xf]
                %396 = vst [vmem:[%s194 + $0x190] sm:$0xf] %v395
                %v397 = vld [vmem:[%s193 + $0x328] sm:$0xf]
                %398 = vst [vmem:[%s194 + $0x194] sm:$0xf] %v397
                %v399 = vld [vmem:[%s193 + $0x330] sm:$0xf]
                %400 = vst [vmem:[%s194 + $0x198] sm:$0xf] %v399
                %v401 = vld [vmem:[%s193 + $0x338] sm:$0xf]
                %402 = vst [vmem:[%s194 + $0x19c] sm:$0xf] %v401
                %v403 = vld [vmem:[%s193 + $0x340] sm:$0xf]
                %404 = vst [vmem:[%s194 + $0x1a0] sm:$0xf] %v403
                %v405 = vld [vmem:[%s193 + $0x348] sm:$0xf]
                %406 = vst [vmem:[%s194 + $0x1a4] sm:$0xf] %v405
                %v407 = vld [vmem:[%s193 + $0x350] sm:$0xf]
                %408 = vst [vmem:[%s194 + $0x1a8] sm:$0xf] %v407
                %v409 = vld [vmem:[%s193 + $0x358] sm:$0xf]
                %410 = vst [vmem:[%s194 + $0x1ac] sm:$0xf] %v409
                %v411 = vld [vmem:[%s193 + $0x360] sm:$0xf]
                %412 = vst [vmem:[%s194 + $0x1b0] sm:$0xf] %v411
                %v413 = vld [vmem:[%s193 + $0x368] sm:$0xf]
                %414 = vst [vmem:[%s194 + $0x1b4] sm:$0xf] %v413
                %v415 = vld [vmem:[%s193 + $0x370] sm:$0xf]
                %416 = vst [vmem:[%s194 + $0x1b8] sm:$0xf] %v415
                %v417 = vld [vmem:[%s193 + $0x378] sm:$0xf]
                %418 = vst [vmem:[%s194 + $0x1bc] sm:$0xf] %v417
                %v419 = vld [vmem:[%s193 + $0x380] sm:$0xf]
                %420 = vst [vmem:[%s194 + $0x1c0] sm:$0xf] %v419
                %v421 = vld [vmem:[%s193 + $0x388] sm:$0xf]
                %422 = vst [vmem:[%s194 + $0x1c4] sm:$0xf] %v421
                %v423 = vld [vmem:[%s193 + $0x390] sm:$0xf]
                %424 = vst [vmem:[%s194 + $0x1c8] sm:$0xf] %v423
                %v425 = vld [vmem:[%s193 + $0x398] sm:$0xf]
                %426 = vst [vmem:[%s194 + $0x1cc] sm:$0xf] %v425
                %v427 = vld [vmem:[%s193 + $0x3a0] sm:$0xf]
                %428 = vst [vmem:[%s194 + $0x1d0] sm:$0xf] %v427
                %v429 = vld [vmem:[%s193 + $0x3a8] sm:$0xf]
                %430 = vst [vmem:[%s194 + $0x1d4] sm:$0xf] %v429
                %v431 = vld [vmem:[%s193 + $0x3b0] sm:$0xf]
                %432 = vst [vmem:[%s194 + $0x1d8] sm:$0xf] %v431
                %v433 = vld [vmem:[%s193 + $0x3b8] sm:$0xf]
                %434 = vst [vmem:[%s194 + $0x1dc] sm:$0xf] %v433
                %v435 = vld [vmem:[%s193 + $0x3c0] sm:$0xf]
                %436 = vst [vmem:[%s194 + $0x1e0] sm:$0xf] %v435
                %v437 = vld [vmem:[%s193 + $0x3c8] sm:$0xf]
                %438 = vst [vmem:[%s194 + $0x1e4] sm:$0xf] %v437
                %v439 = vld [vmem:[%s193 + $0x3d0] sm:$0xf]
                %440 = vst [vmem:[%s194 + $0x1e8] sm:$0xf] %v439
                %v441 = vld [vmem:[%s193 + $0x3d8] sm:$0xf]
                %442 = vst [vmem:[%s194 + $0x1ec] sm:$0xf] %v441
                %v443 = vld [vmem:[%s193 + $0x3e0] sm:$0xf]
                %444 = vst [vmem:[%s194 + $0x1f0] sm:$0xf] %v443
                %v445 = vld [vmem:[%s193 + $0x3e8] sm:$0xf]
                %446 = vst [vmem:[%s194 + $0x1f4] sm:$0xf] %v445
                %v447 = vld [vmem:[%s193 + $0x3f0] sm:$0xf]
                %448 = vst [vmem:[%s194 + $0x1f8] sm:$0xf] %v447
                %v449 = vld [vmem:[%s193 + $0x3f8] sm:$0xf]
                %450 = vst [vmem:[%s194 + $0x1fc] sm:$0xf] %v449
                %v451 = vld [vmem:[%s193 + $0x400] sm:$0xf]
                %452 = vst [vmem:[%s194 + $0x200] sm:$0xf] %v451
                %v453 = vld [vmem:[%s193 + $0x408] sm:$0xf]
                %454 = vst [vmem:[%s194 + $0x204] sm:$0xf] %v453
                %v455 = vld [vmem:[%s193 + $0x410] sm:$0xf]
                %456 = vst [vmem:[%s194 + $0x208] sm:$0xf] %v455
                %v457 = vld [vmem:[%s193 + $0x418] sm:$0xf]
                %458 = vst [vmem:[%s194 + $0x20c] sm:$0xf] %v457
                %v459 = vld [vmem:[%s193 + $0x420] sm:$0xf]
                %460 = vst [vmem:[%s194 + $0x210] sm:$0xf] %v459
                %v461 = vld [vmem:[%s193 + $0x428] sm:$0xf]
                %462 = vst [vmem:[%s194 + $0x214] sm:$0xf] %v461
                %v463 = vld [vmem:[%s193 + $0x430] sm:$0xf]
                %464 = vst [vmem:[%s194 + $0x218] sm:$0xf] %v463
                %v465 = vld [vmem:[%s193 + $0x438] sm:$0xf]
                %466 = vst [vmem:[%s194 + $0x21c] sm:$0xf] %v465
                %v467 = vld [vmem:[%s193 + $0x440] sm:$0xf]
                %468 = vst [vmem:[%s194 + $0x220] sm:$0xf] %v467
                %v469 = vld [vmem:[%s193 + $0x448] sm:$0xf]
                %470 = vst [vmem:[%s194 + $0x224] sm:$0xf] %v469
                %v471 = vld [vmem:[%s193 + $0x450] sm:$0xf]
                %472 = vst [vmem:[%s194 + $0x228] sm:$0xf] %v471
                %v473 = vld [vmem:[%s193 + $0x458] sm:$0xf]
                %474 = vst [vmem:[%s194 + $0x22c] sm:$0xf] %v473
                %v475 = vld [vmem:[%s193 + $0x460] sm:$0xf]
                %476 = vst [vmem:[%s194 + $0x230] sm:$0xf] %v475
                %v477 = vld [vmem:[%s193 + $0x468] sm:$0xf]
                %478 = vst [vmem:[%s194 + $0x234] sm:$0xf] %v477
                %v479 = vld [vmem:[%s193 + $0x470] sm:$0xf]
                %480 = vst [vmem:[%s194 + $0x238] sm:$0xf] %v479
                %v481 = vld [vmem:[%s193 + $0x478] sm:$0xf]
                %482 = vst [vmem:[%s194 + $0x23c] sm:$0xf] %v481
                %v483 = vld [vmem:[%s193 + $0x480] sm:$0xf]
                %484 = vst [vmem:[%s194 + $0x240] sm:$0xf] %v483
                %v485 = vld [vmem:[%s193 + $0x488] sm:$0xf]
                %486 = vst [vmem:[%s194 + $0x244] sm:$0xf] %v485
                %v487 = vld [vmem:[%s193 + $0x490] sm:$0xf]
                %488 = vst [vmem:[%s194 + $0x248] sm:$0xf] %v487
                %v489 = vld [vmem:[%s193 + $0x498] sm:$0xf]
                %490 = vst [vmem:[%s194 + $0x24c] sm:$0xf] %v489
                %v491 = vld [vmem:[%s193 + $0x4a0] sm:$0xf]
                %492 = vst [vmem:[%s194 + $0x250] sm:$0xf] %v491
                %v493 = vld [vmem:[%s193 + $0x4a8] sm:$0xf]
                %494 = vst [vmem:[%s194 + $0x254] sm:$0xf] %v493
                %v495 = vld [vmem:[%s193 + $0x4b0] sm:$0xf]
                %496 = vst [vmem:[%s194 + $0x258] sm:$0xf] %v495
                %v497 = vld [vmem:[%s193 + $0x4b8] sm:$0xf]
                %498 = vst [vmem:[%s194 + $0x25c] sm:$0xf] %v497
                %v499 = vld [vmem:[%s193 + $0x4c0] sm:$0xf]
                %500 = vst [vmem:[%s194 + $0x260] sm:$0xf] %v499
                %v501 = vld [vmem:[%s193 + $0x4c8] sm:$0xf]
                %502 = vst [vmem:[%s194 + $0x264] sm:$0xf] %v501
                %v503 = vld [vmem:[%s193 + $0x4d0] sm:$0xf]
                %504 = vst [vmem:[%s194 + $0x268] sm:$0xf] %v503
                %v505 = vld [vmem:[%s193 + $0x4d8] sm:$0xf]
                %506 = vst [vmem:[%s194 + $0x26c] sm:$0xf] %v505
                %v507 = vld [vmem:[%s193 + $0x4e0] sm:$0xf]
                %508 = vst [vmem:[%s194 + $0x270] sm:$0xf] %v507
                %v509 = vld [vmem:[%s193 + $0x4e8] sm:$0xf]
                %510 = vst [vmem:[%s194 + $0x274] sm:$0xf] %v509
                %v511 = vld [vmem:[%s193 + $0x4f0] sm:$0xf]
                %512 = vst [vmem:[%s194 + $0x278] sm:$0xf] %v511
                %v513 = vld [vmem:[%s193 + $0x4f8] sm:$0xf]
                %514 = vst [vmem:[%s194 + $0x27c] sm:$0xf] %v513
                %v515 = vld [vmem:[%s193 + $0x500] sm:$0xf]
                %516 = vst [vmem:[%s194 + $0x280] sm:$0xf] %v515
                %v517 = vld [vmem:[%s193 + $0x508] sm:$0xf]
                %518 = vst [vmem:[%s194 + $0x284] sm:$0xf] %v517
                %v519 = vld [vmem:[%s193 + $0x510] sm:$0xf]
                %520 = vst [vmem:[%s194 + $0x288] sm:$0xf] %v519
                %v521 = vld [vmem:[%s193 + $0x518] sm:$0xf]
                %522 = vst [vmem:[%s194 + $0x28c] sm:$0xf] %v521
                %v523 = vld [vmem:[%s193 + $0x520] sm:$0xf]
                %524 = vst [vmem:[%s194 + $0x290] sm:$0xf] %v523
                %v525 = vld [vmem:[%s193 + $0x528] sm:$0xf]
                %526 = vst [vmem:[%s194 + $0x294] sm:$0xf] %v525
                %v527 = vld [vmem:[%s193 + $0x530] sm:$0xf]
                %528 = vst [vmem:[%s194 + $0x298] sm:$0xf] %v527
                %v529 = vld [vmem:[%s193 + $0x538] sm:$0xf]
                %530 = vst [vmem:[%s194 + $0x29c] sm:$0xf] %v529
                %v531 = vld [vmem:[%s193 + $0x540] sm:$0xf]
                %532 = vst [vmem:[%s194 + $0x2a0] sm:$0xf] %v531
                %v533 = vld [vmem:[%s193 + $0x548] sm:$0xf]
                %534 = vst [vmem:[%s194 + $0x2a4] sm:$0xf] %v533
                %v535 = vld [vmem:[%s193 + $0x550] sm:$0xf]
                %536 = vst [vmem:[%s194 + $0x2a8] sm:$0xf] %v535
                %v537 = vld [vmem:[%s193 + $0x558] sm:$0xf]
                %538 = vst [vmem:[%s194 + $0x2ac] sm:$0xf] %v537
                %v539 = vld [vmem:[%s193 + $0x560] sm:$0xf]
                %540 = vst [vmem:[%s194 + $0x2b0] sm:$0xf] %v539
                %v541 = vld [vmem:[%s193 + $0x568] sm:$0xf]
                %542 = vst [vmem:[%s194 + $0x2b4] sm:$0xf] %v541
                %v543 = vld [vmem:[%s193 + $0x570] sm:$0xf]
                %544 = vst [vmem:[%s194 + $0x2b8] sm:$0xf] %v543
                %v545 = vld [vmem:[%s193 + $0x578] sm:$0xf]
                %546 = vst [vmem:[%s194 + $0x2bc] sm:$0xf] %v545
                %v547 = vld [vmem:[%s193 + $0x580] sm:$0xf]
                %548 = vst [vmem:[%s194 + $0x2c0] sm:$0xf] %v547
                %v549 = vld [vmem:[%s193 + $0x588] sm:$0xf]
                %550 = vst [vmem:[%s194 + $0x2c4] sm:$0xf] %v549
                %v551 = vld [vmem:[%s193 + $0x590] sm:$0xf]
                %552 = vst [vmem:[%s194 + $0x2c8] sm:$0xf] %v551
                %v553 = vld [vmem:[%s193 + $0x598] sm:$0xf]
                %554 = vst [vmem:[%s194 + $0x2cc] sm:$0xf] %v553
                %v555 = vld [vmem:[%s193 + $0x5a0] sm:$0xf]
                %556 = vst [vmem:[%s194 + $0x2d0] sm:$0xf] %v555
                %v557 = vld [vmem:[%s193 + $0x5a8] sm:$0xf]
                %558 = vst [vmem:[%s194 + $0x2d4] sm:$0xf] %v557
                %v559 = vld [vmem:[%s193 + $0x5b0] sm:$0xf]
                %560 = vst [vmem:[%s194 + $0x2d8] sm:$0xf] %v559
                %v561 = vld [vmem:[%s193 + $0x5b8] sm:$0xf]
                %562 = vst [vmem:[%s194 + $0x2dc] sm:$0xf] %v561
                %v563 = vld [vmem:[%s193 + $0x5c0] sm:$0xf]
                %564 = vst [vmem:[%s194 + $0x2e0] sm:$0xf] %v563
                %v565 = vld [vmem:[%s193 + $0x5c8] sm:$0xf]
                %566 = vst [vmem:[%s194 + $0x2e4] sm:$0xf] %v565
                %v567 = vld [vmem:[%s193 + $0x5d0] sm:$0xf]
                %568 = vst [vmem:[%s194 + $0x2e8] sm:$0xf] %v567
                %v569 = vld [vmem:[%s193 + $0x5d8] sm:$0xf]
                %570 = vst [vmem:[%s194 + $0x2ec] sm:$0xf] %v569
                %v571 = vld [vmem:[%s193 + $0x5e0] sm:$0xf]
                %572 = vst [vmem:[%s194 + $0x2f0] sm:$0xf] %v571
                %v573 = vld [vmem:[%s193 + $0x5e8] sm:$0xf]
                %574 = vst [vmem:[%s194 + $0x2f4] sm:$0xf] %v573
                %v575 = vld [vmem:[%s193 + $0x5f0] sm:$0xf]
                %576 = vst [vmem:[%s194 + $0x2f8] sm:$0xf] %v575
                %v577 = vld [vmem:[%s193 + $0x5f8] sm:$0xf]
                %578 = vst [vmem:[%s194 + $0x2fc] sm:$0xf] %v577
                %v579 = vld [vmem:[%s193 + $0x600] sm:$0xf]
                %580 = vst [vmem:[%s194 + $0x300] sm:$0xf] %v579
                %v581 = vld [vmem:[%s193 + $0x608] sm:$0xf]
                %582 = vst [vmem:[%s194 + $0x304] sm:$0xf] %v581
                %v583 = vld [vmem:[%s193 + $0x610] sm:$0xf]
                %584 = vst [vmem:[%s194 + $0x308] sm:$0xf] %v583
                %v585 = vld [vmem:[%s193 + $0x618] sm:$0xf]
                %586 = vst [vmem:[%s194 + $0x30c] sm:$0xf] %v585
                %v587 = vld [vmem:[%s193 + $0x620] sm:$0xf]
                %588 = vst [vmem:[%s194 + $0x310] sm:$0xf] %v587
                %v589 = vld [vmem:[%s193 + $0x628] sm:$0xf]
                %590 = vst [vmem:[%s194 + $0x314] sm:$0xf] %v589
                %v591 = vld [vmem:[%s193 + $0x630] sm:$0xf]
                %592 = vst [vmem:[%s194 + $0x318] sm:$0xf] %v591
                %v593 = vld [vmem:[%s193 + $0x638] sm:$0xf]
                %594 = vst [vmem:[%s194 + $0x31c] sm:$0xf] %v593
              $region49: #{cnn_forward.4} parent=43 // loop_footer
                %s192 = sadd.s32 1, %s188
              $region50: #{cnn_forward.4} parent=43 // loop_footer_branch
                %187 = sbr.rel target = $region46
              $region51: #{cnn_forward.4} parent=43 // loop_exit
                _
            $region44: #{cnn_forward.4} parent=35 // pred_fallthru
              _
          $region36: #{cnn_forward.4} parent=31 // pred_fallthru
            _
          %1014 = vnop
        $region32: #{cnn_forward.4} parent=27 // pred_fallthru
          _
      $region28: #{cnn_forward.4} parent=5 // pred_fallthru
        _
      %p1015 = scmp.le.s32.totalorder 1, %s10
      %p1016 = scmp.lt.s32.totalorder %s10, 5
      %p1017 = pnand %p1015, %p1016
      %p1018 = pneg %p1017
      // Predicated region
      $region70: #{cnn_forward.4} parent=5 // pred_check
        _
      $region71: #{cnn_forward.4} parent=5 // pred_check_branch
        %1020 = sbr.rel (%p1017) target = $region73
      $region72: #{cnn_forward.4} parent=5 // pred_region
        %s1021 = ssub.s32 %s10, 1
        %s1022 = sand.u32 %s37, 1
        %s1023 = sand.u32 %s37, 1
        %s1024 = smul.addr %s1023, 800
        %s1025 = scalar_lea.vmem [#allocation2], %s1024
        // Predicated region
        $region74: #{cnn_forward.4} parent=72 // pred_check
          %p1026 = pneg %p50
        $region75: #{cnn_forward.4} parent=72 // pred_check_branch
          %1028 = sbr.rel (%p1026) target = $region77
        $region76: #{cnn_forward.4} parent=72 // pred_region
          _
        $region77: #{cnn_forward.4} parent=72 // pred_fallthru
          _
        %s1029 = sand.u32 %s37, 1
        %s1030 = sand.u32 %s37, 1
        %s1031 = smul.addr %s1030, 800
        %s1032 = scalar_lea.vmem [#allocation2], %s1031
        %p1033 = pneg %p50
        %p1034 = pneg %p47
        %p1035 = pneg %p71
        %p1036 = pneg %p68
        %p1037 = pneg %p92
        %p1038 = pneg %p89
        %p1039 = pneg %p113
        %p1040 = pneg %p110
        %p1041 = pneg %p141
        %p1042 = pneg %p138
        %s1043 = sand.u32 %s128, 1
        %s1044 = sand.u32 %s128, 1
        %s1045 = smul.addr %s1044, 16
        %s1046 = scalar_lea.vmem [#allocation3], %s1045
        %v1048 = vld [vmem:[%s1] sm:$0xff]
        %v1049 = vld [vmem:[%s1 + $0x8] sm:$0xff]
        %v1050 = vld [vmem:[%s1 + $0x10] sm:$0xff]
        %v1051 = vld [vmem:[%s1 + $0x18] sm:$0xff]
        %v1052 = vld [vmem:[%s1 + $0x20] sm:$0xff]
        %v1053 = vld [vmem:[%s1 + $0x28] sm:$0xff]
        %v1054 = vld [vmem:[%s1 + $0x30] sm:$0xff]
        %v1055 = vld [vmem:[%s1 + $0x38] sm:$0xff]
        %v1056 = vld [vmem:[%s2] sm:$0xff]
        %v1057 = vld [vmem:[%s2 + $0x8] sm:$0xff]
        %v1058 = vld [vmem:[%s2 + $0x10] sm:$0xff]
        %v1059 = vld [vmem:[%s2 + $0x18] sm:$0xff]
        %1061 = vset.pattern.permute.xlu0 0
        %1062 = vperm.xlu0 %1061, %v1056
        %v1063 = vpop.permute.xlu0 %1062
        %1066 = vset.pattern.permute.xlu0 0
        %1067 = vperm.xlu0 %1066, %v1057
        %v1068 = vpop.permute.xlu0 %1067
        %1071 = vset.pattern.permute.xlu0 0
        %1072 = vperm.xlu0 %1071, %v1058
        %v1073 = vpop.permute.xlu0 %1072
        %1076 = vset.pattern.permute.xlu0 0
        %1077 = vperm.xlu0 %1076, %v1059
        %v1078 = vpop.permute.xlu0 %1077
        %v1080 = vld [vmem:[%s3] sm:$0xff]
        %v1081 = vld [vmem:[%s3 + $0x8] sm:$0xff]
        %v1082 = vld [vmem:[%s3 + $0x10] sm:$0xff]
        %v1083 = vld [vmem:[%s3 + $0x18] sm:$0xff]
        %1085 = vset.pattern.permute.xlu0 0
        %1086 = vperm.xlu0 %1085, %v1080
        %v1087 = vpop.permute.xlu0 %1086
        %1090 = vset.pattern.permute.xlu0 0
        %1091 = vperm.xlu0 %1090, %v1081
        %v1092 = vpop.permute.xlu0 %1091
        %1095 = vset.pattern.permute.xlu0 0
        %1096 = vperm.xlu0 %1095, %v1082
        %v1097 = vpop.permute.xlu0 %1096
        %1100 = vset.pattern.permute.xlu0 0
        %1101 = vperm.xlu0 %1100, %v1083
        %v1102 = vpop.permute.xlu0 %1101
        %v1104 = vld [vmem:[%s1025] sm:$0xf]
        %v1105 = vld [vmem:[%s1025 + $0x4] sm:$0xf]
        %v1106 = vld [vmem:[%s1025 + $0x8] sm:$0xf]
        %v1107 = vld [vmem:[%s1025 + $0xc] sm:$0xf]
        %v1108 = vld [vmem:[%s1025 + $0x10] sm:$0xf]
        %v1109 = vld [vmem:[%s1025 + $0x14] sm:$0xf]
        %v1110 = vld [vmem:[%s1025 + $0x18] sm:$0xf]
        %v1111 = vld [vmem:[%s1025 + $0x1c] sm:$0xf]
        %v1112 = vld [vmem:[%s1025 + $0x20] sm:$0xf]
        %v1113 = vld [vmem:[%s1025 + $0x24] sm:$0xf]
        %v1114 = vld [vmem:[%s1025 + $0x28] sm:$0xf]
        %v1115 = vld [vmem:[%s1025 + $0x2c] sm:$0xf]
        %v1116 = vld [vmem:[%s1025 + $0x30] sm:$0xf]
        %v1117 = vld [vmem:[%s1025 + $0x34] sm:$0xf]
        %v1118 = vld [vmem:[%s1025 + $0x38] sm:$0xf]
        %v1119 = vld [vmem:[%s1025 + $0x3c] sm:$0xf]
        %v1120 = vld [vmem:[%s1025 + $0x40] sm:$0xf]
        %v1121 = vld [vmem:[%s1025 + $0x44] sm:$0xf]
        %v1122 = vld [vmem:[%s1025 + $0x48] sm:$0xf]
        %v1123 = vld [vmem:[%s1025 + $0x4c] sm:$0xf]
        %v1124 = vld [vmem:[%s1025 + $0x50] sm:$0xf]
        %v1125 = vld [vmem:[%s1025 + $0x54] sm:$0xf]
        %v1126 = vld [vmem:[%s1025 + $0x58] sm:$0xf]
        %v1127 = vld [vmem:[%s1025 + $0x5c] sm:$0xf]
        %v1128 = vld [vmem:[%s1025 + $0x60] sm:$0xf]
        %v1129 = vld [vmem:[%s1025 + $0x64] sm:$0xf]
        %v1130 = vld [vmem:[%s1025 + $0x68] sm:$0xf]
        %v1131 = vld [vmem:[%s1025 + $0x6c] sm:$0xf]
        %v1132 = vld [vmem:[%s1025 + $0x70] sm:$0xf]
        %v1133 = vld [vmem:[%s1025 + $0x74] sm:$0xf]
        %v1134 = vld [vmem:[%s1025 + $0x78] sm:$0xf]
        %v1135 = vld [vmem:[%s1025 + $0x7c] sm:$0xf]
        %v1136 = vld [vmem:[%s1025 + $0x80] sm:$0xf]
        %v1137 = vld [vmem:[%s1025 + $0x84] sm:$0xf]
        %v1138 = vld [vmem:[%s1025 + $0x88] sm:$0xf]
        %v1139 = vld [vmem:[%s1025 + $0x8c] sm:$0xf]
        %v1140 = vld [vmem:[%s1025 + $0x90] sm:$0xf]
        %v1141 = vld [vmem:[%s1025 + $0x94] sm:$0xf]
        %v1142 = vld [vmem:[%s1025 + $0x98] sm:$0xf]
        %v1143 = vld [vmem:[%s1025 + $0x9c] sm:$0xf]
        %v1144 = vld [vmem:[%s1025 + $0xa0] sm:$0xf]
        %v1145 = vld [vmem:[%s1025 + $0xa4] sm:$0xf]
        %v1146 = vld [vmem:[%s1025 + $0xa8] sm:$0xf]
        %v1147 = vld [vmem:[%s1025 + $0xac] sm:$0xf]
        %v1148 = vld [vmem:[%s1025 + $0xb0] sm:$0xf]
        %v1149 = vld [vmem:[%s1025 + $0xb4] sm:$0xf]
        %v1150 = vld [vmem:[%s1025 + $0xb8] sm:$0xf]
        %v1151 = vld [vmem:[%s1025 + $0xbc] sm:$0xf]
        %v1152 = vld [vmem:[%s1025 + $0xc0] sm:$0xf]
        %v1153 = vld [vmem:[%s1025 + $0xc4] sm:$0xf]
        %v1162 = vunpack.c.l.b16 %v1048
        %v1163 = vunpack.c.h.b16 %v1048
        %v1164 = vunpack.c.l.b16 %v1049
        %v1165 = vunpack.c.h.b16 %v1049
        %v1166 = vunpack.c.l.b16 %v1050
        %v1167 = vunpack.c.h.b16 %v1050
        %v1168 = vunpack.c.l.b16 %v1051
        %v1169 = vunpack.c.h.b16 %v1051
        %v1170 = vunpack.c.l.b16 %v1052
        %v1171 = vunpack.c.h.b16 %v1052
        %v1172 = vunpack.c.l.b16 %v1053
        %v1173 = vunpack.c.h.b16 %v1053
        %v1174 = vunpack.c.l.b16 %v1054
        %v1175 = vunpack.c.h.b16 %v1054
        %v1176 = vunpack.c.l.b16 %v1055
        %v1177 = vunpack.c.h.b16 %v1055
        %v1178 = vpack.c.b16 %v1166, %v1162
        %v1179 = vpack.c.b16 %v1167, %v1163
        %v1180 = vpack.c.b16 %v1168, %v1164
        %v1181 = vpack.c.b16 %v1169, %v1165
        %v1182 = vpack.c.b16 %v1174, %v1170
        %v1183 = vpack.c.b16 %v1175, %v1171
        %v1184 = vpack.c.b16 %v1176, %v1172
        %v1185 = vpack.c.b16 %v1177, %v1173
        %v1242 = vunpack.c.l.b16 %v1104
        %v1243 = vunpack.c.l.b16 %v1105
        %v1244 = vunpack.c.l.b16 %v1106
        %v1245 = vunpack.c.l.b16 %v1107
        %v1246 = vunpack.c.l.b16 %v1108
        %v1247 = vunpack.c.l.b16 %v1109
        %v1248 = vunpack.c.l.b16 %v1110
        %v1249 = vunpack.c.l.b16 %v1111
        %v1250 = vunpack.c.l.b16 %v1112
        %v1251 = vunpack.c.l.b16 %v1113
        %v1252 = vunpack.c.l.b16 %v1114
        %v1253 = vunpack.c.l.b16 %v1115
        %v1254 = vunpack.c.l.b16 %v1116
        %v1255 = vunpack.c.l.b16 %v1117
        %v1256 = vunpack.c.l.b16 %v1118
        %v1257 = vunpack.c.l.b16 %v1119
        %v1258 = vunpack.c.l.b16 %v1120
        %v1259 = vunpack.c.l.b16 %v1121
        %v1260 = vunpack.c.l.b16 %v1122
        %v1261 = vunpack.c.l.b16 %v1123
        %v1262 = vunpack.c.l.b16 %v1124
        %v1263 = vunpack.c.l.b16 %v1125
        %v1264 = vunpack.c.l.b16 %v1126
        %v1265 = vunpack.c.l.b16 %v1127
        %v1266 = vunpack.c.l.b16 %v1128
        %v1267 = vunpack.c.l.b16 %v1129
        %v1268 = vunpack.c.l.b16 %v1130
        %v1269 = vunpack.c.l.b16 %v1131
        %v1270 = vunpack.c.l.b16 %v1132
        %v1271 = vunpack.c.l.b16 %v1133
        %v1272 = vunpack.c.l.b16 %v1134
        %v1273 = vunpack.c.l.b16 %v1135
        %v1274 = vunpack.c.l.b16 %v1136
        %v1275 = vunpack.c.l.b16 %v1137
        %v1276 = vunpack.c.l.b16 %v1138
        %v1277 = vunpack.c.l.b16 %v1139
        %v1278 = vunpack.c.l.b16 %v1140
        %v1279 = vunpack.c.l.b16 %v1141
        %v1280 = vunpack.c.l.b16 %v1142
        %v1281 = vunpack.c.l.b16 %v1143
        %v1282 = vunpack.c.l.b16 %v1144
        %v1283 = vunpack.c.l.b16 %v1145
        %v1284 = vunpack.c.l.b16 %v1146
        %v1285 = vunpack.c.l.b16 %v1147
        %v1286 = vunpack.c.l.b16 %v1148
        %v1287 = vunpack.c.l.b16 %v1149
        %v1288 = vunpack.c.l.b16 %v1150
        %v1289 = vunpack.c.l.b16 %v1151
        %v1290 = vunpack.c.l.b16 %v1152
        %v1291 = vunpack.c.l.b16 %v1153
        %v1292 = vpack.c.b16 %v1243, %v1242
        %v1293 = vpack.c.b16 %v1245, %v1244
        %v1294 = vpack.c.b16 %v1247, %v1246
        %v1295 = vpack.c.b16 %v1249, %v1248
        %v1296 = vpack.c.b16 %v1251, %v1250
        %v1297 = vpack.c.b16 %v1253, %v1252
        %v1298 = vpack.c.b16 %v1255, %v1254
        %v1299 = vpack.c.b16 %v1257, %v1256
        %v1300 = vpack.c.b16 %v1259, %v1258
        %v1301 = vpack.c.b16 %v1261, %v1260
        %v1302 = vpack.c.b16 %v1263, %v1262
        %v1303 = vpack.c.b16 %v1265, %v1264
        %v1304 = vpack.c.b16 %v1267, %v1266
        %v1305 = vpack.c.b16 %v1269, %v1268
        %v1306 = vpack.c.b16 %v1271, %v1270
        %v1307 = vpack.c.b16 %v1273, %v1272
        %v1308 = vpack.c.b16 %v1275, %v1274
        %v1309 = vpack.c.b16 %v1277, %v1276
        %v1310 = vpack.c.b16 %v1279, %v1278
        %v1311 = vpack.c.b16 %v1281, %v1280
        %v1312 = vpack.c.b16 %v1283, %v1282
        %v1313 = vpack.c.b16 %v1285, %v1284
        %v1314 = vpack.c.b16 %v1287, %v1286
        %v1315 = vpack.c.b16 %v1289, %v1288
        %v1316 = vpack.c.b16 %v1291, %v1290
        %vm1342 = vcmask 130048
        %v1344 = vsel %vm1342, %v1181, 0
        %v1347 = vsel %vm1342, %v1185, 0
        %1349 = vmatprep.subr.bf16.mxu0 0
        %1350 = vmatpush1.bf16.msra.mxu0 %v1292
        %1351 = vmatprep.subr.bf16.mxu0 0
        %1352 = vmatpush1.bf16.msra.mxu0 %v1293
        %1353 = vmatprep.subr.bf16.mxu0 0
        %1354 = vmatpush1.bf16.msra.mxu0 %v1294
        %1355 = vmatprep.subr.bf16.mxu0 0
        %1356 = vmatpush1.bf16.msra.mxu0 %v1295
        %1357 = vmatprep.subr.bf16.mxu0 0
        %1358 = vmatpush1.bf16.msra.mxu0 %v1296
        %1359 = vmatprep.subr.bf16.mxu0 0
        %1360 = vmatpush1.bf16.msra.mxu0 %v1297
        %1361 = vmatprep.subr.bf16.mxu0 0
        %1362 = vmatpush1.bf16.msra.mxu0 %v1298
        %1363 = vmatprep.subr.bf16.mxu0 0
        %1364 = vmatpush1.bf16.msra.mxu0 %v1299
        %1365 = vmatprep.subr.bf16.mxu0 0
        %1366 = vmatpush1.bf16.msra.mxu0 %v1300
        %1367 = vmatprep.subr.bf16.mxu0 0
        %1368 = vmatpush1.bf16.msra.mxu0 %v1301
        %1369 = vmatprep.subr.bf16.mxu0 0
        %1370 = vmatpush1.bf16.msra.mxu0 %v1302
        %1371 = vmatprep.subr.bf16.mxu0 0
        %1372 = vmatpush1.bf16.msra.mxu0 %v1303
        %1373 = vmatprep.subr.bf16.mxu0 0
        %1374 = vmatpush1.bf16.msra.mxu0 %v1304
        %1375 = vmatprep.subr.bf16.mxu0 0
        %1376 = vmatpush1.bf16.msra.mxu0 %v1305
        %1377 = vmatprep.subr.bf16.mxu0 0
        %1378 = vmatpush1.bf16.msra.mxu0 %v1306
        %1379 = vmatprep.subr.bf16.mxu0 0
        %1380 = vmatpush1.bf16.msra.mxu0 %v1307
        %1381 = vmatprep.mubr.bf16.mxu0 %v1179
        %1382 = vmatmul.mubr.bf16.gmra.mrb[0].mxu0 %v1178
        %v1383 = vpop.f32.mrb[0].mxu0
        %v1384 = vadd.f32 0.0, %v1383
        %v1385 = vpop.f32.mrb[0].mxu0
        %v1386 = vpop.f32.mrb[0].mxu0
        %v1387 = vadd.f32 0.0, %v1386
        %v1388 = vpop.f32.mrb[0].mxu0
        %1389 = vmatprep.mubr.bf16.mxu0 %v1183
        %1390 = vmatmul.mubr.bf16.gmra.mrb[0].mxu0 %v1182
        %v1391 = vpop.f32.mrb[0].mxu0
        %v1392 = vadd.f32 0.0, %v1391
        %v1393 = vpop.f32.mrb[0].mxu0
        %v1394 = vpop.f32.mrb[0].mxu0
        %v1395 = vadd.f32 0.0, %v1394
        %v1396 = vpop.f32.mrb[0].mxu0
        %1397 = vdwg.mxu0
        %1398 = vmatprep.subr.bf16.mxu0 0
        %1399 = vmatpush1.bf16.msra.mxu0 %v1308
        %1400 = vmatprep.subr.bf16.mxu0 0
        %1401 = vmatpush1.bf16.msra.mxu0 %v1309
        %1402 = vmatprep.subr.bf16.mxu0 0
        %1403 = vmatpush1.bf16.msra.mxu0 %v1310
        %1404 = vmatprep.subr.bf16.mxu0 0
        %1405 = vmatpush1.bf16.msra.mxu0 %v1311
        %1406 = vmatprep.subr.bf16.mxu0 0
        %1407 = vmatpush1.bf16.msra.mxu0 %v1312
        %1408 = vmatprep.subr.bf16.mxu0 0
        %1409 = vmatpush1.bf16.msra.mxu0 %v1313
        %1410 = vmatprep.subr.bf16.mxu0 0
        %1411 = vmatpush1.bf16.msra.mxu0 %v1314
        %1412 = vmatprep.subr.bf16.mxu0 0
        %1413 = vmatpush1.bf16.msra.mxu0 %v1315
        %1414 = vmatprep.subr.bf16.mxu0 0
        %1415 = vmatpush1.bf16.msra.mxu0 %v1316
        %1416 = vmatprep.subr.bf16.mxu0 0
        %1417 = vmatpush1.bf16.msra.mxu0 0
        %1418 = vmatprep.subr.bf16.mxu0 0
        %1419 = vmatpush1.bf16.msra.mxu0 0
        %1420 = vmatprep.subr.bf16.mxu0 0
        %1421 = vmatpush1.bf16.msra.mxu0 0
        %1422 = vmatprep.subr.bf16.mxu0 0
        %1423 = vmatpush1.bf16.msra.mxu0 0
        %1424 = vmatprep.subr.bf16.mxu0 0
        %1425 = vmatpush1.bf16.msra.mxu0 0
        %1426 = vmatprep.subr.bf16.mxu0 0
        %1427 = vmatpush1.bf16.msra.mxu0 0
        %1428 = vmatprep.subr.bf16.mxu0 0
        %1429 = vmatpush1.bf16.msra.mxu0 0
        %1430 = vmatprep.mubr.bf16.mxu0 %v1344
        %1431 = vmatmul.mubr.bf16.gmra.mrb[0].mxu0 %v1180
        %v1432 = vpop.f32.mrb[0].mxu0
        %v1433 = vadd.f32 %v1384, %v1432
        %v1434 = vpop.f32.mrb[0].mxu0
        %v1435 = vpop.f32.mrb[0].mxu0
        %v1436 = vadd.f32 %v1387, %v1435
        %v1437 = vpop.f32.mrb[0].mxu0
        %1438 = vmatprep.mubr.bf16.mxu0 %v1347
        %1439 = vmatmul.mubr.bf16.gmra.mrb[0].mxu0 %v1184
        %v1440 = vpop.f32.mrb[0].mxu0
        %v1441 = vadd.f32 %v1392, %v1440
        %v1442 = vpop.f32.mrb[0].mxu0
        %v1443 = vpop.f32.mrb[0].mxu0
        %v1444 = vadd.f32 %v1395, %v1443
        %v1445 = vpop.f32.mrb[0].mxu0
        %1446 = vdwg.mxu0
        %v1447 = vmul.f32 %v1433, %v1063
        %v1448 = vmul.f32 %v1436, %v1068
        %v1449 = vmul.f32 %v1441, %v1073
        %v1450 = vmul.f32 %v1444, %v1078
        %v1451 = vadd.f32 %v1447, %v1087
        %v1452 = vadd.f32 %v1448, %v1092
        %v1453 = vadd.f32 %v1449, %v1097
        %v1454 = vadd.f32 %v1450, %v1102
        %s1455 = scalar_lea.vmem %s1025, 200 [#allocation2]
        %v1456 = vld [vmem:[%s1455] sm:$0xf]
        %v1457 = vld [vmem:[%s1455 + $0x4] sm:$0xf]
        %v1458 = vld [vmem:[%s1455 + $0x8] sm:$0xf]
        %v1459 = vld [vmem:[%s1455 + $0xc] sm:$0xf]
        %v1460 = vld [vmem:[%s1455 + $0x10] sm:$0xf]
        %v1461 = vld [vmem:[%s1455 + $0x14] sm:$0xf]
        %v1462 = vld [vmem:[%s1455 + $0x18] sm:$0xf]
        %v1463 = vld [vmem:[%s1455 + $0x1c] sm:$0xf]
        %v1464 = vld [vmem:[%s1455 + $0x20] sm:$0xf]
        %v1465 = vld [vmem:[%s1455 + $0x24] sm:$0xf]
        %v1466 = vld [vmem:[%s1455 + $0x28] sm:$0xf]
        %v1467 = vld [vmem:[%s1455 + $0x2c] sm:$0xf]
        %v1468 = vld [vmem:[%s1455 + $0x30] sm:$0xf]
        %v1469 = vld [vmem:[%s1455 + $0x34] sm:$0xf]
        %v1470 = vld [vmem:[%s1455 + $0x38] sm:$0xf]
        %v1471 = vld [vmem:[%s1455 + $0x3c] sm:$0xf]
        %v1472 = vld [vmem:[%s1455 + $0x40] sm:$0xf]
        %v1473 = vld [vmem:[%s1455 + $0x44] sm:$0xf]
        %v1474 = vld [vmem:[%s1455 + $0x48] sm:$0xf]
        %v1475 = vld [vmem:[%s1455 + $0x4c] sm:$0xf]
        %v1476 = vld [vmem:[%s1455 + $0x50] sm:$0xf]
        %v1477 = vld [vmem:[%s1455 + $0x54] sm:$0xf]
        %v1478 = vld [vmem:[%s1455 + $0x58] sm:$0xf]
        %v1479 = vld [vmem:[%s1455 + $0x5c] sm:$0xf]
        %v1480 = vld [vmem:[%s1455 + $0x60] sm:$0xf]
        %v1481 = vld [vmem:[%s1455 + $0x64] sm:$0xf]
        %v1482 = vld [vmem:[%s1455 + $0x68] sm:$0xf]
        %v1483 = vld [vmem:[%s1455 + $0x6c] sm:$0xf]
        %v1484 = vld [vmem:[%s1455 + $0x70] sm:$0xf]
        %v1485 = vld [vmem:[%s1455 + $0x74] sm:$0xf]
        %v1486 = vld [vmem:[%s1455 + $0x78] sm:$0xf]
        %v1487 = vld [vmem:[%s1455 + $0x7c] sm:$0xf]
        %v1488 = vld [vmem:[%s1455 + $0x80] sm:$0xf]
        %v1489 = vld [vmem:[%s1455 + $0x84] sm:$0xf]
        %v1490 = vld [vmem:[%s1455 + $0x88] sm:$0xf]
        %v1491 = vld [vmem:[%s1455 + $0x8c] sm:$0xf]
        %v1492 = vld [vmem:[%s1455 + $0x90] sm:$0xf]
        %v1493 = vld [vmem:[%s1455 + $0x94] sm:$0xf]
        %v1494 = vld [vmem:[%s1455 + $0x98] sm:$0xf]
        %v1495 = vld [vmem:[%s1455 + $0x9c] sm:$0xf]
        %v1496 = vld [vmem:[%s1455 + $0xa0] sm:$0xf]
        %v1497 = vld [vmem:[%s1455 + $0xa4] sm:$0xf]
        %v1498 = vld [vmem:[%s1455 + $0xa8] sm:$0xf]
        %v1499 = vld [vmem:[%s1455 + $0xac] sm:$0xf]
        %v1500 = vld [vmem:[%s1455 + $0xb0] sm:$0xf]
        %v1501 = vld [vmem:[%s1455 + $0xb4] sm:$0xf]
        %v1502 = vld [vmem:[%s1455 + $0xb8] sm:$0xf]
        %v1503 = vld [vmem:[%s1455 + $0xbc] sm:$0xf]
        %v1504 = vld [vmem:[%s1455 + $0xc0] sm:$0xf]
        %v1505 = vld [vmem:[%s1455 + $0xc4] sm:$0xf]
        %v1556 = vunpack.c.l.b16 %v1456
        %v1557 = vunpack.c.l.b16 %v1457
        %v1558 = vunpack.c.l.b16 %v1458
        %v1559 = vunpack.c.l.b16 %v1459
        %v1560 = vunpack.c.l.b16 %v1460
        %v1561 = vunpack.c.l.b16 %v1461
        %v1562 = vunpack.c.l.b16 %v1462
        %v1563 = vunpack.c.l.b16 %v1463
        %v1564 = vunpack.c.l.b16 %v1464
        %v1565 = vunpack.c.l.b16 %v1465
        %v1566 = vunpack.c.l.b16 %v1466
        %v1567 = vunpack.c.l.b16 %v1467
        %v1568 = vunpack.c.l.b16 %v1468
        %v1569 = vunpack.c.l.b16 %v1469
        %v1570 = vunpack.c.l.b16 %v1470
        %v1571 = vunpack.c.l.b16 %v1471
        %v1572 = vunpack.c.l.b16 %v1472
        %v1573 = vunpack.c.l.b16 %v1473
        %v1574 = vunpack.c.l.b16 %v1474
        %v1575 = vunpack.c.l.b16 %v1475
        %v1576 = vunpack.c.l.b16 %v1476
        %v1577 = vunpack.c.l.b16 %v1477
        %v1578 = vunpack.c.l.b16 %v1478
        %v1579 = vunpack.c.l.b16 %v1479
        %v1580 = vunpack.c.l.b16 %v1480
        %v1581 = vunpack.c.l.b16 %v1481
        %v1582 = vunpack.c.l.b16 %v1482
        %v1583 = vunpack.c.l.b16 %v1483
        %v1584 = vunpack.c.l.b16 %v1484
        %v1585 = vunpack.c.l.b16 %v1485
        %v1586 = vunpack.c.l.b16 %v1486
        %v1587 = vunpack.c.l.b16 %v1487
        %v1588 = vunpack.c.l.b16 %v1488
        %v1589 = vunpack.c.l.b16 %v1489
        %v1590 = vunpack.c.l.b16 %v1490
        %v1591 = vunpack.c.l.b16 %v1491
        %v1592 = vunpack.c.l.b16 %v1492
        %v1593 = vunpack.c.l.b16 %v1493
        %v1594 = vunpack.c.l.b16 %v1494
        %v1595 = vunpack.c.l.b16 %v1495
        %v1596 = vunpack.c.l.b16 %v1496
        %v1597 = vunpack.c.l.b16 %v1497
        %v1598 = vunpack.c.l.b16 %v1498
        %v1599 = vunpack.c.l.b16 %v1499
        %v1600 = vunpack.c.l.b16 %v1500
        %v1601 = vunpack.c.l.b16 %v1501
        %v1602 = vunpack.c.l.b16 %v1502
        %v1603 = vunpack.c.l.b16 %v1503
        %v1604 = vunpack.c.l.b16 %v1504
        %v1605 = vunpack.c.l.b16 %v1505
        %v1606 = vpack.c.b16 %v1557, %v1556
        %v1607 = vpack.c.b16 %v1559, %v1558
        %v1608 = vpack.c.b16 %v1561, %v1560
        %v1609 = vpack.c.b16 %v1563, %v1562
        %v1610 = vpack.c.b16 %v1565, %v1564
        %v1611 = vpack.c.b16 %v1567, %v1566
        %v1612 = vpack.c.b16 %v1569, %v1568
        %v1613 = vpack.c.b16 %v1571, %v1570
        %v1614 = vpack.c.b16 %v1573, %v1572
        %v1615 = vpack.c.b16 %v1575, %v1574
        %v1616 = vpack.c.b16 %v1577, %v1576
        %v1617 = vpack.c.b16 %v1579, %v1578
        %v1618 = vpack.c.b16 %v1581, %v1580
        %v1619 = vpack.c.b16 %v1583, %v1582
        %v1620 = vpack.c.b16 %v1585, %v1584
        %v1621 = vpack.c.b16 %v1587, %v1586
        %v1622 = vpack.c.b16 %v1589, %v1588
        %v1623 = vpack.c.b16 %v1591, %v1590
        %v1624 = vpack.c.b16 %v1593, %v1592
        %v1625 = vpack.c.b16 %v1595, %v1594
        %v1626 = vpack.c.b16 %v1597, %v1596
        %v1627 = vpack.c.b16 %v1599, %v1598
        %v1628 = vpack.c.b16 %v1601, %v1600
        %v1629 = vpack.c.b16 %v1603, %v1602
        %v1630 = vpack.c.b16 %v1605, %v1604
        %1656 = vmatprep.subr.bf16.mxu0 0
        %1657 = vmatpush1.bf16.msra.mxu0 %v1606
        %1658 = vmatprep.subr.bf16.mxu0 0
        %1659 = vmatpush1.bf16.msra.mxu0 %v1607
        %1660 = vmatprep.subr.bf16.mxu0 0
        %1661 = vmatpush1.bf16.msra.mxu0 %v1608
        %1662 = vmatprep.subr.bf16.mxu0 0
        %1663 = vmatpush1.bf16.msra.mxu0 %v1609
        %1664 = vmatprep.subr.bf16.mxu0 0
        %1665 = vmatpush1.bf16.msra.mxu0 %v1610
        %1666 = vmatprep.subr.bf16.mxu0 0
        %1667 = vmatpush1.bf16.msra.mxu0 %v1611
        %1668 = vmatprep.subr.bf16.mxu0 0
        %1669 = vmatpush1.bf16.msra.mxu0 %v1612
        %1670 = vmatprep.subr.bf16.mxu0 0
        %1671 = vmatpush1.bf16.msra.mxu0 %v1613
        %1672 = vmatprep.subr.bf16.mxu0 0
        %1673 = vmatpush1.bf16.msra.mxu0 %v1614
        %1674 = vmatprep.subr.bf16.mxu0 0
        %1675 = vmatpush1.bf16.msra.mxu0 %v1615
        %1676 = vmatprep.subr.bf16.mxu0 0
        %1677 = vmatpush1.bf16.msra.mxu0 %v1616
        %1678 = vmatprep.subr.bf16.mxu0 0
        %1679 = vmatpush1.bf16.msra.mxu0 %v1617
        %1680 = vmatprep.subr.bf16.mxu0 0
        %1681 = vmatpush1.bf16.msra.mxu0 %v1618
        %1682 = vmatprep.subr.bf16.mxu0 0
        %1683 = vmatpush1.bf16.msra.mxu0 %v1619
        %1684 = vmatprep.subr.bf16.mxu0 0
        %1685 = vmatpush1.bf16.msra.mxu0 %v1620
        %1686 = vmatprep.subr.bf16.mxu0 0
        %1687 = vmatpush1.bf16.msra.mxu0 %v1621
        %1688 = vmatprep.mubr.bf16.mxu0 %v1179
        %1689 = vmatmul.mubr.bf16.gmra.mrb[0].mxu0 %v1178
        %v1690 = vpop.f32.mrb[0].mxu0
        %v1691 = vadd.f32 0.0, %v1690
        %v1692 = vpop.f32.mrb[0].mxu0
        %v1693 = vpop.f32.mrb[0].mxu0
        %v1694 = vadd.f32 0.0, %v1693
        %v1695 = vpop.f32.mrb[0].mxu0
        %1696 = vmatprep.mubr.bf16.mxu0 %v1183
        %1697 = vmatmul.mubr.bf16.gmra.mrb[0].mxu0 %v1182
        %v1698 = vpop.f32.mrb[0].mxu0
        %v1699 = vadd.f32 0.0, %v1698
        %v1700 = vpop.f32.mrb[0].mxu0
        %v1701 = vpop.f32.mrb[0].mxu0
        %v1702 = vadd.f32 0.0, %v1701
        %v1703 = vpop.f32.mrb[0].mxu0
        %1704 = vdwg.mxu0
        %1705 = vmatprep.subr.bf16.mxu0 0
        %1706 = vmatpush1.bf16.msra.mxu0 %v1622
        %1707 = vmatprep.subr.bf16.mxu0 0
        %1708 = vmatpush1.bf16.msra.mxu0 %v1623
        %1709 = vmatprep.subr.bf16.mxu0 0
        %1710 = vmatpush1.bf16.msra.mxu0 %v1624
        %1711 = vmatprep.subr.bf16.mxu0 0
        %1712 = vmatpush1.bf16.msra.mxu0 %v1625
        %1713 = vmatprep.subr.bf16.mxu0 0
        %1714 = vmatpush1.bf16.msra.mxu0 %v1626
        %1715 = vmatprep.subr.bf16.mxu0 0
        %1716 = vmatpush1.bf16.msra.mxu0 %v1627
        %1717 = vmatprep.subr.bf16.mxu0 0
        %1718 = vmatpush1.bf16.msra.mxu0 %v1628
        %1719 = vmatprep.subr.bf16.mxu0 0
        %1720 = vmatpush1.bf16.msra.mxu0 %v1629
        %1721 = vmatprep.subr.bf16.mxu0 0
        %1722 = vmatpush1.bf16.msra.mxu0 %v1630
        %1723 = vmatprep.subr.bf16.mxu0 0
        %1724 = vmatpush1.bf16.msra.mxu0 0
        %1725 = vmatprep.subr.bf16.mxu0 0
        %1726 = vmatpush1.bf16.msra.mxu0 0
        %1727 = vmatprep.subr.bf16.mxu0 0
        %1728 = vmatpush1.bf16.msra.mxu0 0
        %1729 = vmatprep.subr.bf16.mxu0 0
        %1730 = vmatpush1.bf16.msra.mxu0 0
        %1731 = vmatprep.subr.bf16.mxu0 0
        %1732 = vmatpush1.bf16.msra.mxu0 0
        %1733 = vmatprep.subr.bf16.mxu0 0
        %1734 = vmatpush1.bf16.msra.mxu0 0
        %1735 = vmatprep.subr.bf16.mxu0 0
        %1736 = vmatpush1.bf16.msra.mxu0 0
        %1737 = vmatprep.mubr.bf16.mxu0 %v1344
        %1738 = vmatmul.mubr.bf16.gmra.mrb[0].mxu0 %v1180
        %v1739 = vpop.f32.mrb[0].mxu0
        %v1740 = vadd.f32 %v1691, %v1739
        %v1741 = vpop.f32.mrb[0].mxu0
        %v1742 = vpop.f32.mrb[0].mxu0
        %v1743 = vadd.f32 %v1694, %v1742
        %v1744 = vpop.f32.mrb[0].mxu0
        %1745 = vmatprep.mubr.bf16.mxu0 %v1347
        %1746 = vmatmul.mubr.bf16.gmra.mrb[0].mxu0 %v1184
        %v1747 = vpop.f32.mrb[0].mxu0
        %v1748 = vadd.f32 %v1699, %v1747
        %v1749 = vpop.f32.mrb[0].mxu0
        %v1750 = vpop.f32.mrb[0].mxu0
        %v1751 = vadd.f32 %v1702, %v1750
        %v1752 = vpop.f32.mrb[0].mxu0
        %1753 = vdwg.mxu0
        %v1754 = vmul.f32 %v1740, %v1063
        %v1755 = vmul.f32 %v1743, %v1068
        %v1756 = vmul.f32 %v1748, %v1073
        %v1757 = vmul.f32 %v1751, %v1078
        %v1758 = vadd.f32 %v1754, %v1087
        %v1759 = vadd.f32 %v1755, %v1092
        %v1760 = vadd.f32 %v1756, %v1097
        %v1761 = vadd.f32 %v1757, %v1102
        %v1762 = vmax.f32 %v1451, %v1758
        %v1763 = vmax.f32 %v1452, %v1759
        %v1764 = vmax.f32 %v1453, %v1760
        %v1765 = vmax.f32 %v1454, %v1761
        %s1766 = scalar_lea.vmem %s1025, 400 [#allocation2]
        %v1767 = vld [vmem:[%s1766] sm:$0xf]
        %v1768 = vld [vmem:[%s1766 + $0x4] sm:$0xf]
        %v1769 = vld [vmem:[%s1766 + $0x8] sm:$0xf]
        %v1770 = vld [vmem:[%s1766 + $0xc] sm:$0xf]
        %v1771 = vld [vmem:[%s1766 + $0x10] sm:$0xf]
        %v1772 = vld [vmem:[%s1766 + $0x14] sm:$0xf]
        %v1773 = vld [vmem:[%s1766 + $0x18] sm:$0xf]
        %v1774 = vld [vmem:[%s1766 + $0x1c] sm:$0xf]
        %v1775 = vld [vmem:[%s1766 + $0x20] sm:$0xf]
        %v1776 = vld [vmem:[%s1766 + $0x24] sm:$0xf]
        %v1777 = vld [vmem:[%s1766 + $0x28] sm:$0xf]
        %v1778 = vld [vmem:[%s1766 + $0x2c] sm:$0xf]
        %v1779 = vld [vmem:[%s1766 + $0x30] sm:$0xf]
        %v1780 = vld [vmem:[%s1766 + $0x34] sm:$0xf]
        %v1781 = vld [vmem:[%s1766 + $0x38] sm:$0xf]
        %v1782 = vld [vmem:[%s1766 + $0x3c] sm:$0xf]
        %v1783 = vld [vmem:[%s1766 + $0x40] sm:$0xf]
        %v1784 = vld [vmem:[%s1766 + $0x44] sm:$0xf]
        %v1785 = vld [vmem:[%s1766 + $0x48] sm:$0xf]
        %v1786 = vld [vmem:[%s1766 + $0x4c] sm:$0xf]
        %v1787 = vld [vmem:[%s1766 + $0x50] sm:$0xf]
        %v1788 = vld [vmem:[%s1766 + $0x54] sm:$0xf]
        %v1789 = vld [vmem:[%s1766 + $0x58] sm:$0xf]
        %v1790 = vld [vmem:[%s1766 + $0x5c] sm:$0xf]
        %v1791 = vld [vmem:[%s1766 + $0x60] sm:$0xf]
        %v1792 = vld [vmem:[%s1766 + $0x64] sm:$0xf]
        %v1793 = vld [vmem:[%s1766 + $0x68] sm:$0xf]
        %v1794 = vld [vmem:[%s1766 + $0x6c] sm:$0xf]
        %v1795 = vld [vmem:[%s1766 + $0x70] sm:$0xf]
        %v1796 = vld [vmem:[%s1766 + $0x74] sm:$0xf]
        %v1797 = vld [vmem:[%s1766 + $0x78] sm:$0xf]
        %v1798 = vld [vmem:[%s1766 + $0x7c] sm:$0xf]
        %v1799 = vld [vmem:[%s1766 + $0x80] sm:$0xf]
        %v1800 = vld [vmem:[%s1766 + $0x84] sm:$0xf]
        %v1801 = vld [vmem:[%s1766 + $0x88] sm:$0xf]
        %v1802 = vld [vmem:[%s1766 + $0x8c] sm:$0xf]
        %v1803 = vld [vmem:[%s1766 + $0x90] sm:$0xf]
        %v1804 = vld [vmem:[%s1766 + $0x94] sm:$0xf]
        %v1805 = vld [vmem:[%s1766 + $0x98] sm:$0xf]
        %v1806 = vld [vmem:[%s1766 + $0x9c] sm:$0xf]
        %v1807 = vld [vmem:[%s1766 + $0xa0] sm:$0xf]
        %v1808 = vld [vmem:[%s1766 + $0xa4] sm:$0xf]
        %v1809 = vld [vmem:[%s1766 + $0xa8] sm:$0xf]
        %v1810 = vld [vmem:[%s1766 + $0xac] sm:$0xf]
        %v1811 = vld [vmem:[%s1766 + $0xb0] sm:$0xf]
        %v1812 = vld [vmem:[%s1766 + $0xb4] sm:$0xf]
        %v1813 = vld [vmem:[%s1766 + $0xb8] sm:$0xf]
        %v1814 = vld [vmem:[%s1766 + $0xbc] sm:$0xf]
        %v1815 = vld [vmem:[%s1766 + $0xc0] sm:$0xf]
        %v1816 = vld [vmem:[%s1766 + $0xc4] sm:$0xf]
        %v1867 = vunpack.c.l.b16 %v1767
        %v1868 = vunpack.c.l.b16 %v1768
        %v1869 = vunpack.c.l.b16 %v1769
        %v1870 = vunpack.c.l.b16 %v1770
        %v1871 = vunpack.c.l.b16 %v1771
        %v1872 = vunpack.c.l.b16 %v1772
        %v1873 = vunpack.c.l.b16 %v1773
        %v1874 = vunpack.c.l.b16 %v1774
        %v1875 = vunpack.c.l.b16 %v1775
        %v1876 = vunpack.c.l.b16 %v1776
        %v1877 = vunpack.c.l.b16 %v1777
        %v1878 = vunpack.c.l.b16 %v1778
        %v1879 = vunpack.c.l.b16 %v1779
        %v1880 = vunpack.c.l.b16 %v1780
        %v1881 = vunpack.c.l.b16 %v1781
        %v1882 = vunpack.c.l.b16 %v1782
        %v1883 = vunpack.c.l.b16 %v1783
        %v1884 = vunpack.c.l.b16 %v1784
        %v1885 = vunpack.c.l.b16 %v1785
        %v1886 = vunpack.c.l.b16 %v1786
        %v1887 = vunpack.c.l.b16 %v1787
        %v1888 = vunpack.c.l.b16 %v1788
        %v1889 = vunpack.c.l.b16 %v1789
        %v1890 = vunpack.c.l.b16 %v1790
        %v1891 = vunpack.c.l.b16 %v1791
        %v1892 = vunpack.c.l.b16 %v1792
        %v1893 = vunpack.c.l.b16 %v1793
        %v1894 = vunpack.c.l.b16 %v1794
        %v1895 = vunpack.c.l.b16 %v1795
        %v1896 = vunpack.c.l.b16 %v1796
        %v1897 = vunpack.c.l.b16 %v1797
        %v1898 = vunpack.c.l.b16 %v1798
        %v1899 = vunpack.c.l.b16 %v1799
        %v1900 = vunpack.c.l.b16 %v1800
        %v1901 = vunpack.c.l.b16 %v1801
        %v1902 = vunpack.c.l.b16 %v1802
        %v1903 = vunpack.c.l.b16 %v1803
        %v1904 = vunpack.c.l.b16 %v1804
        %v1905 = vunpack.c.l.b16 %v1805
        %v1906 = vunpack.c.l.b16 %v1806
        %v1907 = vunpack.c.l.b16 %v1807
        %v1908 = vunpack.c.l.b16 %v1808
        %v1909 = vunpack.c.l.b16 %v1809
        %v1910 = vunpack.c.l.b16 %v1810
        %v1911 = vunpack.c.l.b16 %v1811
        %v1912 = vunpack.c.l.b16 %v1812
        %v1913 = vunpack.c.l.b16 %v1813
        %v1914 = vunpack.c.l.b16 %v1814
        %v1915 = vunpack.c.l.b16 %v1815
        %v1916 = vunpack.c.l.b16 %v1816
        %v1917 = vpack.c.b16 %v1868, %v1867
        %v1918 = vpack.c.b16 %v1870, %v1869
        %v1919 = vpack.c.b16 %v1872, %v1871
        %v1920 = vpack.c.b16 %v1874, %v1873
        %v1921 = vpack.c.b16 %v1876, %v1875
        %v1922 = vpack.c.b16 %v1878, %v1877
        %v1923 = vpack.c.b16 %v1880, %v1879
        %v1924 = vpack.c.b16 %v1882, %v1881
        %v1925 = vpack.c.b16 %v1884, %v1883
        %v1926 = vpack.c.b16 %v1886, %v1885
        %v1927 = vpack.c.b16 %v1888, %v1887
        %v1928 = vpack.c.b16 %v1890, %v1889
        %v1929 = vpack.c.b16 %v1892, %v1891
        %v1930 = vpack.c.b16 %v1894, %v1893
        %v1931 = vpack.c.b16 %v1896, %v1895
        %v1932 = vpack.c.b16 %v1898, %v1897
        %v1933 = vpack.c.b16 %v1900, %v1899
        %v1934 = vpack.c.b16 %v1902, %v1901
        %v1935 = vpack.c.b16 %v1904, %v1903
        %v1936 = vpack.c.b16 %v1906, %v1905
        %v1937 = vpack.c.b16 %v1908, %v1907
        %v1938 = vpack.c.b16 %v1910, %v1909
        %v1939 = vpack.c.b16 %v1912, %v1911
        %v1940 = vpack.c.b16 %v1914, %v1913
        %v1941 = vpack.c.b16 %v1916, %v1915
        %1967 = vmatprep.subr.bf16.mxu0 0
        %1968 = vmatpush1.bf16.msra.mxu0 %v1917
        %1969 = vmatprep.subr.bf16.mxu0 0
        %1970 = vmatpush1.bf16.msra.mxu0 %v1918
        %1971 = vmatprep.subr.bf16.mxu0 0
        %1972 = vmatpush1.bf16.msra.mxu0 %v1919
        %1973 = vmatprep.subr.bf16.mxu0 0
        %1974 = vmatpush1.bf16.msra.mxu0 %v1920
        %1975 = vmatprep.subr.bf16.mxu0 0
        %1976 = vmatpush1.bf16.msra.mxu0 %v1921
        %1977 = vmatprep.subr.bf16.mxu0 0
        %1978 = vmatpush1.bf16.msra.mxu0 %v1922
        %1979 = vmatprep.subr.bf16.mxu0 0
        %1980 = vmatpush1.bf16.msra.mxu0 %v1923
        %1981 = vmatprep.subr.bf16.mxu0 0
        %1982 = vmatpush1.bf16.msra.mxu0 %v1924
        %1983 = vmatprep.subr.bf16.mxu0 0
        %1984 = vmatpush1.bf16.msra.mxu0 %v1925
        %1985 = vmatprep.subr.bf16.mxu0 0
        %1986 = vmatpush1.bf16.msra.mxu0 %v1926
        %1987 = vmatprep.subr.bf16.mxu0 0
        %1988 = vmatpush1.bf16.msra.mxu0 %v1927
        %1989 = vmatprep.subr.bf16.mxu0 0
        %1990 = vmatpush1.bf16.msra.mxu0 %v1928
        %1991 = vmatprep.subr.bf16.mxu0 0
        %1992 = vmatpush1.bf16.msra.mxu0 %v1929
        %1993 = vmatprep.subr.bf16.mxu0 0
        %1994 = vmatpush1.bf16.msra.mxu0 %v1930
        %1995 = vmatprep.subr.bf16.mxu0 0
        %1996 = vmatpush1.bf16.msra.mxu0 %v1931
        %1997 = vmatprep.subr.bf16.mxu0 0
        %1998 = vmatpush1.bf16.msra.mxu0 %v1932
        %1999 = vmatprep.mubr.bf16.mxu0 %v1179
        %2000 = vmatmul.mubr.bf16.gmra.mrb[0].mxu0 %v1178
        %v2001 = vpop.f32.mrb[0].mxu0
        %v2002 = vadd.f32 0.0, %v2001
        %v2003 = vpop.f32.mrb[0].mxu0
        %v2004 = vpop.f32.mrb[0].mxu0
        %v2005 = vadd.f32 0.0, %v2004
        %v2006 = vpop.f32.mrb[0].mxu0
        %2007 = vmatprep.mubr.bf16.mxu0 %v1183
        %2008 = vmatmul.mubr.bf16.gmra.mrb[0].mxu0 %v1182
        %v2009 = vpop.f32.mrb[0].mxu0
        %v2010 = vadd.f32 0.0, %v2009
        %v2011 = vpop.f32.mrb[0].mxu0
        %v2012 = vpop.f32.mrb[0].mxu0
        %v2013 = vadd.f32 0.0, %v2012
        %v2014 = vpop.f32.mrb[0].mxu0
        %2015 = vdwg.mxu0
        %2016 = vmatprep.subr.bf16.mxu0 0
        %2017 = vmatpush1.bf16.msra.mxu0 %v1933
        %2018 = vmatprep.subr.bf16.mxu0 0
        %2019 = vmatpush1.bf16.msra.mxu0 %v1934
        %2020 = vmatprep.subr.bf16.mxu0 0
        %2021 = vmatpush1.bf16.msra.mxu0 %v1935
        %2022 = vmatprep.subr.bf16.mxu0 0
        %2023 = vmatpush1.bf16.msra.mxu0 %v1936
        %2024 = vmatprep.subr.bf16.mxu0 0
        %2025 = vmatpush1.bf16.msra.mxu0 %v1937
        %2026 = vmatprep.subr.bf16.mxu0 0
        %2027 = vmatpush1.bf16.msra.mxu0 %v1938
        %2028 = vmatprep.subr.bf16.mxu0 0
        %2029 = vmatpush1.bf16.msra.mxu0 %v1939
        %2030 = vmatprep.subr.bf16.mxu0 0
        %2031 = vmatpush1.bf16.msra.mxu0 %v1940
        %2032 = vmatprep.subr.bf16.mxu0 0
        %2033 = vmatpush1.bf16.msra.mxu0 %v1941
        %2034 = vmatprep.subr.bf16.mxu0 0
        %2035 = vmatpush1.bf16.msra.mxu0 0
        %2036 = vmatprep.subr.bf16.mxu0 0
        %2037 = vmatpush1.bf16.msra.mxu0 0
        %2038 = vmatprep.subr.bf16.mxu0 0
        %2039 = vmatpush1.bf16.msra.mxu0 0
        %2040 = vmatprep.subr.bf16.mxu0 0
        %2041 = vmatpush1.bf16.msra.mxu0 0
        %2042 = vmatprep.subr.bf16.mxu0 0
        %2043 = vmatpush1.bf16.msra.mxu0 0
        %2044 = vmatprep.subr.bf16.mxu0 0
        %2045 = vmatpush1.bf16.msra.mxu0 0
        %2046 = vmatprep.subr.bf16.mxu0 0
        %2047 = vmatpush1.bf16.msra.mxu0 0
        %2048 = vmatprep.mubr.bf16.mxu0 %v1344
        %2049 = vmatmul.mubr.bf16.gmra.mrb[0].mxu0 %v1180
        %v2050 = vpop.f32.mrb[0].mxu0
        %v2051 = vadd.f32 %v2002, %v2050
        %v2052 = vpop.f32.mrb[0].mxu0
        %v2053 = vpop.f32.mrb[0].mxu0
        %v2054 = vadd.f32 %v2005, %v2053
        %v2055 = vpop.f32.mrb[0].mxu0
        %2056 = vmatprep.mubr.bf16.mxu0 %v1347
        %2057 = vmatmul.mubr.bf16.gmra.mrb[0].mxu0 %v1184
        %v2058 = vpop.f32.mrb[0].mxu0
        %v2059 = vadd.f32 %v2010, %v2058
        %v2060 = vpop.f32.mrb[0].mxu0
        %v2061 = vpop.f32.mrb[0].mxu0
        %v2062 = vadd.f32 %v2013, %v2061
        %v2063 = vpop.f32.mrb[0].mxu0
        %2064 = vdwg.mxu0
        %v2065 = vmul.f32 %v2051, %v1063
        %v2066 = vmul.f32 %v2054, %v1068
        %v2067 = vmul.f32 %v2059, %v1073
        %v2068 = vmul.f32 %v2062, %v1078
        %v2069 = vadd.f32 %v2065, %v1087
        %v2070 = vadd.f32 %v2066, %v1092
        %v2071 = vadd.f32 %v2067, %v1097
        %v2072 = vadd.f32 %v2068, %v1102
        %v2073 = vmax.f32 %v1762, %v2069
        %v2074 = vmax.f32 %v1763, %v2070
        %v2075 = vmax.f32 %v1764, %v2071
        %v2076 = vmax.f32 %v1765, %v2072
        %s2077 = scalar_lea.vmem %s1025, 600 [#allocation2]
        %v2078 = vld [vmem:[%s2077] sm:$0xf]
        %v2079 = vld [vmem:[%s2077 + $0x4] sm:$0xf]
        %v2080 = vld [vmem:[%s2077 + $0x8] sm:$0xf]
        %v2081 = vld [vmem:[%s2077 + $0xc] sm:$0xf]
        %v2082 = vld [vmem:[%s2077 + $0x10] sm:$0xf]
        %v2083 = vld [vmem:[%s2077 + $0x14] sm:$0xf]
        %v2084 = vld [vmem:[%s2077 + $0x18] sm:$0xf]
        %v2085 = vld [vmem:[%s2077 + $0x1c] sm:$0xf]
        %v2086 = vld [vmem:[%s2077 + $0x20] sm:$0xf]
        %v2087 = vld [vmem:[%s2077 + $0x24] sm:$0xf]
        %v2088 = vld [vmem:[%s2077 + $0x28] sm:$0xf]
        %v2089 = vld [vmem:[%s2077 + $0x2c] sm:$0xf]
        %v2090 = vld [vmem:[%s2077 + $0x30] sm:$0xf]
        %v2091 = vld [vmem:[%s2077 + $0x34] sm:$0xf]
        %v2092 = vld [vmem:[%s2077 + $0x38] sm:$0xf]
        %v2093 = vld [vmem:[%s2077 + $0x3c] sm:$0xf]
        %v2094 = vld [vmem:[%s2077 + $0x40] sm:$0xf]
        %v2095 = vld [vmem:[%s2077 + $0x44] sm:$0xf]
        %v2096 = vld [vmem:[%s2077 + $0x48] sm:$0xf]
        %v2097 = vld [vmem:[%s2077 + $0x4c] sm:$0xf]
        %v2098 = vld [vmem:[%s2077 + $0x50] sm:$0xf]
        %v2099 = vld [vmem:[%s2077 + $0x54] sm:$0xf]
        %v2100 = vld [vmem:[%s2077 + $0x58] sm:$0xf]
        %v2101 = vld [vmem:[%s2077 + $0x5c] sm:$0xf]
        %v2102 = vld [vmem:[%s2077 + $0x60] sm:$0xf]
        %v2103 = vld [vmem:[%s2077 + $0x64] sm:$0xf]
        %v2104 = vld [vmem:[%s2077 + $0x68] sm:$0xf]
        %v2105 = vld [vmem:[%s2077 + $0x6c] sm:$0xf]
        %v2106 = vld [vmem:[%s2077 + $0x70] sm:$0xf]
        %v2107 = vld [vmem:[%s2077 + $0x74] sm:$0xf]
        %v2108 = vld [vmem:[%s2077 + $0x78] sm:$0xf]
        %v2109 = vld [vmem:[%s2077 + $0x7c] sm:$0xf]
        %v2110 = vld [vmem:[%s2077 + $0x80] sm:$0xf]
        %v2111 = vld [vmem:[%s2077 + $0x84] sm:$0xf]
        %v2112 = vld [vmem:[%s2077 + $0x88] sm:$0xf]
        %v2113 = vld [vmem:[%s2077 + $0x8c] sm:$0xf]
        %v2114 = vld [vmem:[%s2077 + $0x90] sm:$0xf]
        %v2115 = vld [vmem:[%s2077 + $0x94] sm:$0xf]
        %v2116 = vld [vmem:[%s2077 + $0x98] sm:$0xf]
        %v2117 = vld [vmem:[%s2077 + $0x9c] sm:$0xf]
        %v2118 = vld [vmem:[%s2077 + $0xa0] sm:$0xf]
        %v2119 = vld [vmem:[%s2077 + $0xa4] sm:$0xf]
        %v2120 = vld [vmem:[%s2077 + $0xa8] sm:$0xf]
        %v2121 = vld [vmem:[%s2077 + $0xac] sm:$0xf]
        %v2122 = vld [vmem:[%s2077 + $0xb0] sm:$0xf]
        %v2123 = vld [vmem:[%s2077 + $0xb4] sm:$0xf]
        %v2124 = vld [vmem:[%s2077 + $0xb8] sm:$0xf]
        %v2125 = vld [vmem:[%s2077 + $0xbc] sm:$0xf]
        %v2126 = vld [vmem:[%s2077 + $0xc0] sm:$0xf]
        %v2127 = vld [vmem:[%s2077 + $0xc4] sm:$0xf]
        %v2178 = vunpack.c.l.b16 %v2078
        %v2179 = vunpack.c.l.b16 %v2079
        %v2180 = vunpack.c.l.b16 %v2080
        %v2181 = vunpack.c.l.b16 %v2081
        %v2182 = vunpack.c.l.b16 %v2082
        %v2183 = vunpack.c.l.b16 %v2083
        %v2184 = vunpack.c.l.b16 %v2084
        %v2185 = vunpack.c.l.b16 %v2085
        %v2186 = vunpack.c.l.b16 %v2086
        %v2187 = vunpack.c.l.b16 %v2087
        %v2188 = vunpack.c.l.b16 %v2088
        %v2189 = vunpack.c.l.b16 %v2089
        %v2190 = vunpack.c.l.b16 %v2090
        %v2191 = vunpack.c.l.b16 %v2091
        %v2192 = vunpack.c.l.b16 %v2092
        %v2193 = vunpack.c.l.b16 %v2093
        %v2194 = vunpack.c.l.b16 %v2094
        %v2195 = vunpack.c.l.b16 %v2095
        %v2196 = vunpack.c.l.b16 %v2096
        %v2197 = vunpack.c.l.b16 %v2097
        %v2198 = vunpack.c.l.b16 %v2098
        %v2199 = vunpack.c.l.b16 %v2099
        %v2200 = vunpack.c.l.b16 %v2100
        %v2201 = vunpack.c.l.b16 %v2101
        %v2202 = vunpack.c.l.b16 %v2102
        %v2203 = vunpack.c.l.b16 %v2103
        %v2204 = vunpack.c.l.b16 %v2104
        %v2205 = vunpack.c.l.b16 %v2105
        %v2206 = vunpack.c.l.b16 %v2106
        %v2207 = vunpack.c.l.b16 %v2107
        %v2208 = vunpack.c.l.b16 %v2108
        %v2209 = vunpack.c.l.b16 %v2109
        %v2210 = vunpack.c.l.b16 %v2110
        %v2211 = vunpack.c.l.b16 %v2111
        %v2212 = vunpack.c.l.b16 %v2112
        %v2213 = vunpack.c.l.b16 %v2113
        %v2214 = vunpack.c.l.b16 %v2114
        %v2215 = vunpack.c.l.b16 %v2115
        %v2216 = vunpack.c.l.b16 %v2116
        %v2217 = vunpack.c.l.b16 %v2117
        %v2218 = vunpack.c.l.b16 %v2118
        %v2219 = vunpack.c.l.b16 %v2119
        %v2220 = vunpack.c.l.b16 %v2120
        %v2221 = vunpack.c.l.b16 %v2121
        %v2222 = vunpack.c.l.b16 %v2122
        %v2223 = vunpack.c.l.b16 %v2123
        %v2224 = vunpack.c.l.b16 %v2124
        %v2225 = vunpack.c.l.b16 %v2125
        %v2226 = vunpack.c.l.b16 %v2126
        %v2227 = vunpack.c.l.b16 %v2127
        %v2228 = vpack.c.b16 %v2179, %v2178
        %v2229 = vpack.c.b16 %v2181, %v2180
        %v2230 = vpack.c.b16 %v2183, %v2182
        %v2231 = vpack.c.b16 %v2185, %v2184
        %v2232 = vpack.c.b16 %v2187, %v2186
        %v2233 = vpack.c.b16 %v2189, %v2188
        %v2234 = vpack.c.b16 %v2191, %v2190
        %v2235 = vpack.c.b16 %v2193, %v2192
        %v2236 = vpack.c.b16 %v2195, %v2194
        %v2237 = vpack.c.b16 %v2197, %v2196
        %v2238 = vpack.c.b16 %v2199, %v2198
        %v2239 = vpack.c.b16 %v2201, %v2200
        %v2240 = vpack.c.b16 %v2203, %v2202
        %v2241 = vpack.c.b16 %v2205, %v2204
        %v2242 = vpack.c.b16 %v2207, %v2206
        %v2243 = vpack.c.b16 %v2209, %v2208
        %v2244 = vpack.c.b16 %v2211, %v2210
        %v2245 = vpack.c.b16 %v2213, %v2212
        %v2246 = vpack.c.b16 %v2215, %v2214
        %v2247 = vpack.c.b16 %v2217, %v2216
        %v2248 = vpack.c.b16 %v2219, %v2218
        %v2249 = vpack.c.b16 %v2221, %v2220
        %v2250 = vpack.c.b16 %v2223, %v2222
        %v2251 = vpack.c.b16 %v2225, %v2224
        %v2252 = vpack.c.b16 %v2227, %v2226
        %2278 = vmatprep.subr.bf16.mxu0 0
        %2279 = vmatpush1.bf16.msra.mxu0 %v2228
        %2280 = vmatprep.subr.bf16.mxu0 0
        %2281 = vmatpush1.bf16.msra.mxu0 %v2229
        %2282 = vmatprep.subr.bf16.mxu0 0
        %2283 = vmatpush1.bf16.msra.mxu0 %v2230
        %2284 = vmatprep.subr.bf16.mxu0 0
        %2285 = vmatpush1.bf16.msra.mxu0 %v2231
        %2286 = vmatprep.subr.bf16.mxu0 0
        %2287 = vmatpush1.bf16.msra.mxu0 %v2232
        %2288 = vmatprep.subr.bf16.mxu0 0
        %2289 = vmatpush1.bf16.msra.mxu0 %v2233
        %2290 = vmatprep.subr.bf16.mxu0 0
        %2291 = vmatpush1.bf16.msra.mxu0 %v2234
        %2292 = vmatprep.subr.bf16.mxu0 0
        %2293 = vmatpush1.bf16.msra.mxu0 %v2235
        %2294 = vmatprep.subr.bf16.mxu0 0
        %2295 = vmatpush1.bf16.msra.mxu0 %v2236
        %2296 = vmatprep.subr.bf16.mxu0 0
        %2297 = vmatpush1.bf16.msra.mxu0 %v2237
        %2298 = vmatprep.subr.bf16.mxu0 0
        %2299 = vmatpush1.bf16.msra.mxu0 %v2238
        %2300 = vmatprep.subr.bf16.mxu0 0
        %2301 = vmatpush1.bf16.msra.mxu0 %v2239
        %2302 = vmatprep.subr.bf16.mxu0 0
        %2303 = vmatpush1.bf16.msra.mxu0 %v2240
        %2304 = vmatprep.subr.bf16.mxu0 0
        %2305 = vmatpush1.bf16.msra.mxu0 %v2241
        %2306 = vmatprep.subr.bf16.mxu0 0
        %2307 = vmatpush1.bf16.msra.mxu0 %v2242
        %2308 = vmatprep.subr.bf16.mxu0 0
        %2309 = vmatpush1.bf16.msra.mxu0 %v2243
        %2310 = vmatprep.mubr.bf16.mxu0 %v1179
        %2311 = vmatmul.mubr.bf16.gmra.mrb[0].mxu0 %v1178
        %v2312 = vpop.f32.mrb[0].mxu0
        %v2313 = vadd.f32 0.0, %v2312
        %v2314 = vpop.f32.mrb[0].mxu0
        %v2315 = vpop.f32.mrb[0].mxu0
        %v2316 = vadd.f32 0.0, %v2315
        %v2317 = vpop.f32.mrb[0].mxu0
        %2318 = vmatprep.mubr.bf16.mxu0 %v1183
        %2319 = vmatmul.mubr.bf16.gmra.mrb[0].mxu0 %v1182
        %v2320 = vpop.f32.mrb[0].mxu0
        %v2321 = vadd.f32 0.0, %v2320
        %v2322 = vpop.f32.mrb[0].mxu0
        %v2323 = vpop.f32.mrb[0].mxu0
        %v2324 = vadd.f32 0.0, %v2323
        %v2325 = vpop.f32.mrb[0].mxu0
        %2326 = vdwg.mxu0
        %2327 = vmatprep.subr.bf16.mxu0 0
        %2328 = vmatpush1.bf16.msra.mxu0 %v2244
        %2329 = vmatprep.subr.bf16.mxu0 0
        %2330 = vmatpush1.bf16.msra.mxu0 %v2245
        %2331 = vmatprep.subr.bf16.mxu0 0
        %2332 = vmatpush1.bf16.msra.mxu0 %v2246
        %2333 = vmatprep.subr.bf16.mxu0 0
        %2334 = vmatpush1.bf16.msra.mxu0 %v2247
        %2335 = vmatprep.subr.bf16.mxu0 0
        %2336 = vmatpush1.bf16.msra.mxu0 %v2248
        %2337 = vmatprep.subr.bf16.mxu0 0
        %2338 = vmatpush1.bf16.msra.mxu0 %v2249
        %2339 = vmatprep.subr.bf16.mxu0 0
        %2340 = vmatpush1.bf16.msra.mxu0 %v2250
        %2341 = vmatprep.subr.bf16.mxu0 0
        %2342 = vmatpush1.bf16.msra.mxu0 %v2251
        %2343 = vmatprep.subr.bf16.mxu0 0
        %2344 = vmatpush1.bf16.msra.mxu0 %v2252
        %2345 = vmatprep.subr.bf16.mxu0 0
        %2346 = vmatpush1.bf16.msra.mxu0 0
        %2347 = vmatprep.subr.bf16.mxu0 0
        %2348 = vmatpush1.bf16.msra.mxu0 0
        %2349 = vmatprep.subr.bf16.mxu0 0
        %2350 = vmatpush1.bf16.msra.mxu0 0
        %2351 = vmatprep.subr.bf16.mxu0 0
        %2352 = vmatpush1.bf16.msra.mxu0 0
        %2353 = vmatprep.subr.bf16.mxu0 0
        %2354 = vmatpush1.bf16.msra.mxu0 0
        %2355 = vmatprep.subr.bf16.mxu0 0
        %2356 = vmatpush1.bf16.msra.mxu0 0
        %2357 = vmatprep.subr.bf16.mxu0 0
        %2358 = vmatpush1.bf16.msra.mxu0 0
        %2359 = vmatprep.mubr.bf16.mxu0 %v1344
        %2360 = vmatmul.mubr.bf16.gmra.mrb[0].mxu0 %v1180
        %v2361 = vpop.f32.mrb[0].mxu0
        %v2362 = vadd.f32 %v2313, %v2361
        %v2363 = vpop.f32.mrb[0].mxu0
        %v2364 = vpop.f32.mrb[0].mxu0
        %v2365 = vadd.f32 %v2316, %v2364
        %v2366 = vpop.f32.mrb[0].mxu0
        %2367 = vmatprep.mubr.bf16.mxu0 %v1347
        %2368 = vmatmul.mubr.bf16.gmra.mrb[0].mxu0 %v1184
        %v2369 = vpop.f32.mrb[0].mxu0
        %v2370 = vadd.f32 %v2321, %v2369
        %v2371 = vpop.f32.mrb[0].mxu0
        %v2372 = vpop.f32.mrb[0].mxu0
        %v2373 = vadd.f32 %v2324, %v2372
        %v2374 = vpop.f32.mrb[0].mxu0
        %2375 = vdwg.mxu0
        %v2376 = vmul.f32 %v2362, %v1063
        %v2377 = vmul.f32 %v2365, %v1068
        %v2378 = vmul.f32 %v2370, %v1073
        %v2379 = vmul.f32 %v2373, %v1078
        %v2380 = vadd.f32 %v2376, %v1087
        %v2381 = vadd.f32 %v2377, %v1092
        %v2382 = vadd.f32 %v2378, %v1097
        %v2383 = vadd.f32 %v2379, %v1102
        %v2384 = vmax.f32 %v2073, %v2380
        %v2385 = vmax.f32 %v2074, %v2381
        %v2386 = vmax.f32 %v2075, %v2382
        %v2387 = vmax.f32 %v2076, %v2383
        %v2388 = vmax.f32 %v2384, -60.0
        %v2389 = vmax.f32 %v2385, -60.0
        %v2390 = vmax.f32 %v2386, -60.0
        %v2391 = vmax.f32 %v2387, -60.0
        %v2392 = vsub.f32 0.0, %v2388
        %v2393 = vsub.f32 0.0, %v2389
        %v2394 = vsub.f32 0.0, %v2390
        %v2395 = vsub.f32 0.0, %v2391
        %v2396 = vmul.f32 %v2392, 1.442695
        %v2397 = vpow.pop %v2396
        %v2398 = vmul.f32 %v2393, 1.442695
        %v2399 = vpow.pop %v2398
        %v2400 = vmul.f32 %v2394, 1.442695
        %v2401 = vpow.pop %v2400
        %v2402 = vmul.f32 %v2395, 1.442695
        %v2403 = vpow.pop %v2402
        %v2404 = vadd.f32 %v2397, 1.0
        %v2405 = vadd.f32 %v2399, 1.0
        %v2406 = vadd.f32 %v2401, 1.0
        %v2407 = vadd.f32 %v2403, 1.0
        %v2408 = vrcp.pop %v2404
        %v2409 = vrcp.pop %v2405
        %v2410 = vrcp.pop %v2406
        %v2411 = vrcp.pop %v2407
        %v2412 = vpack.c.bf16 %v2409, %v2408
        %v2413 = vpack.c.bf16 %v2411, %v2410
        %v2416 = vunpack.c.l.b16 %v2412
        %v2417 = vunpack.c.h.b16 %v2412
        %v2418 = vunpack.c.l.b16 %v2413
        %v2419 = vunpack.c.h.b16 %v2413
        %v2420 = vpack.c.b16 %v2416, %v2416
        %v2421 = vpack.c.b16 %v2417, %v2417
        %v2422 = vpack.c.b16 %v2418, %v2418
        %v2423 = vpack.c.b16 %v2419, %v2419
        %2428 = vst [vmem:[%s1046] sm:$0xf] %v2420
        %2429 = vst [vmem:[%s1046 + $0x4] sm:$0xf] %v2421
        %2430 = vst [vmem:[%s1046 + $0x8] sm:$0xf] %v2422
        %2431 = vst [vmem:[%s1046 + $0xc] sm:$0xf] %v2423
        %s2432 = sand.u32 %s128, 1
        %s2433 = sand.u32 %s128, 1
        %s2434 = smul.addr %s2433, 16
        %s2435 = scalar_lea.vmem [#allocation3], %s2434
        // Predicated region
        $region78: #{cnn_forward.4} parent=72 // pred_check
          %p2436 = pneg %p138
        $region79: #{cnn_forward.4} parent=72 // pred_check_branch
          %2438 = sbr.rel (%p2436) target = $region81
        $region80: #{cnn_forward.4} parent=72 // pred_region
          %s2439 = smul.addr %s19, 8
          %s2440 = sadd.s32 %s20, %s2439
          %s2441 = smul.addr %s2440, 4
          %s2442 = scalar_lea.vmem %s4, %s2441
          // Predicated region
          $region82: #{cnn_forward.4} parent=80 // pred_check
            _
          $region83: #{cnn_forward.4} parent=80 // pred_check_branch
            %2444 = sbr.rel (0) target = $region85
          $region84: #{cnn_forward.4} parent=80 // pred_region
            // Predicated region
            $region86: #{cnn_forward.4} parent=84 // pred_check
              _
            $region87: #{cnn_forward.4} parent=84 // pred_check_branch
              %2446 = sbr.rel target = $region89
            $region88: #{cnn_forward.4} parent=84 // pred_region
              // Predicated region
              $region101: #{cnn_forward.4} parent=88 // pred_check
                _
              $region102: #{cnn_forward.4} parent=88 // pred_check_branch
                %2467 = sbr.rel (0) target = $region104
              $region103: #{cnn_forward.4} parent=88 // pred_region
                loop: start=0, step=1, limit=1
                $region105: #{cnn_forward.4} parent=103 // loop_pre_header
                  _
                $region106: #{cnn_forward.4} parent=103 // loop_header
                  %s2469 = sphi 0, %s2473
                  %p2470 = scmp.ge.s32.totalorder %s2469, 1
                  %s2474 = sphi %s2435, %s2435
                  %s2475 = sphi %s2442, %s2442
                $region107: #{cnn_forward.4} parent=103 // loop_header_branch
                  %2472 = sbr.rel (%p2470) target = $region111
                $region108: #{cnn_forward.4} parent=103 // loop_body
                  _
                $region109: #{cnn_forward.4} parent=103 // loop_footer
                  %s2473 = sadd.s32 1, %s2469
                $region110: #{cnn_forward.4} parent=103 // loop_footer_branch
                  %2468 = sbr.rel target = $region106
                $region111: #{cnn_forward.4} parent=103 // loop_exit
                  _
                loop: start=0, step=1, limit=1
                $region112: #{cnn_forward.4} parent=103 // loop_pre_header
                  _
                $region113: #{cnn_forward.4} parent=103 // loop_header
                  %s2478 = sphi 0, %s2482
                  %p2479 = scmp.ge.s32.totalorder %s2478, 1
                  %s2483 = sphi %s2435, %s2435
                  %s2484 = sphi %s2442, %s2442
                $region114: #{cnn_forward.4} parent=103 // loop_header_branch
                  %2481 = sbr.rel (%p2479) target = $region118
                $region115: #{cnn_forward.4} parent=103 // loop_body
                  %v2485 = vld [vmem:[%s2483] sm:$0xf]
                  %2486 = vst [vmem:[%s2484] sm:$0xf] %v2485
                  %v2487 = vld [vmem:[%s2483 + $0x4] sm:$0xf]
                  %2488 = vst [vmem:[%s2484 + $0x8] sm:$0xf] %v2487
                  %v2489 = vld [vmem:[%s2483 + $0x8] sm:$0xf]
                  %2490 = vst [vmem:[%s2484 + $0x10] sm:$0xf] %v2489
                  %v2491 = vld [vmem:[%s2483 + $0xc] sm:$0xf]
                  %2492 = vst [vmem:[%s2484 + $0x18] sm:$0xf] %v2491
                $region116: #{cnn_forward.4} parent=103 // loop_footer
                  %s2482 = sadd.s32 1, %s2478
                $region117: #{cnn_forward.4} parent=103 // loop_footer_branch
                  %2477 = sbr.rel target = $region113
                $region118: #{cnn_forward.4} parent=103 // loop_exit
                  _
              $region104: #{cnn_forward.4} parent=88 // pred_fallthru
                _
            $region89: #{cnn_forward.4} parent=84 // pred_fallthru
              _
            // Predicated region
            $region90: #{cnn_forward.4} parent=84 // pred_check
              _
            $region91: #{cnn_forward.4} parent=84 // pred_check_branch
              %2448 = sbr.rel (0) target = $region93
            $region92: #{cnn_forward.4} parent=84 // pred_region
              loop: start=0, step=1, limit=1
              $region94: #{cnn_forward.4} parent=92 // loop_pre_header
                _
              $region95: #{cnn_forward.4} parent=92 // loop_header
                %s2451 = sphi 0, %s2455
                %p2452 = scmp.ge.s32.totalorder %s2451, 1
                %s2456 = sphi %s2435, %s2435
                %s2457 = sphi %s2442, %s2442
              $region96: #{cnn_forward.4} parent=92 // loop_header_branch
                %2454 = sbr.rel (%p2452) target = $region100
              $region97: #{cnn_forward.4} parent=92 // loop_body
                %v2458 = vld [vmem:[%s2456] sm:$0xf]
                %2459 = vst [vmem:[%s2457] sm:$0xf] %v2458
                %v2460 = vld [vmem:[%s2456 + $0x4] sm:$0xf]
                %2461 = vst [vmem:[%s2457 + $0x8] sm:$0xf] %v2460
                %v2462 = vld [vmem:[%s2456 + $0x8] sm:$0xf]
                %2463 = vst [vmem:[%s2457 + $0x10] sm:$0xf] %v2462
                %v2464 = vld [vmem:[%s2456 + $0xc] sm:$0xf]
                %2465 = vst [vmem:[%s2457 + $0x18] sm:$0xf] %v2464
              $region98: #{cnn_forward.4} parent=92 // loop_footer
                %s2455 = sadd.s32 1, %s2451
              $region99: #{cnn_forward.4} parent=92 // loop_footer_branch
                %2450 = sbr.rel target = $region95
              $region100: #{cnn_forward.4} parent=92 // loop_exit
                _
            $region93: #{cnn_forward.4} parent=84 // pred_fallthru
              _
          $region85: #{cnn_forward.4} parent=80 // pred_fallthru
            _
          %2493 = vnop
        $region81: #{cnn_forward.4} parent=72 // pred_fallthru
          _
      $region73: #{cnn_forward.4} parent=5 // pred_fallthru
        _
      %p2494 = scmp.le.s32.totalorder 2, %s10
      // Predicated region
      $region119: #{cnn_forward.4} parent=5 // pred_check
        %p2495 = pneg %p2494
      $region120: #{cnn_forward.4} parent=5 // pred_check_branch
        %2497 = sbr.rel (%p2495) target = $region122
      $region121: #{cnn_forward.4} parent=5 // pred_region
        %s2498 = ssub.s32 %s10, 2
        // Predicated region
        $region123: #{cnn_forward.4} parent=121 // pred_check
          %p2499 = pneg %p144
        $region124: #{cnn_forward.4} parent=121 // pred_check_branch
          %2501 = sbr.rel (%p2499) target = $region126
        $region125: #{cnn_forward.4} parent=121 // pred_region
          %s2502 = sand.u32 %s129, 1
          %s2503 = sand.u32 %s129, 1
          %s2504 = smul.addr %s2503, 16
          %s2505 = scalar_lea.vmem [#allocation3], %s2504
        $region126: #{cnn_forward.4} parent=121 // pred_fallthru
          _
      $region122: #{cnn_forward.4} parent=5 // pred_fallthru
        _
    $region6: #{cnn_forward.4} parent=1 // loop_footer
      %s14 = sadd.s32 1, %s10
    $region7: #{cnn_forward.4} parent=1 // loop_footer_branch
      %9 = sbr.rel target = $region3
    $region8: #{cnn_forward.4} parent=1 // loop_exit
      _

// kernel: cnn_forward.5
$region0: #{cnn_forward.5}
  #allocation0 [shape = 'u32[]', space=smem, size = 0x4, offset = 0x4, fixed_abs, tag = 'smem constant byte address 0x4 - core index']
  #allocation1 [shape = 'u32[144,128]{1,0:T(1,128)}', space=vmem, size = 0x12000, scoped, tag = 'internal scratch']
  #allocation2 [shape = 'f32[2,120]{1,0:T(2,128)}', space=vmem, size = 0x400, scoped, tag = 'scratch operand']
  %s0 = inlined_call_operand.vmem [shape: bf16[2,6272], index: 0, kind: input, shape index: {}]
  %s1 = inlined_call_operand.vmem [shape: bf16[6272,120], index: 1, kind: input, shape index: {}]
  %s2 = inlined_call_operand.vmem [shape: f32[1,120], index: 2, kind: input, shape index: {}]
  %s3 = inlined_call_operand.vmem [shape: f32[120,84], index: 3, kind: input, shape index: {}]
  %s4 = inlined_call_operand.vmem [shape: f32[1,84], index: 4, kind: input, shape index: {}]
  %s5 = inlined_call_operand.vmem [shape: f32[84,5], index: 5, kind: input, shape index: {}]
  %s6 = inlined_call_operand.vmem [shape: f32[1,5], index: 6, kind: input, shape index: {}]
  %s7 = inlined_call_operand.hbm [shape: f32[2,5], index: 7, kind: output, shape index: {}]
  %s8 = sld [smem:[#allocation0]]
  $region69: #{cnn_forward.5} parent=0
    _
  %s10 = ssub.s32 1, %s8
  %s11 = scalar_select 0, %s10, %s8
  $region1: #{cnn_forward.5} parent=0
    #allocation3 [shape = 'u8[1024]{0}', space=vmem, size = 0x400, scoped, tag = 'output window, operand 0, single buffered']
    #allocation4 [shape = 's32[2]{0}', space=sflag, size = 0x8, scoped, tag = 'scoped memory for cnn_forward.5']
    %12 = vsyncpa [#allocation4], 0
    loop: start=0, step=1, limit=9
    $region2: #{cnn_forward.5} parent=1 // loop_pre_header
      _
    $region3: #{cnn_forward.5} parent=1 // loop_header
      %s14 = sphi 0, %s18
      %p15 = scmp.ge.s32.totalorder %s14, 9
      %s24 = sphi 0, %s26
      %s27 = sphi 0, %s24
      %s28 = sphi 0, %s27
      %s44 = sphi 0, %s28
      %s50 = sphi 0, %s52
      %s53 = sphi 0, %s50
      %s54 = sphi 0, %s53
      %s70 = sphi 0, %s54
      %s74 = sphi 0, %s74
      %s76 = sphi 0, %s74
      %s77 = sphi 0, %s76
      %s91 = sphi 0, %s77
      %s95 = sphi 0, %s95
      %s97 = sphi 0, %s95
      %s98 = sphi 0, %s97
      %s112 = sphi 0, %s98
      %s116 = sphi 0, %s116
      %s118 = sphi 0, %s116
      %s119 = sphi 0, %s118
      %s133 = sphi 0, %s119
      %s137 = sphi 0, %s137
      %s139 = sphi 0, %s137
      %s140 = sphi 0, %s139
      %s154 = sphi 0, %s140
      %s158 = sphi 0, %s158
      %s160 = sphi 0, %s158
      %s161 = sphi 0, %s160
      %s175 = sphi 0, %s161
      %s179 = sphi 0, %s179
      %s181 = sphi 0, %s179
      %s182 = sphi 0, %s181
      %s196 = sphi 0, %s182
    $region4: #{cnn_forward.5} parent=1 // loop_header_branch
      %17 = sbr.rel (%p15) target = $region8
    $region5: #{cnn_forward.5} parent=1 // loop_body
      %s19 = ssub.s32 %s14, 1
      %s20 = ssub.s32 %s14, 2
      %s21 = sadd.s32 %s14, 1
      %s22 = ssub.s32 %s14, %s21
      %p23 = scmp.eq.s32.totalorder %s22, 0
      %s25 = sadd.s32 %s24, 1
      %s26 = scalar_select %p23, %s24, %s25
      %p29 = pneg %p23
      %p30 = scmp.eq.s32.totalorder %s14, 6
      %p31 = por %p29, %p30
      %p32 = scmp.ne.s32.totalorder %s24, %s27
      %p33 = scmp.eq.s32.totalorder %s14, 0
      %p34 = por %p32, %p33
      %p35 = scmp.ne.s32.totalorder %s24, %s27
      %p36 = scmp.eq.s32.totalorder %s19, 6
      %p37 = por %p35, %p36
      %p38 = scmp.ne.s32.totalorder %s27, %s28
      %p39 = scmp.eq.s32.totalorder %s19, 0
      %p40 = por %p38, %p39
      %p41 = scmp.ne.s32.totalorder %s27, %s28
      %p42 = scmp.eq.s32.totalorder %s20, 6
      %p43 = por %p41, %p42
      %p45 = scmp.ne.s32.totalorder %s28, %s44
      %p46 = scmp.eq.s32.totalorder %s20, 0
      %p47 = por %p45, %p46
      %s48 = ssub.s32 %s14, %s21
      %p49 = scmp.eq.s32.totalorder %s48, 0
      %s51 = sadd.s32 %s50, 1
      %s52 = scalar_select %p49, %s50, %s51
      %p55 = pneg %p49
      %p56 = scmp.eq.s32.totalorder %s14, 6
      %p57 = por %p55, %p56
      %p58 = scmp.ne.s32.totalorder %s50, %s53
      %p59 = scmp.eq.s32.totalorder %s14, 0
      %p60 = por %p58, %p59
      %p61 = scmp.ne.s32.totalorder %s50, %s53
      %p62 = scmp.eq.s32.totalorder %s19, 6
      %p63 = por %p61, %p62
      %p64 = scmp.ne.s32.totalorder %s53, %s54
      %p65 = scmp.eq.s32.totalorder %s19, 0
      %p66 = por %p64, %p65
      %p67 = scmp.ne.s32.totalorder %s53, %s54
      %p68 = scmp.eq.s32.totalorder %s20, 6
      %p69 = por %p67, %p68
      %p71 = scmp.ne.s32.totalorder %s54, %s70
      %p72 = scmp.eq.s32.totalorder %s20, 0
      %p73 = por %p71, %p72
      %s75 = sadd.s32 %s74, 1
      %p78 = scmp.eq.s32.totalorder %s14, 6
      %p79 = scmp.ne.s32.totalorder %s74, %s76
      %p80 = scmp.eq.s32.totalorder %s14, 0
      %p81 = por %p79, %p80
      %p82 = scmp.ne.s32.totalorder %s74, %s76
      %p83 = scmp.eq.s32.totalorder %s19, 6
      %p84 = por %p82, %p83
      %p85 = scmp.ne.s32.totalorder %s76, %s77
      %p86 = scmp.eq.s32.totalorder %s19, 0
      %p87 = por %p85, %p86
      %p88 = scmp.ne.s32.totalorder %s76, %s77
      %p89 = scmp.eq.s32.totalorder %s20, 6
      %p90 = por %p88, %p89
      %p92 = scmp.ne.s32.totalorder %s77, %s91
      %p93 = scmp.eq.s32.totalorder %s20, 0
      %p94 = por %p92, %p93
      %s96 = sadd.s32 %s95, 1
      %p99 = scmp.eq.s32.totalorder %s14, 6
      %p100 = scmp.ne.s32.totalorder %s95, %s97
      %p101 = scmp.eq.s32.totalorder %s14, 0
      %p102 = por %p100, %p101
      %p103 = scmp.ne.s32.totalorder %s95, %s97
      %p104 = scmp.eq.s32.totalorder %s19, 6
      %p105 = por %p103, %p104
      %p106 = scmp.ne.s32.totalorder %s97, %s98
      %p107 = scmp.eq.s32.totalorder %s19, 0
      %p108 = por %p106, %p107
      %p109 = scmp.ne.s32.totalorder %s97, %s98
      %p110 = scmp.eq.s32.totalorder %s20, 6
      %p111 = por %p109, %p110
      %p113 = scmp.ne.s32.totalorder %s98, %s112
      %p114 = scmp.eq.s32.totalorder %s20, 0
      %p115 = por %p113, %p114
      %s117 = sadd.s32 %s116, 1
      %p120 = scmp.eq.s32.totalorder %s14, 6
      %p121 = scmp.ne.s32.totalorder %s116, %s118
      %p122 = scmp.eq.s32.totalorder %s14, 0
      %p123 = por %p121, %p122
      %p124 = scmp.ne.s32.totalorder %s116, %s118
      %p125 = scmp.eq.s32.totalorder %s19, 6
      %p126 = por %p124, %p125
      %p127 = scmp.ne.s32.totalorder %s118, %s119
      %p128 = scmp.eq.s32.totalorder %s19, 0
      %p129 = por %p127, %p128
      %p130 = scmp.ne.s32.totalorder %s118, %s119
      %p131 = scmp.eq.s32.totalorder %s20, 6
      %p132 = por %p130, %p131
      %p134 = scmp.ne.s32.totalorder %s119, %s133
      %p135 = scmp.eq.s32.totalorder %s20, 0
      %p136 = por %p134, %p135
      %s138 = sadd.s32 %s137, 1
      %p141 = scmp.eq.s32.totalorder %s14, 6
      %p142 = scmp.ne.s32.totalorder %s137, %s139
      %p143 = scmp.eq.s32.totalorder %s14, 0
      %p144 = por %p142, %p143
      %p145 = scmp.ne.s32.totalorder %s137, %s139
      %p146 = scmp.eq.s32.totalorder %s19, 6
      %p147 = por %p145, %p146
      %p148 = scmp.ne.s32.totalorder %s139, %s140
      %p149 = scmp.eq.s32.totalorder %s19, 0
      %p150 = por %p148, %p149
      %p151 = scmp.ne.s32.totalorder %s139, %s140
      %p152 = scmp.eq.s32.totalorder %s20, 6
      %p153 = por %p151, %p152
      %p155 = scmp.ne.s32.totalorder %s140, %s154
      %p156 = scmp.eq.s32.totalorder %s20, 0
      %p157 = por %p155, %p156
      %s159 = sadd.s32 %s158, 1
      %p162 = scmp.eq.s32.totalorder %s14, 6
      %p163 = scmp.ne.s32.totalorder %s158, %s160
      %p164 = scmp.eq.s32.totalorder %s14, 0
      %p165 = por %p163, %p164
      %p166 = scmp.ne.s32.totalorder %s158, %s160
      %p167 = scmp.eq.s32.totalorder %s19, 6
      %p168 = por %p166, %p167
      %p169 = scmp.ne.s32.totalorder %s160, %s161
      %p170 = scmp.eq.s32.totalorder %s19, 0
      %p171 = por %p169, %p170
      %p172 = scmp.ne.s32.totalorder %s160, %s161
      %p173 = scmp.eq.s32.totalorder %s20, 6
      %p174 = por %p172, %p173
      %p176 = scmp.ne.s32.totalorder %s161, %s175
      %p177 = scmp.eq.s32.totalorder %s20, 0
      %p178 = por %p176, %p177
      %s180 = sadd.s32 %s179, 1
      %p183 = scmp.eq.s32.totalorder %s14, 6
      %p184 = scmp.ne.s32.totalorder %s179, %s181
      %p185 = scmp.eq.s32.totalorder %s14, 0
      %p186 = por %p184, %p185
      %p187 = scmp.ne.s32.totalorder %s179, %s181
      %p188 = scmp.eq.s32.totalorder %s19, 6
      %p189 = por %p187, %p188
      %p190 = scmp.ne.s32.totalorder %s181, %s182
      %p191 = scmp.eq.s32.totalorder %s19, 0
      %p192 = por %p190, %p191
      %p193 = scmp.ne.s32.totalorder %s181, %s182
      %p194 = scmp.eq.s32.totalorder %s20, 6
      %p195 = por %p193, %p194
      %p197 = scmp.ne.s32.totalorder %s182, %s196
      %p198 = scmp.eq.s32.totalorder %s20, 0
      %p199 = por %p197, %p198
      %p200 = scmp.le.s32.totalorder 1, %s14
      %p201 = scmp.lt.s32.totalorder %s14, 8
      %p202 = pnand %p200, %p201
      %p203 = pneg %p202
      // Predicated region
      $region9: #{cnn_forward.5} parent=5 // pred_check
        _
      $region10: #{cnn_forward.5} parent=5 // pred_check_branch
        %205 = sbr.rel (%p202) target = $region12
      $region11: #{cnn_forward.5} parent=5 // pred_region
        %s206 = ssub.s32 %s14, 1
        // Predicated region
        $region13: #{cnn_forward.5} parent=11 // pred_check
          %p207 = pneg %p87
        $region14: #{cnn_forward.5} parent=11 // pred_check_branch
          %209 = sbr.rel (%p207) target = $region16
        $region15: #{cnn_forward.5} parent=11 // pred_region
          _
        $region16: #{cnn_forward.5} parent=11 // pred_fallthru
          _
        // Predicated region
        $region17: #{cnn_forward.5} parent=11 // pred_check
          %p210 = pneg %p108
        $region18: #{cnn_forward.5} parent=11 // pred_check_branch
          %212 = sbr.rel (%p210) target = $region20
        $region19: #{cnn_forward.5} parent=11 // pred_region
          _
        $region20: #{cnn_forward.5} parent=11 // pred_fallthru
          _
        // Predicated region
        $region21: #{cnn_forward.5} parent=11 // pred_check
          %p213 = pneg %p129
        $region22: #{cnn_forward.5} parent=11 // pred_check_branch
          %215 = sbr.rel (%p213) target = $region24
        $region23: #{cnn_forward.5} parent=11 // pred_region
          _
        $region24: #{cnn_forward.5} parent=11 // pred_fallthru
          _
        // Predicated region
        $region25: #{cnn_forward.5} parent=11 // pred_check
          %p216 = pneg %p150
        $region26: #{cnn_forward.5} parent=11 // pred_check_branch
          %218 = sbr.rel (%p216) target = $region28
        $region27: #{cnn_forward.5} parent=11 // pred_region
          _
        $region28: #{cnn_forward.5} parent=11 // pred_fallthru
          _
        // Predicated region
        $region29: #{cnn_forward.5} parent=11 // pred_check
          %p219 = pneg %p171
        $region30: #{cnn_forward.5} parent=11 // pred_check_branch
          %221 = sbr.rel (%p219) target = $region32
        $region31: #{cnn_forward.5} parent=11 // pred_region
          _
        $region32: #{cnn_forward.5} parent=11 // pred_fallthru
          _
      $region12: #{cnn_forward.5} parent=5 // pred_fallthru
        _
      %p222 = scmp.lt.s32.totalorder %s14, 7
      // Predicated region
      $region33: #{cnn_forward.5} parent=5 // pred_check
        %p223 = pneg %p222
      $region34: #{cnn_forward.5} parent=5 // pred_check_branch
        %225 = sbr.rel (%p223) target = $region36
      $region35: #{cnn_forward.5} parent=5 // pred_region
        // Predicated region
        $region37: #{cnn_forward.5} parent=35 // pred_check
          %p226 = pneg %p34
        $region38: #{cnn_forward.5} parent=35 // pred_check_branch
          %228 = sbr.rel (%p226) target = $region40
        $region39: #{cnn_forward.5} parent=35 // pred_region
          %s229 = smul.u32 7, %s14
          %p230 = scmp.lt.s32.totalorder %s229, 48
          %s231 = scalar_select %p230, %s229, 48
          %s232 = scalar_lea.vmem %s0, %s231
          %s233 = smul.u32 7, %s14
        $region40: #{cnn_forward.5} parent=35 // pred_fallthru
          _
        // Predicated region
        $region41: #{cnn_forward.5} parent=35 // pred_check
          %p234 = pneg %p60
        $region42: #{cnn_forward.5} parent=35 // pred_check_branch
          %236 = sbr.rel (%p234) target = $region44
        $region43: #{cnn_forward.5} parent=35 // pred_region
          %s237 = smul.u32 112, %s14
          %p238 = scmp.lt.s32.totalorder %s237, 783
          %s239 = scalar_select %p238, %s237, 783
          %s240 = smul.addr %s239, 4
          %s241 = scalar_lea.vmem %s1, %s240
          %s242 = smul.u32 112, %s14
        $region44: #{cnn_forward.5} parent=35 // pred_fallthru
          _
      $region36: #{cnn_forward.5} parent=5 // pred_fallthru
        _
      %p243 = scmp.le.s32.totalorder 1, %s14
      %p244 = scmp.lt.s32.totalorder %s14, 8
      %p245 = pnand %p243, %p244
      %p246 = pneg %p245
      // Predicated region
      $region45: #{cnn_forward.5} parent=5 // pred_check
        _
      $region46: #{cnn_forward.5} parent=5 // pred_check_branch
        %248 = sbr.rel (%p245) target = $region48
      $region47: #{cnn_forward.5} parent=5 // pred_region
        %s249 = ssub.s32 %s14, 1
        %s250 = smul.u32 7, %s19
        %p251 = scmp.lt.s32.totalorder %s250, 48
        %s252 = scalar_select %p251, %s250, 48
        %s253 = scalar_lea.vmem %s0, %s252
        %p254 = pneg %p40
        %p255 = pneg %p37
        %s256 = smul.u32 112, %s19
        %p257 = scmp.lt.s32.totalorder %s256, 783
        %s258 = scalar_select %p257, %s256, 783
        %s259 = smul.addr %s258, 4
        %s260 = scalar_lea.vmem %s1, %s259
        %p261 = pneg %p66
        %p262 = pneg %p63
        %p263 = pneg %p87
        %p264 = pneg %p84
        %p265 = pneg %p108
        %p266 = pneg %p105
        %p267 = pneg %p129
        %p268 = pneg %p126
        %p269 = pneg %p150
        %p270 = pneg %p147
        %p271 = pneg %p171
        %p272 = pneg %p168
        %p273 = pneg %p192
        %p274 = pneg %p189
        %s275 = smul.u32 7, %s19
        %p276 = scmp.lt.s32.totalorder %s275, 48
        %s277 = scalar_select %p276, %s275, 48
        %s278 = scalar_lea.vmem %s0, %s277
        %s279 = smul.u32 7, %s19
        %s280 = smul.u32 112, %s19
        %p281 = scmp.lt.s32.totalorder %s280, 783
        %s282 = scalar_select %p281, %s280, 783
        %s283 = smul.addr %s282, 4
        %s284 = scalar_lea.vmem %s1, %s283
        %s285 = smul.u32 112, %s19
        %p287 = scmp.eq.s32.totalorder %s19, 0
        // Predicated region
        $region49: #{cnn_forward.5} parent=47 // pred_check
          %p288 = pneg %p287
        $region50: #{cnn_forward.5} parent=47 // pred_check_branch
          %290 = sbr.rel (%p288) target = $region52
        $region51: #{cnn_forward.5} parent=47 // pred_region
          %vm291 = vcmask 975872
          %292 = vst.msk [vmem:[#allocation2] sm:$0x3] %vm291, 0.0
        $region52: #{cnn_forward.5} parent=47 // pred_fallthru
          _
        %v293 = vld [vmem:[#allocation2] sm:$0x3]
        %v294 = vld [vmem:[%s278] sm:$0x7f]
        %v295 = vld [vmem:[%s284] sm:$0xf]
        %v296 = vld [vmem:[%s284 + $0x4] sm:$0xf]
        %v297 = vld [vmem:[%s284 + $0x8] sm:$0xf]
        %v298 = vld [vmem:[%s284 + $0xc] sm:$0xf]
        %v299 = vld [vmem:[%s284 + $0x10] sm:$0xf]
        %v300 = vld [vmem:[%s284 + $0x14] sm:$0xf]
        %v301 = vld [vmem:[%s284 + $0x18] sm:$0xf]
        %v302 = vld [vmem:[%s284 + $0x1c] sm:$0xf]
        %v303 = vld [vmem:[%s284 + $0x20] sm:$0xf]
        %v304 = vld [vmem:[%s284 + $0x24] sm:$0xf]
        %v305 = vld [vmem:[%s284 + $0x28] sm:$0xf]
        %v306 = vld [vmem:[%s284 + $0x2c] sm:$0xf]
        %v307 = vld [vmem:[%s284 + $0x30] sm:$0xf]
        %v308 = vld [vmem:[%s284 + $0x34] sm:$0xf]
        %v309 = vld [vmem:[%s284 + $0x38] sm:$0xf]
        %v310 = vld [vmem:[%s284 + $0x3c] sm:$0xf]
        %v311 = vld [vmem:[%s284 + $0x40] sm:$0xf]
        %v312 = vld [vmem:[%s284 + $0x44] sm:$0xf]
        %v313 = vld [vmem:[%s284 + $0x48] sm:$0xf]
        %v314 = vld [vmem:[%s284 + $0x4c] sm:$0xf]
        %v315 = vld [vmem:[%s284 + $0x50] sm:$0xf]
        %v316 = vld [vmem:[%s284 + $0x54] sm:$0xf]
        %v317 = vld [vmem:[%s284 + $0x58] sm:$0xf]
        %v318 = vld [vmem:[%s284 + $0x5c] sm:$0xf]
        %v319 = vld [vmem:[%s284 + $0x60] sm:$0xf]
        %v320 = vld [vmem:[%s284 + $0x64] sm:$0xf]
        %v321 = vld [vmem:[%s284 + $0x68] sm:$0xf]
        %v322 = vld [vmem:[%s284 + $0x6c] sm:$0xf]
        %v323 = vld [vmem:[%s284 + $0x70] sm:$0xf]
        %v324 = vld [vmem:[%s284 + $0x74] sm:$0xf]
        %v325 = vld [vmem:[%s284 + $0x78] sm:$0xf]
        %v326 = vld [vmem:[%s284 + $0x7c] sm:$0xf]
        %v327 = vld [vmem:[%s284 + $0x80] sm:$0xf]
        %v328 = vld [vmem:[%s284 + $0x84] sm:$0xf]
        %v329 = vld [vmem:[%s284 + $0x88] sm:$0xf]
        %v330 = vld [vmem:[%s284 + $0x8c] sm:$0xf]
        %v331 = vld [vmem:[%s284 + $0x90] sm:$0xf]
        %v332 = vld [vmem:[%s284 + $0x94] sm:$0xf]
        %v333 = vld [vmem:[%s284 + $0x98] sm:$0xf]
        %v334 = vld [vmem:[%s284 + $0x9c] sm:$0xf]
        %v335 = vld [vmem:[%s284 + $0xa0] sm:$0xf]
        %v336 = vld [vmem:[%s284 + $0xa4] sm:$0xf]
        %v337 = vld [vmem:[%s284 + $0xa8] sm:$0xf]
        %v338 = vld [vmem:[%s284 + $0xac] sm:$0xf]
        %v339 = vld [vmem:[%s284 + $0xb0] sm:$0xf]
        %v340 = vld [vmem:[%s284 + $0xb4] sm:$0xf]
        %v341 = vld [vmem:[%s284 + $0xb8] sm:$0xf]
        %v342 = vld [vmem:[%s284 + $0xbc] sm:$0xf]
        %v343 = vld [vmem:[%s284 + $0xc0] sm:$0xf]
        %v344 = vld [vmem:[%s284 + $0xc4] sm:$0xf]
        %v345 = vld [vmem:[%s284 + $0xc8] sm:$0xf]
        %v346 = vld [vmem:[%s284 + $0xcc] sm:$0xf]
        %v347 = vld [vmem:[%s284 + $0xd0] sm:$0xf]
        %v348 = vld [vmem:[%s284 + $0xd4] sm:$0xf]
        %v349 = vld [vmem:[%s284 + $0xd8] sm:$0xf]
        %v350 = vld [vmem:[%s284 + $0xdc] sm:$0xf]
        %v351 = vld [vmem:[%s284 + $0xe0] sm:$0xf]
        %v352 = vld [vmem:[%s284 + $0xe4] sm:$0xf]
        %v353 = vld [vmem:[%s284 + $0xe8] sm:$0xf]
        %v354 = vld [vmem:[%s284 + $0xec] sm:$0xf]
        %v355 = vld [vmem:[%s284 + $0xf0] sm:$0xf]
        %v356 = vld [vmem:[%s284 + $0xf4] sm:$0xf]
        %v357 = vld [vmem:[%s284 + $0xf8] sm:$0xf]
        %v358 = vld [vmem:[%s284 + $0xfc] sm:$0xf]
        %v359 = vld [vmem:[%s284 + $0x100] sm:$0xf]
        %v360 = vld [vmem:[%s284 + $0x104] sm:$0xf]
        %v361 = vld [vmem:[%s284 + $0x108] sm:$0xf]
        %v362 = vld [vmem:[%s284 + $0x10c] sm:$0xf]
        %v363 = vld [vmem:[%s284 + $0x110] sm:$0xf]
        %v364 = vld [vmem:[%s284 + $0x114] sm:$0xf]
        %v365 = vld [vmem:[%s284 + $0x118] sm:$0xf]
        %v366 = vld [vmem:[%s284 + $0x11c] sm:$0xf]
        %v367 = vld [vmem:[%s284 + $0x120] sm:$0xf]
        %v368 = vld [vmem:[%s284 + $0x124] sm:$0xf]
        %v369 = vld [vmem:[%s284 + $0x128] sm:$0xf]
        %v370 = vld [vmem:[%s284 + $0x12c] sm:$0xf]
        %v371 = vld [vmem:[%s284 + $0x130] sm:$0xf]
        %v372 = vld [vmem:[%s284 + $0x134] sm:$0xf]
        %v373 = vld [vmem:[%s284 + $0x138] sm:$0xf]
        %v374 = vld [vmem:[%s284 + $0x13c] sm:$0xf]
        %v375 = vld [vmem:[%s284 + $0x140] sm:$0xf]
        %v376 = vld [vmem:[%s284 + $0x144] sm:$0xf]
        %v377 = vld [vmem:[%s284 + $0x148] sm:$0xf]
        %v378 = vld [vmem:[%s284 + $0x14c] sm:$0xf]
        %v379 = vld [vmem:[%s284 + $0x150] sm:$0xf]
        %v380 = vld [vmem:[%s284 + $0x154] sm:$0xf]
        %v381 = vld [vmem:[%s284 + $0x158] sm:$0xf]
        %v382 = vld [vmem:[%s284 + $0x15c] sm:$0xf]
        %v383 = vld [vmem:[%s284 + $0x160] sm:$0xf]
        %v384 = vld [vmem:[%s284 + $0x164] sm:$0xf]
        %v385 = vld [vmem:[%s284 + $0x168] sm:$0xf]
        %v386 = vld [vmem:[%s284 + $0x16c] sm:$0xf]
        %v387 = vld [vmem:[%s284 + $0x170] sm:$0xf]
        %v388 = vld [vmem:[%s284 + $0x174] sm:$0xf]
        %v389 = vld [vmem:[%s284 + $0x178] sm:$0xf]
        %v390 = vld [vmem:[%s284 + $0x17c] sm:$0xf]
        %v391 = vld [vmem:[%s284 + $0x180] sm:$0xf]
        %v392 = vld [vmem:[%s284 + $0x184] sm:$0xf]
        %v393 = vld [vmem:[%s284 + $0x188] sm:$0xf]
        %v394 = vld [vmem:[%s284 + $0x18c] sm:$0xf]
        %v395 = vld [vmem:[%s284 + $0x190] sm:$0xf]
        %v396 = vld [vmem:[%s284 + $0x194] sm:$0xf]
        %v397 = vld [vmem:[%s284 + $0x198] sm:$0xf]
        %v398 = vld [vmem:[%s284 + $0x19c] sm:$0xf]
        %v399 = vld [vmem:[%s284 + $0x1a0] sm:$0xf]
        %v400 = vld [vmem:[%s284 + $0x1a4] sm:$0xf]
        %v401 = vld [vmem:[%s284 + $0x1a8] sm:$0xf]
        %v402 = vld [vmem:[%s284 + $0x1ac] sm:$0xf]
        %v403 = vld [vmem:[%s284 + $0x1b0] sm:$0xf]
        %v404 = vld [vmem:[%s284 + $0x1b4] sm:$0xf]
        %v405 = vld [vmem:[%s284 + $0x1b8] sm:$0xf]
        %v406 = vld [vmem:[%s284 + $0x1bc] sm:$0xf]
        %v408 = vcombine.high %v294, %v294
        %v410 = vunpack.c.l.s4 1966171168
        %v411 = vunpack.c.0.s8 %v410
        %v412 = vlaneseq
        %v413 = vshrl.u32 %v412, 7
        %v414 = vsub.s32 %v411, %v413
        %v415 = vrot.slane %v294, %v414
        %v417 = vunpack.c.l.s4 1966171168
        %v418 = vunpack.c.0.s8 %v417
        %v419 = vlaneseq
        %v420 = vshrl.u32 %v419, 7
        %v421 = vsub.s32 %v418, %v420
        %v422 = vrot.slane %v408, %v421
        %v423 = vcombine.high %v415, %v415
        %v424 = vcombine.high %v422, %v422
        %v426 = vunpack.c.l.s4 1966171168
        %v427 = vunpack.c.0.s8 %v426
        %v428 = vlaneseq
        %v429 = vshrl.u32 %v428, 7
        %v430 = vsub.s32 %v427, %v429
        %v431 = vrot.slane %v415, %v430
        %v433 = vunpack.c.l.s4 1966171168
        %v434 = vunpack.c.0.s8 %v433
        %v435 = vlaneseq
        %v436 = vshrl.u32 %v435, 7
        %v437 = vsub.s32 %v434, %v436
        %v438 = vrot.slane %v422, %v437
        %v440 = vunpack.c.l.s4 1966171168
        %v441 = vunpack.c.0.s8 %v440
        %v442 = vlaneseq
        %v443 = vshrl.u32 %v442, 7
        %v444 = vsub.s32 %v441, %v443
        %v445 = vrot.slane %v423, %v444
        %v447 = vunpack.c.l.s4 1966171168
        %v448 = vunpack.c.0.s8 %v447
        %v449 = vlaneseq
        %v450 = vshrl.u32 %v449, 7
        %v451 = vsub.s32 %v448, %v450
        %v452 = vrot.slane %v424, %v451
        %v453 = vcombine.high %v431, %v431
        %v454 = vcombine.high %v438, %v438
        %v455 = vcombine.high %v445, %v445
        %v575 = vunpack.c.l.b16 %v295
        %v576 = vunpack.c.l.b16 %v296
        %v577 = vunpack.c.l.b16 %v297
        %v578 = vunpack.c.l.b16 %v298
        %v579 = vunpack.c.l.b16 %v299
        %v580 = vunpack.c.l.b16 %v300
        %v581 = vunpack.c.l.b16 %v301
        %v582 = vunpack.c.l.b16 %v302
        %v583 = vunpack.c.l.b16 %v303
        %v584 = vunpack.c.l.b16 %v304
        %v585 = vunpack.c.l.b16 %v305
        %v586 = vunpack.c.l.b16 %v306
        %v587 = vunpack.c.l.b16 %v307
        %v588 = vunpack.c.l.b16 %v308
        %v589 = vunpack.c.l.b16 %v309
        %v590 = vunpack.c.l.b16 %v310
        %v591 = vunpack.c.l.b16 %v311
        %v592 = vunpack.c.l.b16 %v312
        %v593 = vunpack.c.l.b16 %v313
        %v594 = vunpack.c.l.b16 %v314
        %v595 = vunpack.c.l.b16 %v315
        %v596 = vunpack.c.l.b16 %v316
        %v597 = vunpack.c.l.b16 %v317
        %v598 = vunpack.c.l.b16 %v318
        %v599 = vunpack.c.l.b16 %v319
        %v600 = vunpack.c.l.b16 %v320
        %v601 = vunpack.c.l.b16 %v321
        %v602 = vunpack.c.l.b16 %v322
        %v603 = vunpack.c.l.b16 %v323
        %v604 = vunpack.c.l.b16 %v324
        %v605 = vunpack.c.l.b16 %v325
        %v606 = vunpack.c.l.b16 %v326
        %v607 = vunpack.c.l.b16 %v327
        %v608 = vunpack.c.l.b16 %v328
        %v609 = vunpack.c.l.b16 %v329
        %v610 = vunpack.c.l.b16 %v330
        %v611 = vunpack.c.l.b16 %v331
        %v612 = vunpack.c.l.b16 %v332
        %v613 = vunpack.c.l.b16 %v333
        %v614 = vunpack.c.l.b16 %v334
        %v615 = vunpack.c.l.b16 %v335
        %v616 = vunpack.c.l.b16 %v336
        %v617 = vunpack.c.l.b16 %v337
        %v618 = vunpack.c.l.b16 %v338
        %v619 = vunpack.c.l.b16 %v339
        %v620 = vunpack.c.l.b16 %v340
        %v621 = vunpack.c.l.b16 %v341
        %v622 = vunpack.c.l.b16 %v342
        %v623 = vunpack.c.l.b16 %v343
        %v624 = vunpack.c.l.b16 %v344
        %v625 = vunpack.c.l.b16 %v345
        %v626 = vunpack.c.l.b16 %v346
        %v627 = vunpack.c.l.b16 %v347
        %v628 = vunpack.c.l.b16 %v348
        %v629 = vunpack.c.l.b16 %v349
        %v630 = vunpack.c.l.b16 %v350
        %v631 = vunpack.c.l.b16 %v351
        %v632 = vunpack.c.l.b16 %v352
        %v633 = vunpack.c.l.b16 %v353
        %v634 = vunpack.c.l.b16 %v354
        %v635 = vunpack.c.l.b16 %v355
        %v636 = vunpack.c.l.b16 %v356
        %v637 = vunpack.c.l.b16 %v357
        %v638 = vunpack.c.l.b16 %v358
        %v639 = vunpack.c.l.b16 %v359
        %v640 = vunpack.c.l.b16 %v360
        %v641 = vunpack.c.l.b16 %v361
        %v642 = vunpack.c.l.b16 %v362
        %v643 = vunpack.c.l.b16 %v363
        %v644 = vunpack.c.l.b16 %v364
        %v645 = vunpack.c.l.b16 %v365
        %v646 = vunpack.c.l.b16 %v366
        %v647 = vunpack.c.l.b16 %v367
        %v648 = vunpack.c.l.b16 %v368
        %v649 = vunpack.c.l.b16 %v369
        %v650 = vunpack.c.l.b16 %v370
        %v651 = vunpack.c.l.b16 %v371
        %v652 = vunpack.c.l.b16 %v372
        %v653 = vunpack.c.l.b16 %v373
        %v654 = vunpack.c.l.b16 %v374
        %v655 = vunpack.c.l.b16 %v375
        %v656 = vunpack.c.l.b16 %v376
        %v657 = vunpack.c.l.b16 %v377
        %v658 = vunpack.c.l.b16 %v378
        %v659 = vunpack.c.l.b16 %v379
        %v660 = vunpack.c.l.b16 %v380
        %v661 = vunpack.c.l.b16 %v381
        %v662 = vunpack.c.l.b16 %v382
        %v663 = vunpack.c.l.b16 %v383
        %v664 = vunpack.c.l.b16 %v384
        %v665 = vunpack.c.l.b16 %v385
        %v666 = vunpack.c.l.b16 %v386
        %v667 = vunpack.c.l.b16 %v387
        %v668 = vunpack.c.l.b16 %v388
        %v669 = vunpack.c.l.b16 %v389
        %v670 = vunpack.c.l.b16 %v390
        %v671 = vunpack.c.l.b16 %v391
        %v672 = vunpack.c.l.b16 %v392
        %v673 = vunpack.c.l.b16 %v393
        %v674 = vunpack.c.l.b16 %v394
        %v675 = vunpack.c.l.b16 %v395
        %v676 = vunpack.c.l.b16 %v396
        %v677 = vunpack.c.l.b16 %v397
        %v678 = vunpack.c.l.b16 %v398
        %v679 = vunpack.c.l.b16 %v399
        %v680 = vunpack.c.l.b16 %v400
        %v681 = vunpack.c.l.b16 %v401
        %v682 = vunpack.c.l.b16 %v402
        %v683 = vunpack.c.l.b16 %v403
        %v684 = vunpack.c.l.b16 %v404
        %v685 = vunpack.c.l.b16 %v405
        %v686 = vunpack.c.l.b16 %v406
        %v687 = vpack.c.b16 %v576, %v575
        %v688 = vpack.c.b16 %v578, %v577
        %v689 = vpack.c.b16 %v580, %v579
        %v690 = vpack.c.b16 %v582, %v581
        %v691 = vpack.c.b16 %v584, %v583
        %v692 = vpack.c.b16 %v586, %v585
        %v693 = vpack.c.b16 %v588, %v587
        %v694 = vpack.c.b16 %v590, %v589
        %v695 = vpack.c.b16 %v592, %v591
        %v696 = vpack.c.b16 %v594, %v593
        %v697 = vpack.c.b16 %v596, %v595
        %v698 = vpack.c.b16 %v598, %v597
        %v699 = vpack.c.b16 %v600, %v599
        %v700 = vpack.c.b16 %v602, %v601
        %v701 = vpack.c.b16 %v604, %v603
        %v702 = vpack.c.b16 %v606, %v605
        %v703 = vpack.c.b16 %v608, %v607
        %v704 = vpack.c.b16 %v610, %v609
        %v705 = vpack.c.b16 %v612, %v611
        %v706 = vpack.c.b16 %v614, %v613
        %v707 = vpack.c.b16 %v616, %v615
        %v708 = vpack.c.b16 %v618, %v617
        %v709 = vpack.c.b16 %v620, %v619
        %v710 = vpack.c.b16 %v622, %v621
        %v711 = vpack.c.b16 %v624, %v623
        %v712 = vpack.c.b16 %v626, %v625
        %v713 = vpack.c.b16 %v628, %v627
        %v714 = vpack.c.b16 %v630, %v629
        %v715 = vpack.c.b16 %v632, %v631
        %v716 = vpack.c.b16 %v634, %v633
        %v717 = vpack.c.b16 %v636, %v635
        %v718 = vpack.c.b16 %v638, %v637
        %v719 = vpack.c.b16 %v640, %v639
        %v720 = vpack.c.b16 %v642, %v641
        %v721 = vpack.c.b16 %v644, %v643
        %v722 = vpack.c.b16 %v646, %v645
        %v723 = vpack.c.b16 %v648, %v647
        %v724 = vpack.c.b16 %v650, %v649
        %v725 = vpack.c.b16 %v652, %v651
        %v726 = vpack.c.b16 %v654, %v653
        %v727 = vpack.c.b16 %v656, %v655
        %v728 = vpack.c.b16 %v658, %v657
        %v729 = vpack.c.b16 %v660, %v659
        %v730 = vpack.c.b16 %v662, %v661
        %v731 = vpack.c.b16 %v664, %v663
        %v732 = vpack.c.b16 %v666, %v665
        %v733 = vpack.c.b16 %v668, %v667
        %v734 = vpack.c.b16 %v670, %v669
        %v735 = vpack.c.b16 %v672, %v671
        %v736 = vpack.c.b16 %v674, %v673
        %v737 = vpack.c.b16 %v676, %v675
        %v738 = vpack.c.b16 %v678, %v677
        %v739 = vpack.c.b16 %v680, %v679
        %v740 = vpack.c.b16 %v682, %v681
        %v741 = vpack.c.b16 %v684, %v683
        %v742 = vpack.c.b16 %v686, %v685
        %799 = vmatprep.subr.bf16.mxu0 0
        %800 = vmatpush1.bf16.msra.mxu0 %v687
        %801 = vmatprep.subr.bf16.mxu0 0
        %802 = vmatpush1.bf16.msra.mxu0 %v688
        %803 = vmatprep.subr.bf16.mxu0 0
        %804 = vmatpush1.bf16.msra.mxu0 %v689
        %805 = vmatprep.subr.bf16.mxu0 0
        %806 = vmatpush1.bf16.msra.mxu0 %v690
        %807 = vmatprep.subr.bf16.mxu0 0
        %808 = vmatpush1.bf16.msra.mxu0 %v691
        %809 = vmatprep.subr.bf16.mxu0 0
        %810 = vmatpush1.bf16.msra.mxu0 %v692
        %811 = vmatprep.subr.bf16.mxu0 0
        %812 = vmatpush1.bf16.msra.mxu0 %v693
        %813 = vmatprep.subr.bf16.mxu0 0
        %814 = vmatpush1.bf16.msra.mxu0 %v694
        %815 = vmatprep.subr.bf16.mxu0 0
        %816 = vmatpush1.bf16.msra.mxu0 %v695
        %817 = vmatprep.subr.bf16.mxu0 0
        %818 = vmatpush1.bf16.msra.mxu0 %v696
        %819 = vmatprep.subr.bf16.mxu0 0
        %820 = vmatpush1.bf16.msra.mxu0 %v697
        %821 = vmatprep.subr.bf16.mxu0 0
        %822 = vmatpush1.bf16.msra.mxu0 %v698
        %823 = vmatprep.subr.bf16.mxu0 0
        %824 = vmatpush1.bf16.msra.mxu0 %v699
        %825 = vmatprep.subr.bf16.mxu0 0
        %826 = vmatpush1.bf16.msra.mxu0 %v700
        %827 = vmatprep.subr.bf16.mxu0 0
        %828 = vmatpush1.bf16.msra.mxu0 %v701
        %829 = vmatprep.subr.bf16.mxu0 0
        %830 = vmatpush1.bf16.msra.mxu0 %v702
        %831 = vmatprep.mubr.bf16.mxu0 %v445
        %832 = vmatmul.mubr.bf16.gmra.mrb[0].mxu0 %v431
        %v833 = vpop.f32.mrb[0].mxu0
        %v834 = vadd.f32 0.0, %v833
        %v835 = vpop.f32.mrb[0].mxu0
        %v836 = vpop.f32.mrb[0].mxu0
        %v837 = vpop.f32.mrb[0].mxu0
        %838 = vdwg.mxu0
        %839 = vmatprep.subr.bf16.mxu0 0
        %840 = vmatpush1.bf16.msra.mxu0 %v703
        %841 = vmatprep.subr.bf16.mxu0 0
        %842 = vmatpush1.bf16.msra.mxu0 %v704
        %843 = vmatprep.subr.bf16.mxu0 0
        %844 = vmatpush1.bf16.msra.mxu0 %v705
        %845 = vmatprep.subr.bf16.mxu0 0
        %846 = vmatpush1.bf16.msra.mxu0 %v706
        %847 = vmatprep.subr.bf16.mxu0 0
        %848 = vmatpush1.bf16.msra.mxu0 %v707
        %849 = vmatprep.subr.bf16.mxu0 0
        %850 = vmatpush1.bf16.msra.mxu0 %v708
        %851 = vmatprep.subr.bf16.mxu0 0
        %852 = vmatpush1.bf16.msra.mxu0 %v709
        %853 = vmatprep.subr.bf16.mxu0 0
        %854 = vmatpush1.bf16.msra.mxu0 %v710
        %855 = vmatprep.subr.bf16.mxu0 0
        %856 = vmatpush1.bf16.msra.mxu0 %v711
        %857 = vmatprep.subr.bf16.mxu0 0
        %858 = vmatpush1.bf16.msra.mxu0 %v712
        %859 = vmatprep.subr.bf16.mxu0 0
        %860 = vmatpush1.bf16.msra.mxu0 %v713
        %861 = vmatprep.subr.bf16.mxu0 0
        %862 = vmatpush1.bf16.msra.mxu0 %v714
        %863 = vmatprep.subr.bf16.mxu0 0
        %864 = vmatpush1.bf16.msra.mxu0 %v715
        %865 = vmatprep.subr.bf16.mxu0 0
        %866 = vmatpush1.bf16.msra.mxu0 %v716
        %867 = vmatprep.subr.bf16.mxu0 0
        %868 = vmatpush1.bf16.msra.mxu0 %v717
        %869 = vmatprep.subr.bf16.mxu0 0
        %870 = vmatpush1.bf16.msra.mxu0 %v718
        %871 = vmatprep.mubr.bf16.mxu0 %v455
        %872 = vmatmul.mubr.bf16.gmra.mrb[0].mxu0 %v453
        %v873 = vpop.f32.mrb[0].mxu0
        %v874 = vadd.f32 %v834, %v873
        %v875 = vpop.f32.mrb[0].mxu0
        %v876 = vpop.f32.mrb[0].mxu0
        %v877 = vpop.f32.mrb[0].mxu0
        %878 = vdwg.mxu0
        %879 = vmatprep.subr.bf16.mxu0 0
        %880 = vmatpush1.bf16.msra.mxu0 %v719
        %881 = vmatprep.subr.bf16.mxu0 0
        %882 = vmatpush1.bf16.msra.mxu0 %v720
        %883 = vmatprep.subr.bf16.mxu0 0
        %884 = vmatpush1.bf16.msra.mxu0 %v721
        %885 = vmatprep.subr.bf16.mxu0 0
        %886 = vmatpush1.bf16.msra.mxu0 %v722
        %887 = vmatprep.subr.bf16.mxu0 0
        %888 = vmatpush1.bf16.msra.mxu0 %v723
        %889 = vmatprep.subr.bf16.mxu0 0
        %890 = vmatpush1.bf16.msra.mxu0 %v724
        %891 = vmatprep.subr.bf16.mxu0 0
        %892 = vmatpush1.bf16.msra.mxu0 %v725
        %893 = vmatprep.subr.bf16.mxu0 0
        %894 = vmatpush1.bf16.msra.mxu0 %v726
        %895 = vmatprep.subr.bf16.mxu0 0
        %896 = vmatpush1.bf16.msra.mxu0 %v727
        %897 = vmatprep.subr.bf16.mxu0 0
        %898 = vmatpush1.bf16.msra.mxu0 %v728
        %899 = vmatprep.subr.bf16.mxu0 0
        %900 = vmatpush1.bf16.msra.mxu0 %v729
        %901 = vmatprep.subr.bf16.mxu0 0
        %902 = vmatpush1.bf16.msra.mxu0 %v730
        %903 = vmatprep.subr.bf16.mxu0 0
        %904 = vmatpush1.bf16.msra.mxu0 %v731
        %905 = vmatprep.subr.bf16.mxu0 0
        %906 = vmatpush1.bf16.msra.mxu0 %v732
        %907 = vmatprep.subr.bf16.mxu0 0
        %908 = vmatpush1.bf16.msra.mxu0 %v733
        %909 = vmatprep.subr.bf16.mxu0 0
        %910 = vmatpush1.bf16.msra.mxu0 %v734
        %911 = vmatprep.mubr.bf16.mxu0 %v452
        %912 = vmatmul.mubr.bf16.gmra.mrb[0].mxu0 %v438
        %v913 = vpop.f32.mrb[0].mxu0
        %v914 = vadd.f32 %v874, %v913
        %v915 = vpop.f32.mrb[0].mxu0
        %v916 = vpop.f32.mrb[0].mxu0
        %v917 = vpop.f32.mrb[0].mxu0
        %918 = vdwg.mxu0
        %919 = vmatprep.subr.bf16.mxu0 0
        %920 = vmatpush1.bf16.msra.mxu0 %v735
        %921 = vmatprep.subr.bf16.mxu0 0
        %922 = vmatpush1.bf16.msra.mxu0 %v736
        %923 = vmatprep.subr.bf16.mxu0 0
        %924 = vmatpush1.bf16.msra.mxu0 %v737
        %925 = vmatprep.subr.bf16.mxu0 0
        %926 = vmatpush1.bf16.msra.mxu0 %v738
        %927 = vmatprep.subr.bf16.mxu0 0
        %928 = vmatpush1.bf16.msra.mxu0 %v739
        %929 = vmatprep.subr.bf16.mxu0 0
        %930 = vmatpush1.bf16.msra.mxu0 %v740
        %931 = vmatprep.subr.bf16.mxu0 0
        %932 = vmatpush1.bf16.msra.mxu0 %v741
        %933 = vmatprep.subr.bf16.mxu0 0
        %934 = vmatpush1.bf16.msra.mxu0 %v742
        %935 = vmatprep.subr.bf16.mxu0 0
        %936 = vmatpush1.bf16.msra.mxu0 0
        %937 = vmatprep.subr.bf16.mxu0 0
        %938 = vmatpush1.bf16.msra.mxu0 0
        %939 = vmatprep.subr.bf16.mxu0 0
        %940 = vmatpush1.bf16.msra.mxu0 0
        %941 = vmatprep.subr.bf16.mxu0 0
        %942 = vmatpush1.bf16.msra.mxu0 0
        %943 = vmatprep.subr.bf16.mxu0 0
        %944 = vmatpush1.bf16.msra.mxu0 0
        %945 = vmatprep.subr.bf16.mxu0 0
        %946 = vmatpush1.bf16.msra.mxu0 0
        %947 = vmatprep.subr.bf16.mxu0 0
        %948 = vmatpush1.bf16.msra.mxu0 0
        %949 = vmatprep.subr.bf16.mxu0 0
        %950 = vmatpush1.bf16.msra.mxu0 0
        %951 = vmatprep.mubr.bf16.mxu0 0
        %952 = vmatmul.mubr.bf16.gmra.mrb[0].mxu0 %v454
        %v953 = vpop.f32.mrb[0].mxu0
        %v954 = vadd.f32 %v914, %v953
        %v955 = vpop.f32.mrb[0].mxu0
        %v956 = vpop.f32.mrb[0].mxu0
        %v957 = vpop.f32.mrb[0].mxu0
        %958 = vdwg.mxu0
        %v959 = vadd.f32 %v293, %v954
        %vm960 = vcmask 975872
        %961 = vst.msk [vmem:[#allocation2] sm:$0x3] %vm960, %v959
        %p962 = scmp.eq.s32.totalorder %s19, 6
        // Predicated region
        $region53: #{cnn_forward.5} parent=47 // pred_check
          %p963 = pneg %p962
        $region54: #{cnn_forward.5} parent=47 // pred_check_branch
          %965 = sbr.rel (%p963) target = $region56
        $region55: #{cnn_forward.5} parent=47 // pred_region
          %v966 = vld [vmem:[#allocation2] sm:$0x3]
          %v967 = vld [vmem:[%s2] sm:$0x1]
          %v969 = vlaneseq
          %v970 = vshrl.u32 %v969, 7
          %v971 = vsub.s32 0, %v970
          %v972 = vrot.slane %v967, %v971
          %v974 = vadd.f32 %v966, %v972
          %v975 = vmax.f32 %v974, -60.0
          %v976 = vsub.f32 0.0, %v975
          %v977 = vmul.f32 %v976, 1.442695
          %v978 = vpow.pop %v977
          %v979 = vadd.f32 %v978, 1.0
          %v980 = vrcp.pop %v979
          %v981 = vld [vmem:[%s3] sm:$0xff]
          %v982 = vld [vmem:[%s3 + $0x8] sm:$0xff]
          %v983 = vld [vmem:[%s3 + $0x10] sm:$0xff]
          %v984 = vld [vmem:[%s3 + $0x18] sm:$0xff]
          %v985 = vld [vmem:[%s3 + $0x20] sm:$0xff]
          %v986 = vld [vmem:[%s3 + $0x28] sm:$0xff]
          %v987 = vld [vmem:[%s3 + $0x30] sm:$0xff]
          %v988 = vld [vmem:[%s3 + $0x38] sm:$0xff]
          %v989 = vld [vmem:[%s3 + $0x40] sm:$0xff]
          %v990 = vld [vmem:[%s3 + $0x48] sm:$0xff]
          %v991 = vld [vmem:[%s3 + $0x50] sm:$0xff]
          %v992 = vld [vmem:[%s3 + $0x58] sm:$0xff]
          %v993 = vld [vmem:[%s3 + $0x60] sm:$0xff]
          %v994 = vld [vmem:[%s3 + $0x68] sm:$0xff]
          %v995 = vld [vmem:[%s3 + $0x70] sm:$0xff]
          %v996 = vld [vmem:[%s4] sm:$0x1]
          %v998 = vlaneseq
          %v999 = vshrl.u32 %v998, 7
          %v1000 = vsub.s32 0, %v999
          %v1001 = vrot.slane %v996, %v1000
          %vm1003 = vcmask 982016
          %v1005 = vsel %vm1003, %v980, 0
          %1007 = vmatprep.subr.mxu0 0.0
          %1008 = vmatpush1.msra.mxu0 %v981
          %1009 = vmatprep.subr.mxu0 0.0
          %1010 = vmatpush1.msra.mxu0 %v982
          %1011 = vmatprep.subr.mxu0 0.0
          %1012 = vmatpush1.msra.mxu0 %v983
          %1013 = vmatprep.subr.mxu0 0.0
          %1014 = vmatpush1.msra.mxu0 %v984
          %1015 = vmatprep.subr.mxu0 0.0
          %1016 = vmatpush1.msra.mxu0 %v985
          %1017 = vmatprep.subr.mxu0 0.0
          %1018 = vmatpush1.msra.mxu0 %v986
          %1019 = vmatprep.subr.mxu0 0.0
          %1020 = vmatpush1.msra.mxu0 %v987
          %1021 = vmatprep.subr.mxu0 0.0
          %1022 = vmatpush1.msra.mxu0 %v988
          %1023 = vmatprep.subr.mxu0 0.0
          %1024 = vmatpush1.msra.mxu0 %v989
          %1025 = vmatprep.subr.mxu0 0.0
          %1026 = vmatpush1.msra.mxu0 %v990
          %1027 = vmatprep.subr.mxu0 0.0
          %1028 = vmatpush1.msra.mxu0 %v991
          %1029 = vmatprep.subr.mxu0 0.0
          %1030 = vmatpush1.msra.mxu0 %v992
          %1031 = vmatprep.subr.mxu0 0.0
          %1032 = vmatpush1.msra.mxu0 %v993
          %1033 = vmatprep.subr.mxu0 0.0
          %1034 = vmatpush1.msra.mxu0 %v994
          %1035 = vmatprep.subr.mxu0 0.0
          %1036 = vmatpush1.msra.mxu0 %v995
          %1037 = vmatprep.subr.mxu0 0.0
          %1038 = vmatpush1.msra.mxu0 0.0
          %1039 = vmatprep.subr.mxu0 0.0
          %1040 = vmatpush1.msra.mxu0 0.0
          %1041 = vmatprep.subr.mxu0 0.0
          %1042 = vmatpush1.msra.mxu0 0.0
          %1043 = vmatprep.subr.mxu0 0.0
          %1044 = vmatpush1.msra.mxu0 0.0
          %1045 = vmatprep.subr.mxu0 0.0
          %1046 = vmatpush1.msra.mxu0 0.0
          %1047 = vmatprep.subr.mxu0 0.0
          %1048 = vmatpush1.msra.mxu0 0.0
          %1049 = vmatprep.subr.mxu0 0.0
          %1050 = vmatpush1.msra.mxu0 0.0
          %1051 = vmatprep.subr.mxu0 0.0
          %1052 = vmatpush1.msra.mxu0 0.0
          %1053 = vmatprep.subr.mxu0 0.0
          %1054 = vmatpush1.msra.mxu0 0.0
          %1055 = vmatprep.subr.mxu0 0.0
          %1056 = vmatpush1.msra.mxu0 0.0
          %1057 = vmatprep.subr.mxu0 0.0
          %1058 = vmatpush1.msra.mxu0 0.0
          %1059 = vmatprep.subr.mxu0 0.0
          %1060 = vmatpush1.msra.mxu0 0.0
          %1061 = vmatprep.subr.mxu0 0.0
          %1062 = vmatpush1.msra.mxu0 0.0
          %1063 = vmatprep.subr.mxu0 0.0
          %1064 = vmatpush1.msra.mxu0 0.0
          %1065 = vmatprep.subr.mxu0 0.0
          %1066 = vmatpush1.msra.mxu0 0.0
          %1067 = vmatprep.subr.mxu0 0.0
          %1068 = vmatpush1.msra.mxu0 0.0
          %1069 = vmatprep.subr.mxu0 0.0
          %1070 = vmatpush1.msra.mxu0 0.0
          %1071 = vmatprep.mubr.f32.mxu0 0.0
          %1072 = vmatmul.mubr.f32.gmra.mrb[0].mxu0 %v1005
          %v1073 = vpop.f32.mrb[0].mxu0
          %v1074 = vadd.f32 %v1001, %v1073
          %v1075 = vpop.f32.mrb[0].mxu0
          %1076 = vdwg.mxu0
          %v1077 = vmax.f32 %v1074, -60.0
          %v1078 = vsub.f32 0.0, %v1077
          %v1079 = vmul.f32 %v1078, 1.442695
          %v1080 = vpow.pop %v1079
          %v1081 = vadd.f32 %v1080, 1.0
          %v1082 = vrcp.pop %v1081
          %v1083 = vld [vmem:[%s5] sm:$0xff]
          %v1084 = vld [vmem:[%s5 + $0x8] sm:$0xff]
          %v1085 = vld [vmem:[%s5 + $0x10] sm:$0xff]
          %v1086 = vld [vmem:[%s5 + $0x18] sm:$0xff]
          %v1087 = vld [vmem:[%s5 + $0x20] sm:$0xff]
          %v1088 = vld [vmem:[%s5 + $0x28] sm:$0xff]
          %v1089 = vld [vmem:[%s5 + $0x30] sm:$0xff]
          %v1090 = vld [vmem:[%s5 + $0x38] sm:$0xff]
          %v1091 = vld [vmem:[%s5 + $0x40] sm:$0xff]
          %v1092 = vld [vmem:[%s5 + $0x48] sm:$0xff]
          %v1093 = vld [vmem:[%s5 + $0x50] sm:$0xf]
          %v1094 = vld [vmem:[%s6] sm:$0x1]
          %v1096 = vlaneseq
          %v1097 = vshrl.u32 %v1096, 7
          %v1098 = vsub.s32 0, %v1097
          %v1099 = vrot.slane %v1094, %v1098
          %vm1101 = vcmask 687104
          %v1103 = vsel %vm1101, %v1082, 0
          %vm1105 = vcmask 1043456
          %v1107 = vsel %vm1105, %v1093, 0
          %1109 = vmatprep.subr.mxu0 0.0
          %1110 = vmatpush1.msra.mxu0 %v1083
          %1111 = vmatprep.subr.mxu0 0.0
          %1112 = vmatpush1.msra.mxu0 %v1084
          %1113 = vmatprep.subr.mxu0 0.0
          %1114 = vmatpush1.msra.mxu0 %v1085
          %1115 = vmatprep.subr.mxu0 0.0
          %1116 = vmatpush1.msra.mxu0 %v1086
          %1117 = vmatprep.subr.mxu0 0.0
          %1118 = vmatpush1.msra.mxu0 %v1087
          %1119 = vmatprep.subr.mxu0 0.0
          %1120 = vmatpush1.msra.mxu0 %v1088
          %1121 = vmatprep.subr.mxu0 0.0
          %1122 = vmatpush1.msra.mxu0 %v1089
          %1123 = vmatprep.subr.mxu0 0.0
          %1124 = vmatpush1.msra.mxu0 %v1090
          %1125 = vmatprep.subr.mxu0 0.0
          %1126 = vmatpush1.msra.mxu0 %v1091
          %1127 = vmatprep.subr.mxu0 0.0
          %1128 = vmatpush1.msra.mxu0 %v1092
          %1129 = vmatprep.subr.mxu0 0.0
          %1130 = vmatpush1.msra.mxu0 %v1107
          %1131 = vmatprep.subr.mxu0 0.0
          %1132 = vmatpush1.msra.mxu0 0.0
          %1133 = vmatprep.subr.mxu0 0.0
          %1134 = vmatpush1.msra.mxu0 0.0
          %1135 = vmatprep.subr.mxu0 0.0
          %1136 = vmatpush1.msra.mxu0 0.0
          %1137 = vmatprep.subr.mxu0 0.0
          %1138 = vmatpush1.msra.mxu0 0.0
          %1139 = vmatprep.subr.mxu0 0.0
          %1140 = vmatpush1.msra.mxu0 0.0
          %1141 = vmatprep.subr.mxu0 0.0
          %1142 = vmatpush1.msra.mxu0 0.0
          %1143 = vmatprep.subr.mxu0 0.0
          %1144 = vmatpush1.msra.mxu0 0.0
          %1145 = vmatprep.subr.mxu0 0.0
          %1146 = vmatpush1.msra.mxu0 0.0
          %1147 = vmatprep.subr.mxu0 0.0
          %1148 = vmatpush1.msra.mxu0 0.0
          %1149 = vmatprep.subr.mxu0 0.0
          %1150 = vmatpush1.msra.mxu0 0.0
          %1151 = vmatprep.subr.mxu0 0.0
          %1152 = vmatpush1.msra.mxu0 0.0
          %1153 = vmatprep.subr.mxu0 0.0
          %1154 = vmatpush1.msra.mxu0 0.0
          %1155 = vmatprep.subr.mxu0 0.0
          %1156 = vmatpush1.msra.mxu0 0.0
          %1157 = vmatprep.subr.mxu0 0.0
          %1158 = vmatpush1.msra.mxu0 0.0
          %1159 = vmatprep.subr.mxu0 0.0
          %1160 = vmatpush1.msra.mxu0 0.0
          %1161 = vmatprep.subr.mxu0 0.0
          %1162 = vmatpush1.msra.mxu0 0.0
          %1163 = vmatprep.subr.mxu0 0.0
          %1164 = vmatpush1.msra.mxu0 0.0
          %1165 = vmatprep.subr.mxu0 0.0
          %1166 = vmatpush1.msra.mxu0 0.0
          %1167 = vmatprep.subr.mxu0 0.0
          %1168 = vmatpush1.msra.mxu0 0.0
          %1169 = vmatprep.subr.mxu0 0.0
          %1170 = vmatpush1.msra.mxu0 0.0
          %1171 = vmatprep.subr.mxu0 0.0
          %1172 = vmatpush1.msra.mxu0 0.0
          %1173 = vmatprep.mubr.f32.mxu0 0.0
          %1174 = vmatmul.mubr.f32.gmra.mrb[0].mxu0 %v1103
          %v1175 = vpop.f32.mrb[0].mxu0
          %v1176 = vadd.f32 %v1099, %v1175
          %v1177 = vpop.f32.mrb[0].mxu0
          %1178 = vdwg.mxu0
          %vm1179 = vcmask 33792
          %1180 = vst.msk [vmem:[#allocation3] sm:$0x3] %vm1179, %v1176
        $region56: #{cnn_forward.5} parent=47 // pred_fallthru
          _
        // Predicated region
        $region57: #{cnn_forward.5} parent=47 // pred_check
          %p1181 = pneg %p189
        $region58: #{cnn_forward.5} parent=47 // pred_check_branch
          %1183 = sbr.rel (%p1181) target = $region60
        $region59: #{cnn_forward.5} parent=47 // pred_region
          %s1185 = ssub.s32 32, 32
          %1186 = vsyncadd [#allocation4], %s1185
          %s1188 = sshll.u32 [#allocation3], 4
          %s1189 = int_to_ptr.vmem [resolvable:$true] %s1188
          %1191 = dma.vmem_to_hbm [thread:$0]  %s1189, 32, %s7, [#allocation4]
        $region60: #{cnn_forward.5} parent=47 // pred_fallthru
          _
        // Predicated region
        $region61: #{cnn_forward.5} parent=47 // pred_check
          %p1192 = pneg %p189
        $region62: #{cnn_forward.5} parent=47 // pred_check_branch
          %1194 = sbr.rel (%p1192) target = $region64
        $region63: #{cnn_forward.5} parent=47 // pred_region
          %1195 = dma.done [#allocation4], 32
        $region64: #{cnn_forward.5} parent=47 // pred_fallthru
          _
      $region48: #{cnn_forward.5} parent=5 // pred_fallthru
        _
      %p1196 = scmp.le.s32.totalorder 2, %s14
      // Predicated region
      $region65: #{cnn_forward.5} parent=5 // pred_check
        %p1197 = pneg %p1196
      $region66: #{cnn_forward.5} parent=5 // pred_check_branch
        %1199 = sbr.rel (%p1197) target = $region68
      $region67: #{cnn_forward.5} parent=5 // pred_region
        %s1200 = ssub.s32 %s14, 2
      $region68: #{cnn_forward.5} parent=5 // pred_fallthru
        _
    $region6: #{cnn_forward.5} parent=1 // loop_footer
      %s18 = sadd.s32 1, %s14
    $region7: #{cnn_forward.5} parent=1 // loop_footer_branch
      %13 = sbr.rel target = $region3
    $region8: #{cnn_forward.5} parent=1 // loop_exit
      _
    %1201 = vsyncpa [#allocation4], 1
    %s1202 = scalar_lea.sflag [#allocation4], 1
    %1203 = vsyncpa %s1202, 1

</llo_original>
